<compile_context>
chip_gen: v5e
topology: v5e:2x2
jax: 0.10.0
libtpu: 0.0.40
codegen_flags: <defaults>
</compile_context>

<pallas_src>
import functools

import jax
import jax.numpy as jnp
from jax import lax
from jax.experimental import pallas as pl
from jax.experimental.pallas import tpu as pltpu


# ----------------------------------------------------------------------- pooling helper
def _local_max_pool(idx_col_ref, gidx_row, netT, pooled_ref, chunk):
    """pool_local (scatter_max + gather): pooled[:, d] = max over points in d's voxel.

    Chunked over destination points so the live intermediate is (h, chunk, N); the chunk
    result is scattered back to lanes [s0, s0+chunk) with a tiny MXU matmul against a 0/1
    selection matrix (avoids unaligned dynamic lane stores, keeps VMEM linear in N).
    """
    n_pts = netT.shape[1]
    pooled_ref[...] = jnp.zeros_like(pooled_ref)
    lane_ids = lax.broadcasted_iota(jnp.int32, (chunk, n_pts), 1)
    sub_ids = lax.broadcasted_iota(jnp.int32, (chunk, n_pts), 0)

    def body(c, carry):
        s0 = pl.multiple_of(c * chunk, chunk)
        idx_c = idx_col_ref[0, pl.ds(s0, chunk), :]                    # (chunk, 1) ids
        same = idx_c == gidx_row                                       # (chunk, N)
        big = jnp.where(same[None, :, :], netT[:, None, :], -1e30)     # (h, chunk, N)
        res = jnp.max(big, axis=2)                                     # (h, chunk)
        sel = (sub_ids + s0 == lane_ids).astype(jnp.float32)           # (chunk, N)
        # each destination lane gets exactly one non-zero contribution -> exact
        pooled_ref[...] += jnp.dot(res, sel, preferred_element_type=jnp.float32)
        return carry

    lax.fori_loop(0, n_pts // chunk, body, 0)


# ----------------------------------------------------------------------------- kernel A
def _pointnet_kernel(n_blocks, bpt, T, G, cout, chunk, fuse_scatter, compute_dtype,
                     coords_ref, idx_row_ref, idx_col_ref,
                     wpos_ref, bpos_ref, wf_ref, bf_ref, w1_ref, b1_ref,
                     wc_ref, bc_ref,
                     out_ref, z_ref, pooled_ref):
    """fc_pos + ResnetBlockFC stack (with local max pooling) + fc_c, (C, N) layout,
    N = bpt*T points (whole batches folded onto the lanes). Optionally fuses the
    scatter_mean onto the voxel grid (small G)."""
    f32 = jnp.float32
    cdt = compute_dtype
    h = w1_ref.shape[1]                                    # hidden_dim

    gidx_row = idx_row_ref[0]                              # (1, N) batch-offset voxel ids

    def res_block(i, netT, pooledT):
        # z = [relu(x); x] staged slice-wise through a persistent VMEM scratch (no concat).
        if pooledT is None:
            z_ref[0:2 * h] = jnp.maximum(netT, 0.0).astype(cdt)
            z_ref[2 * h:4 * h] = netT.astype(cdt)
        else:
            z_ref[0:h] = jnp.maximum(netT, 0.0).astype(cdt)
            z_ref[h:2 * h] = jnp.maximum(pooledT, 0.0).astype(cdt)
            z_ref[2 * h:3 * h] = netT.astype(cdt)
            z_ref[3 * h:4 * h] = pooledT.astype(cdt)
        # fc_0 and the bias-free shortcut fused into one block-diagonal (2h,4h) matmul.
        fused = jnp.dot(wf_ref[i], z_ref[...], preferred_element_type=f32) + bf_ref[i]
        dxT = jnp.dot(w1_ref[i], jnp.maximum(fused[:h], 0.0).astype(cdt),
                      preferred_element_type=f32) + b1_ref[i]
        return fused[h:] + dxT                             # (h, N) f32

    # fc_pos : (2h, 8) @ (8, N)    (xyz zero-padded to 8 channels)
    netT = jnp.dot(wpos_ref[...], coords_ref[0].astype(cdt),
                   preferred_element_type=f32) + bpos_ref[...]
    netT = res_block(0, netT, None)

    for i in range(1, n_blocks):
        _local_max_pool(idx_col_ref, gidx_row, netT, pooled_ref, chunk)
        netT = res_block(i, netT, pooled_ref[...])

    # fc_c, plus an extra constant-one channel the scatter turns into per-voxel counts.
    caugT = jnp.dot(wc_ref[...], netT.astype(cdt),
                    preferred_element_type=f32) + bc_ref[...]          # (caug_pad, N)

    if fuse_scatter:
        # scatter_mean straight onto the voxel grid (small G): one onehot MXU contraction
        # per folded batch gives both the per-voxel sums and the counts; empty voxels -> 0.
        vox = lax.broadcasted_iota(jnp.int32, (1, G), 1)
        tile_b0 = pl.program_id(0) * bpt
        for j in range(bpt):
            idx_b = idx_col_ref[0, j * T:(j + 1) * T, :]               # (T, 1) offset ids
            onehot = (idx_b == vox + (tile_b0 + j) * G).astype(cdt)    # (T, G)
            sums = jnp.dot(caugT[:, j * T:(j + 1) * T].astype(cdt), onehot,
                           preferred_element_type=f32)                 # (caug_pad, G)
            inv = pl.reciprocal(jnp.maximum(sums[cout:cout + 1], 1.0), approx=True)
            out_ref[j] = (sums[:cout] * inv).astype(out_ref.dtype)
    else:
        out_ref[0] = caugT.astype(out_ref.dtype)


# ----------------------------------------------------------------------------- kernel B
def _scatter_mean_kernel(g_tile, cout, compute_dtype, idx_col_ref, caug_ref, out_ref):
    """scatter_mean of per-point features onto one lane-dense tile of the voxel grid."""
    f32 = jnp.float32
    g0 = pl.program_id(1) * g_tile
    idx_col = idx_col_ref[0]                                           # (T, 1) local ids
    hit = jnp.any((idx_col >= g0) & (idx_col < g0 + g_tile))

    @pl.when(hit)
    def _():
        vox = lax.broadcasted_iota(jnp.int32, (1, g_tile), 1) + g0
        onehot = (idx_col == vox).astype(compute_dtype)                # (T, g_tile)
        sums = jnp.dot(caug_ref[0], onehot, preferred_element_type=f32)
        inv = pl.reciprocal(jnp.maximum(sums[cout:cout + 1], 1.0), approx=True)
        out_ref[0] = (sums[:cout] * inv).astype(out_ref.dtype)

    @pl.when(jnp.logical_not(hit))
    def _():
        out_ref[...] = jnp.zeros_like(out_ref)


# ----------------------------------------------------------------------------- glue
def _normalize_and_index(coords, reso_grid, padding):
    # normalize_3d_coordinate + coordinate2index (coord_type='3d'), as in ConvONet.
    p_nor = coords / (1.0 + padding + 10e-4) + 0.5
    p_nor = jnp.where(p_nor >= 1.0, 1.0 - 10e-4, p_nor)
    p_nor = jnp.where(p_nor < 0.0, 0.0, p_nor)
    xi = jnp.floor(p_nor * reso_grid).astype(jnp.int32)
    return xi[..., 0] + reso_grid * (xi[..., 1] + reso_grid * xi[..., 2])   # (B, T)


def _prepare_kernel_params(params, n_blocks, compute_dtype):
    """PyTorch-layout params -> transposed / fused / padded kernel-layout params."""
    h = params['bw0'].shape[2]
    dim_in = params['wpos'].shape[0]
    cout = params['wc'].shape[1]
    caug_pad = ((cout + 1 + 7) // 8) * 8           # fc_c channels + 1 "ones" row, 8-aligned

    wposT = jnp.pad(params['wpos'].T, ((0, 0), (0, 8 - dim_in)))          # (2h, 8)
    bposT = params['bpos'].reshape(-1, 1)                                 # (2h, 1)

    w0T = jnp.transpose(params['bw0'], (0, 2, 1))                         # (n, h, 2h)
    wsT = jnp.transpose(params['bws'], (0, 2, 1))                         # (n, h, 2h)
    wf = jnp.zeros((n_blocks, 2 * h, 4 * h), jnp.float32)
    wf = wf.at[:, :h, :2 * h].set(w0T)             # fc_0 acts on relu(x)
    wf = wf.at[:, h:, 2 * h:].set(wsT)             # shortcut acts on x
    bf = jnp.zeros((n_blocks, 2 * h, 1), jnp.float32)
    bf = bf.at[:, :h, :].set(jnp.transpose(params['bb0'], (0, 2, 1)))

    w1T = jnp.transpose(params['bw1'], (0, 2, 1))                         # (n, h, h)
    b1T = jnp.transpose(params['bb1'], (0, 2, 1))                         # (n, h, 1)

    wcT = jnp.zeros((caug_pad, h), jnp.float32).at[:cout].set(params['wc'].T)
    bcT = (jnp.zeros((caug_pad, 1), jnp.float32)
           .at[:cout, 0].set(params['bc'][0])
           .at[cout, 0].set(1.0))                  # constant-one channel -> per-voxel count

    cdt = compute_dtype
    return dict(wposT=wposT.astype(cdt), bposT=bposT,
                wf=wf.astype(cdt), bf=bf, w1T=w1T.astype(cdt), b1T=b1T,
                wcT=wcT.astype(cdt), bcT=bcT,
                h=h, cout=cout, caug_pad=caug_pad)


def _vmem_limit_bytes(*nbytes):
    # generous: 2x (double buffering) over the accounted buffers + 8 MiB headroom,
    # floored at the 32 MiB scoped default and capped below v7x's 64 MiB per-TC VMEM.
    need = 2 * int(sum(nbytes)) + (8 << 20)
    return int(min(48 << 20, max(32 << 20, need)))


def local_pool_pointnet(p, params, *, reso_grid, padding, n_blocks,
                        batches_per_tile=None, g_tile=None, pool_chunk=8,
                        fuse_scatter=None, compute_dtype=jnp.bfloat16):
    B, T, _ = p.shape
    G = reso_grid ** 3
    cdt = compute_dtype

    if batches_per_tile is None:
        # fill >= 256 lanes per grid step (v6e/v7x MXU width) while keeping N bounded.
        # TODO(synk): on v7x (2 TensorCores) prefer a value that leaves >= 2 grid steps.
        batches_per_tile = 1
        for cand in range(1, B + 1):
            if B % cand == 0 and cand * T <= max(256, T) and cand * T <= 2048:
                batches_per_tile = cand
    bpt = batches_per_tile
    assert B % bpt == 0
    nb = B // bpt
    n_pts = bpt * T
    assert T % pool_chunk == 0 and pool_chunk % 8 == 0

    if fuse_scatter is None:
        fuse_scatter = G <= 8192
    if g_tile is None:
        g_tile = min(G, 2048)
    assert G % g_tile == 0 and (g_tile % 128 == 0 or g_tile == G)
    if not fuse_scatter and bpt > 1:
        assert T % 128 == 0, "split scatter path needs lane-aligned per-batch slices"

    coords = p[:, :, :3].astype(jnp.float32)
    index = _normalize_and_index(coords, reso_grid, padding)              # (B, T) int32

    dim_in = coords.shape[-1]
    coords_pad = jnp.pad(coords, ((0, 0), (0, 0), (0, 8 - dim_in)))       # (B, T, 8)
    coordsT = jnp.swapaxes(coords_pad.reshape(nb, n_pts, 8), 1, 2)        # (nb, 8, N)

    # offset each batch's voxel ids by b*G so folded batches never pool together
    gindex = index + (jnp.arange(B, dtype=jnp.int32) * G)[:, None]        # (B, T)
    idx_row = gindex.reshape(nb, 1, n_pts)
    idx_col = gindex.reshape(nb, n_pts, 1)

    kp = _prepare_kernel_params(params, n_blocks, cdt)
    h, cout, caug_pad = kp['h'], kp['cout'], kp['caug_pad']
    weights = (kp['wposT'], kp['bposT'], kp['wf'], kp['bf'],
               kp['w1T'], kp['b1T'], kp['wcT'], kp['bcT'])

    def _wspec(a):
        nd = a.ndim
        return pl.BlockSpec(a.shape, lambda b, _nd=nd: (0,) * _nd)

    cdt_size = jnp.dtype(cdt).itemsize
    w_bytes = sum(int(w.nbytes) for w in weights) + (1 << 20)
    if fuse_scatter:
        out_shape = jax.ShapeDtypeStruct((B, cout, G), jnp.float32)
        out_spec = pl.BlockSpec((bpt, cout, G), lambda b: (b, 0, 0))
        out_block_bytes = bpt * cout * G * 4
        tail_bytes = (T * G + caug_pad * G) * 4           # onehot + sums intermediates
    else:
        out_shape = jax.ShapeDtypeStruct((nb, caug_pad, n_pts), cdt)
        out_spec = pl.BlockSpec((1, caug_pad, n_pts), lambda b: (b, 0, 0))
        out_block_bytes = caug_pad * n_pts * cdt_size
        tail_bytes = 0

    vmem_a = _vmem_limit_bytes(
        8 * n_pts * 4,                                     # coords block
        8 * n_pts * 4 + n_pts * 128 * 4,                   # idx row (sublane pad) + col (lane pad)
        w_bytes,
        out_block_bytes,
        4 * h * n_pts * cdt_size + h * n_pts * 4,          # z + pooled scratch
        2 * h * pool_chunk * n_pts * 4,                    # pooling chunk intermediates
        tail_bytes,
    )

    # -------- kernel A: per-point MLP + local max pool (+ fused scatter for small G) -----
    out_a = pl.pallas_call(
        functools.partial(_pointnet_kernel, n_blocks, bpt, T, G, cout, pool_chunk,
                          fuse_scatter, cdt),
        out_shape=out_shape,
        grid_spec=pltpu.PrefetchScalarGridSpec(
            num_scalar_prefetch=0,
            grid=(nb,),
            in_specs=[
                pl.BlockSpec((1, 8, n_pts), lambda b: (b, 0, 0)),     # padded transposed xyz
                pl.BlockSpec((1, 1, n_pts), lambda b: (b, 0, 0)),     # offset ids (row form)
                pl.BlockSpec((1, n_pts, 1), lambda b: (b, 0, 0)),     # offset ids (column form)
            ] + [_wspec(w) for w in weights],
            out_specs=out_spec,
            scratch_shapes=[pltpu.VMEM((4 * h, n_pts), cdt),          # z = [relu(x); x]
                            pltpu.VMEM((h, n_pts), jnp.float32)],     # pooled
        ),
        compiler_params=pltpu.CompilerParams(
            dimension_semantics=("parallel",),
            vmem_limit_bytes=vmem_a,
        ),
    )(coordsT, idx_row, idx_col, *weights)

    if fuse_scatter:
        grid_feat = out_a                                              # (B, cout, G)
    else:
        # -------- kernel B: scatter_mean onto the voxel grid, tiled over (batch, G tiles) --
        # TODO(synk): for reso_grid >= 32, skip empty G tiles entirely via scalar-prefetched
        # occupied-tile lists (sorted index) instead of only gating the matmul with pl.when.
        caug = out_a                                                   # (nb, caug_pad, N)
        idx_col_local = index.reshape(B, T, 1)
        vmem_b = _vmem_limit_bytes(
            T * 128 * 4,                                               # idx col block (lane pad)
            caug_pad * T * cdt_size,
            cout * g_tile * 4,
            (T + caug_pad) * g_tile * 4,                               # onehot + sums
        )
        grid_feat = pl.pallas_call(
            functools.partial(_scatter_mean_kernel, g_tile, cout, cdt),
            out_shape=jax.ShapeDtypeStruct((B, cout, G), jnp.float32),
            grid_spec=pltpu.PrefetchScalarGridSpec(
                num_scalar_prefetch=0,
                grid=(B, G // g_tile),
                in_specs=[
                    pl.BlockSpec((1, T, 1), lambda b, g: (b, 0, 0)),
                    pl.BlockSpec((1, caug_pad, T),
                                 lambda b, g, _bpt=bpt: (b // _bpt, 0, b % _bpt)),
                ],
                out_specs=pl.BlockSpec((1, cout, g_tile), lambda b, g: (b, 0, g)),
            ),
            compiler_params=pltpu.CompilerParams(
                dimension_semantics=("parallel", "parallel"),
                vmem_limit_bytes=vmem_b,
            ),
        )(idx_col_local, caug)

    fea_grid = grid_feat.reshape(B, cout, reso_grid, reso_grid, reso_grid)
    # TODO(synk): UNet3D stage skipped — module default unet3d=False means self.unet3d is None.
    return {'grid': fea_grid}


# ----------------------------------------------------------------------------- params
def make_params(key, *, dim, hidden_dim, n_blocks, pointnet_out_dim):
    h = hidden_dim
    ks = iter(jax.random.split(key, 9))

    def init(k, shape, fan_in):
        return jax.random.normal(k, shape, dtype=jnp.float32) / jnp.sqrt(float(fan_in))

    return dict(
        wpos=init(next(ks), (dim, 2 * h), dim),
        bpos=init(next(ks), (1, 2 * h), 4),
        bw0=init(next(ks), (n_blocks, 2 * h, h), 2 * h),
        bb0=init(next(ks), (n_blocks, 1, h), 4),
        bw1=init(next(ks), (n_blocks, h, h), h),
        bb1=init(next(ks), (n_blocks, 1, h), 4),
        bws=init(next(ks), (n_blocks, 2 * h, h), 2 * h),
        wc=init(next(ks), (h, pointnet_out_dim), h),
        bc=init(next(ks), (1, pointnet_out_dim), 4),
    )


# ----------------------------------------------------------------------------- reference
def reference(p, params, *, reso_grid, padding, n_blocks):
    coords = p[:, :, :3]
    B, T, _ = p.shape
    G = reso_grid ** 3
    index = _normalize_and_index(coords, reso_grid, padding)

    def resblock(x, i):
        n0 = jnp.maximum(x, 0.0) @ params['bw0'][i] + params['bb0'][i]
        dx = jnp.maximum(n0, 0.0) @ params['bw1'][i] + params['bb1'][i]
        return x @ params['bws'][i] + dx

    net = coords @ params['wpos'] + params['bpos']
    net = resblock(net, 0)

    def pool(net_b, idx_b):
        cellmax = jax.ops.segment_max(net_b, idx_b, num_segments=G)
        return cellmax[idx_b]

    for i in range(1, n_blocks):
        pooled = jax.vmap(pool)(net, index)
        net = resblock(jnp.concatenate([net, pooled], axis=-1), i)

    c = net @ params['wc'] + params['bc']

    def scat_mean(c_b, idx_b):
        sums = jax.ops.segment_sum(c_b, idx_b, num_segments=G)
        cnt = jax.ops.segment_sum(jnp.ones((c_b.shape[0],), jnp.float32), idx_b,
                                  num_segments=G)
        return (sums / jnp.maximum(cnt, 1.0)[:, None]).T

    grid = jax.vmap(scat_mean)(c, index)
    return {'grid': grid.reshape(B, -1, reso_grid, reso_grid, reso_grid)}


# ----------------------------------------------------------------------------- main
if __name__ == "__main__":
    B, T = 2, 128            # batch, number of points
    dim = 3                  # xyz
    hidden_dim = 32
    n_blocks = 3
    pointnet_out_dim = 32    # unet3d_kwargs['in_channels']
    reso_grid = 8            # grid_resolution  -> G = 512 voxels
    padding = 0.1

    key = jax.random.PRNGKey(0)
    kparams, kx = jax.random.split(key)
    params = make_params(kparams, dim=dim, hidden_dim=hidden_dim,
                         n_blocks=n_blocks, pointnet_out_dim=pointnet_out_dim)
    # feature_size == 0 (use_colors=False, use_surf=False) -> p is just xyz in [-0.5, 0.5]
    p = jax.random.uniform(kx, (B, T, dim), dtype=jnp.float32, minval=-0.5, maxval=0.5)

    ref = jax.block_until_ready(
        reference(p, params, reso_grid=reso_grid, padding=padding,
                  n_blocks=n_blocks)['grid'])

    # Main (production) path: bf16 matmul operands, scatter_mean fused into kernel A.
    out = local_pool_pointnet(p, params, reso_grid=reso_grid, padding=padding,
                              n_blocks=n_blocks, compute_dtype=jnp.bfloat16)['grid']
    out = jax.block_until_ready(out)
    assert out.shape == (B, pointnet_out_dim, reso_grid, reso_grid, reso_grid)
    assert jnp.allclose(out, ref, rtol=5e-2, atol=5e-2), \
        f"fused/bf16 max abs err = {jnp.max(jnp.abs(out - ref))}"

    # Large-G code path (separate scatter kernel), exercised here in f32 for a tight check.
    out2 = local_pool_pointnet(p, params, reso_grid=reso_grid, padding=padding,
                               n_blocks=n_blocks, fuse_scatter=False,
                               compute_dtype=jnp.float32)['grid']
    out2 = jax.block_until_ready(out2)
    assert jnp.allclose(out2, ref, rtol=1e-2, atol=1e-2), \
        f"split/f32 max abs err = {jnp.max(jnp.abs(out2 - ref))}"

    print("KERNEL_OK")
</pallas_src>

<mosaic_0001>
module attributes {stable_mosaic.version = 11 : i64} {
  func.func @_pointnet_kernel(%arg0: i32, %arg1: memref<1x8x256xf32, #tpu.memory_space<vmem>>, %arg2: memref<1x1x256xi32, #tpu.memory_space<vmem>>, %arg3: memref<1x256x1xi32, #tpu.memory_space<vmem>>, %arg4: memref<64x8xbf16, #tpu.memory_space<vmem>>, %arg5: memref<64x1xf32, #tpu.memory_space<vmem>>, %arg6: memref<3x64x128xbf16, #tpu.memory_space<vmem>>, %arg7: memref<3x64x1xf32, #tpu.memory_space<vmem>>, %arg8: memref<3x32x32xbf16, #tpu.memory_space<vmem>>, %arg9: memref<3x32x1xf32, #tpu.memory_space<vmem>>, %arg10: memref<40x32xbf16, #tpu.memory_space<vmem>>, %arg11: memref<40x1xf32, #tpu.memory_space<vmem>>, %arg12: memref<2x32x512xf32, #tpu.memory_space<vmem>>, %arg13: memref<128x256xbf16, #tpu.memory_space<vmem>>, %arg14: memref<32x256xf32, #tpu.memory_space<vmem>>) attributes {dimension_semantics = [#tpu.dimension_semantics<parallel>], iteration_bounds = array<i64: 1>, scalar_prefetch = 0 : i64, scratch_operands = 2 : i64, tpu.core_type = #tpu.core_type<tc>, window_params = [{transform_indices = @transform_0, window_bounds = array<i64: 1, 8, 256>}, {transform_indices = @transform_1, window_bounds = array<i64: 1, 1, 256>}, {transform_indices = @transform_2, window_bounds = array<i64: 1, 256, 1>}, {pipeline_mode = #tpu.pipeline_mode<synchronous>, transform_indices = @transform_3, window_bounds = array<i64: 64, 8>}, {pipeline_mode = #tpu.pipeline_mode<synchronous>, transform_indices = @transform_4, window_bounds = array<i64: 64, 1>}, {pipeline_mode = #tpu.pipeline_mode<synchronous>, transform_indices = @transform_5, window_bounds = array<i64: 3, 64, 128>}, {pipeline_mode = #tpu.pipeline_mode<synchronous>, transform_indices = @transform_6, window_bounds = array<i64: 3, 64, 1>}, {pipeline_mode = #tpu.pipeline_mode<synchronous>, transform_indices = @transform_7, window_bounds = array<i64: 3, 32, 32>}, {pipeline_mode = #tpu.pipeline_mode<synchronous>, transform_indices = @transform_8, window_bounds = array<i64: 3, 32, 1>}, {pipeline_mode = #tpu.pipeline_mode<synchronous>, transform_indices = @transform_9, window_bounds = array<i64: 40, 32>}, {pipeline_mode = #tpu.pipeline_mode<synchronous>, transform_indices = @transform_10, window_bounds = array<i64: 40, 1>}, {transform_indices = @transform_11, window_bounds = array<i64: 2, 32, 512>}]} {
    %c0 = arith.constant 0 : index
    %c0_0 = arith.constant 0 : index
    %c0_1 = arith.constant 0 : index
    %0 = vector.load %arg2[%c0, %c0_0, %c0_1] : memref<1x1x256xi32, #tpu.memory_space<vmem>>, vector<1x1x256xi32>
    %1 = vector.shape_cast %0 : vector<1x1x256xi32> to vector<1x256xi32>
    %c0_2 = arith.constant 0 : index
    %c0_3 = arith.constant 0 : index
    %2 = vector.load %arg4[%c0_2, %c0_3] : memref<64x8xbf16, #tpu.memory_space<vmem>>, vector<64x8xbf16>
    %c0_4 = arith.constant 0 : index
    %c0_5 = arith.constant 0 : index
    %c0_6 = arith.constant 0 : index
    %3 = vector.load %arg1[%c0_4, %c0_5, %c0_6] : memref<1x8x256xf32, #tpu.memory_space<vmem>>, vector<1x8x256xf32>
    %4 = vector.shape_cast %3 : vector<1x8x256xf32> to vector<8x256xf32>
    %5 = arith.truncf %4 : vector<8x256xf32> to vector<8x256xbf16>
    %cst = arith.constant dense<0.000000e+00> : vector<64x256xf32>
    %6 = tpu.matmul %2, %5, %cst {dimension_numbers = #tpu.dot_dimension_numbers<[1], [0], [0], [1], [0, 0, 1, 1], [], []>} : vector<64x8xbf16>, vector<8x256xbf16>, vector<64x256xf32> -> vector<64x256xf32>
    %c0_7 = arith.constant 0 : index
    %c0_8 = arith.constant 0 : index
    %7 = vector.load %arg5[%c0_7, %c0_8] : memref<64x1xf32, #tpu.memory_space<vmem>>, vector<64x1xf32>
    %8 = vector.broadcast %7 : vector<64x1xf32> to vector<64x256xf32>
    %9 = arith.addf %6, %8 : vector<64x256xf32>
    %cst_9 = arith.constant 0.000000e+00 : f32
    %10 = vector.broadcast %cst_9 : f32 to vector<64x256xf32>
    %11 = arith.maximumf %9, %10 : vector<64x256xf32>
    %12 = arith.truncf %11 : vector<64x256xf32> to vector<64x256xbf16>
    %c0_10 = arith.constant 0 : index
    %c0_11 = arith.constant 0 : index
    %13 = vector.load %arg13[%c0_10, %c0_11] : memref<128x256xbf16, #tpu.memory_space<vmem>>, vector<64x256xbf16>
    tpu.vector_store %arg13[%c0_10, %c0_11], %12 {strides = array<i32>} : memref<128x256xbf16, #tpu.memory_space<vmem>>, vector<64x256xbf16>,
    %14 = arith.truncf %9 : vector<64x256xf32> to vector<64x256xbf16>
    %c64 = arith.constant 64 : index
    %c0_12 = arith.constant 0 : index
    %15 = vector.load %arg13[%c64, %c0_12] : memref<128x256xbf16, #tpu.memory_space<vmem>>, vector<64x256xbf16>
    tpu.vector_store %arg13[%c64, %c0_12], %14 {strides = array<i32>} : memref<128x256xbf16, #tpu.memory_space<vmem>>, vector<64x256xbf16>,
    %c0_13 = arith.constant 0 : index
    %c0_14 = arith.constant 0 : index
    %c0_15 = arith.constant 0 : index
    %16 = vector.load %arg6[%c0_13, %c0_14, %c0_15] : memref<3x64x128xbf16, #tpu.memory_space<vmem>>, vector<1x64x128xbf16>
    %17 = vector.shape_cast %16 : vector<1x64x128xbf16> to vector<64x128xbf16>
    %c0_16 = arith.constant 0 : index
    %c0_17 = arith.constant 0 : index
    %18 = vector.load %arg13[%c0_16, %c0_17] : memref<128x256xbf16, #tpu.memory_space<vmem>>, vector<128x256xbf16>
    %cst_18 = arith.constant dense<0.000000e+00> : vector<64x256xf32>
    %19 = tpu.matmul %17, %18, %cst_18 {dimension_numbers = #tpu.dot_dimension_numbers<[1], [0], [0], [1], [0, 0, 1, 1], [], []>} : vector<64x128xbf16>, vector<128x256xbf16>, vector<64x256xf32> -> vector<64x256xf32>
    %c0_19 = arith.constant 0 : index
    %c0_20 = arith.constant 0 : index
    %c0_21 = arith.constant 0 : index
    %20 = vector.load %arg7[%c0_19, %c0_20, %c0_21] : memref<3x64x1xf32, #tpu.memory_space<vmem>>, vector<1x64x1xf32>
    %21 = vector.shape_cast %20 : vector<1x64x1xf32> to vector<64x1xf32>
    %22 = vector.broadcast %21 : vector<64x1xf32> to vector<64x256xf32>
    %23 = arith.addf %19, %22 : vector<64x256xf32>
    %c0_22 = arith.constant 0 : index
    %c0_23 = arith.constant 0 : index
    %c0_24 = arith.constant 0 : index
    %24 = vector.load %arg8[%c0_22, %c0_23, %c0_24] : memref<3x32x32xbf16, #tpu.memory_space<vmem>>, vector<1x32x32xbf16>
    %25 = vector.shape_cast %24 : vector<1x32x32xbf16> to vector<32x32xbf16>
    %26 = vector.extract_strided_slice %23 {offsets = [0, 0], sizes = [32, 256], strides = [1, 1]} : vector<64x256xf32> to vector<32x256xf32>
    %cst_25 = arith.constant 0.000000e+00 : f32
    %27 = vector.broadcast %cst_25 : f32 to vector<32x256xf32>
    %28 = arith.maximumf %26, %27 : vector<32x256xf32>
    %29 = arith.truncf %28 : vector<32x256xf32> to vector<32x256xbf16>
    %cst_26 = arith.constant dense<0.000000e+00> : vector<32x256xf32>
    %30 = tpu.matmul %25, %29, %cst_26 {dimension_numbers = #tpu.dot_dimension_numbers<[1], [0], [0], [1], [0, 0, 1, 1], [], []>} : vector<32x32xbf16>, vector<32x256xbf16>, vector<32x256xf32> -> vector<32x256xf32>
    %c0_27 = arith.constant 0 : index
    %c0_28 = arith.constant 0 : index
    %c0_29 = arith.constant 0 : index
    %31 = vector.load %arg9[%c0_27, %c0_28, %c0_29] : memref<3x32x1xf32, #tpu.memory_space<vmem>>, vector<1x32x1xf32>
    %32 = vector.shape_cast %31 : vector<1x32x1xf32> to vector<32x1xf32>
    %33 = vector.broadcast %32 : vector<32x1xf32> to vector<32x256xf32>
    %34 = arith.addf %30, %33 : vector<32x256xf32>
    %35 = vector.extract_strided_slice %23 {offsets = [32, 0], sizes = [32, 256], strides = [1, 1]} : vector<64x256xf32> to vector<32x256xf32>
    %36 = arith.addf %35, %34 : vector<32x256xf32>
    %cst_30 = arith.constant 0.000000e+00 : f32
    %37 = vector.broadcast %cst_30 : f32 to vector<32x256xf32>
    %c0_31 = arith.constant 0 : index
    %c0_32 = arith.constant 0 : index
    %38 = vector.load %arg14[%c0_31, %c0_32] : memref<32x256xf32, #tpu.memory_space<vmem>>, vector<32x256xf32>
    tpu.vector_store %arg14[%c0_31, %c0_32], %37 {strides = array<i32>} : memref<32x256xf32, #tpu.memory_space<vmem>>, vector<32x256xf32>,
    %39 = tpu.iota {dimensions = array<i32: 1>} : vector<8x256xi32>
    %40 = tpu.iota {dimensions = array<i32: 0>} : vector<8x256xi32>
    %c0_i32 = arith.constant 0 : i32
    %c32_i32 = arith.constant 32 : i32
    %41 = arith.addi %c0_i32, %c32_i32 : i32
    %c1_i32 = arith.constant 1 : i32
    scf.for %arg15 = %c0_i32 to %41 step %c1_i32  : i32 {
      %c8_i32 = arith.constant 8 : i32
      %173 = arith.muli %arg15, %c8_i32 : i32
      %174 = tpu.assume_multiple %173, 8 : i32
      %c0_118 = arith.constant 0 : index
      %175 = arith.index_cast %174 : i32 to index
      %c0_119 = arith.constant 0 : index
      %176 = vector.load %arg3[%c0_118, %175, %c0_119] : memref<1x256x1xi32, #tpu.memory_space<vmem>>, vector<1x8x1xi32>
      %177 = vector.shape_cast %176 : vector<1x8x1xi32> to vector<8x1xi32>
      %178 = vector.broadcast %177 : vector<8x1xi32> to vector<8x256xi32>
      %179 = vector.broadcast %1 : vector<1x256xi32> to vector<8x256xi32>
      %180 = arith.cmpi eq, %178, %179 : vector<8x256xi32>
      %181 = vector.shape_cast %180 : vector<8x256xi1> to vector<1x8x256xi1>
      %182 = vector.shape_cast %36 : vector<32x256xf32> to vector<32x1x256xf32>
      %cst_120 = arith.constant -1.000000e+30 : f32
      %183 = vector.shape_cast %181 : vector<1x8x256xi1> to vector<1x8x256xi1>
      %184 = vector.broadcast %183 : vector<1x8x256xi1> to vector<32x8x256xi1>
      %185 = vector.shape_cast %182 : vector<32x1x256xf32> to vector<32x1x256xf32>
      %186 = vector.broadcast %185 : vector<32x1x256xf32> to vector<32x8x256xf32>
      %187 = vector.broadcast %cst_120 : f32 to vector<32x8x256xf32>
      %188 = arith.select %184, %186, %187 : vector<32x8x256xi1>, vector<32x8x256xf32>
      %cst_121 = arith.constant dense<0xFF800000> : vector<32x8xf32>
      %189 = vector.multi_reduction <maximumf>, %188, %cst_121 [2] : vector<32x8x256xf32> to vector<32x8xf32>
      %190 = vector.broadcast %174 : i32 to vector<8x256xi32>
      %191 = arith.addi %40, %190 : vector<8x256xi32>
      %192 = arith.cmpi eq, %191, %39 : vector<8x256xi32>
      %193 = arith.extui %192 : vector<8x256xi1> to vector<8x256xi32>
      %194 = arith.sitofp %193 : vector<8x256xi32> to vector<8x256xf32>
      %c0_122 = arith.constant 0 : index
      %c0_123 = arith.constant 0 : index
      %195 = vector.load %arg14[%c0_122, %c0_123] : memref<32x256xf32, #tpu.memory_space<vmem>>, vector<32x256xf32>
      %cst_124 = arith.constant dense<0.000000e+00> : vector<32x256xf32>
      %196 = tpu.matmul %189, %194, %cst_124 {dimension_numbers = #tpu.dot_dimension_numbers<[1], [0], [0], [1], [0, 0, 1, 1], [], []>} : vector<32x8xf32>, vector<8x256xf32>, vector<32x256xf32> -> vector<32x256xf32>
      %197 = arith.addf %195, %196 : vector<32x256xf32>
      %c0_125 = arith.constant 0 : index
      %c0_126 = arith.constant 0 : index
      %198 = vector.load %arg14[%c0_125, %c0_126] : memref<32x256xf32, #tpu.memory_space<vmem>>, vector<32x256xf32>
      tpu.vector_store %arg14[%c0_125, %c0_126], %197 {strides = array<i32>} : memref<32x256xf32, #tpu.memory_space<vmem>>, vector<32x256xf32>,
    }
    %c32_i32_33 = arith.constant 32 : i32
    %c0_34 = arith.constant 0 : index
    %c0_35 = arith.constant 0 : index
    %42 = vector.load %arg14[%c0_34, %c0_35] : memref<32x256xf32, #tpu.memory_space<vmem>>, vector<32x256xf32>
    %cst_36 = arith.constant 0.000000e+00 : f32
    %43 = vector.broadcast %cst_36 : f32 to vector<32x256xf32>
    %44 = arith.maximumf %36, %43 : vector<32x256xf32>
    %45 = arith.truncf %44 : vector<32x256xf32> to vector<32x256xbf16>
    %c0_37 = arith.constant 0 : index
    %c0_38 = arith.constant 0 : index
    %46 = vector.load %arg13[%c0_37, %c0_38] : memref<128x256xbf16, #tpu.memory_space<vmem>>, vector<32x256xbf16>
    tpu.vector_store %arg13[%c0_37, %c0_38], %45 {strides = array<i32>} : memref<128x256xbf16, #tpu.memory_space<vmem>>, vector<32x256xbf16>,
    %cst_39 = arith.constant 0.000000e+00 : f32
    %47 = vector.broadcast %cst_39 : f32 to vector<32x256xf32>
    %48 = arith.maximumf %42, %47 : vector<32x256xf32>
    %49 = arith.truncf %48 : vector<32x256xf32> to vector<32x256xbf16>
    %c32 = arith.constant 32 : index
    %c0_40 = arith.constant 0 : index
    %50 = vector.load %arg13[%c32, %c0_40] : memref<128x256xbf16, #tpu.memory_space<vmem>>, vector<32x256xbf16>
    tpu.vector_store %arg13[%c32, %c0_40], %49 {strides = array<i32>} : memref<128x256xbf16, #tpu.memory_space<vmem>>, vector<32x256xbf16>,
    %51 = arith.truncf %36 : vector<32x256xf32> to vector<32x256xbf16>
    %c64_41 = arith.constant 64 : index
    %c0_42 = arith.constant 0 : index
    %52 = vector.load %arg13[%c64_41, %c0_42] : memref<128x256xbf16, #tpu.memory_space<vmem>>, vector<32x256xbf16>
    tpu.vector_store %arg13[%c64_41, %c0_42], %51 {strides = array<i32>} : memref<128x256xbf16, #tpu.memory_space<vmem>>, vector<32x256xbf16>,
    %53 = arith.truncf %42 : vector<32x256xf32> to vector<32x256xbf16>
    %c96 = arith.constant 96 : index
    %c0_43 = arith.constant 0 : index
    %54 = vector.load %arg13[%c96, %c0_43] : memref<128x256xbf16, #tpu.memory_space<vmem>>, vector<32x256xbf16>
    tpu.vector_store %arg13[%c96, %c0_43], %53 {strides = array<i32>} : memref<128x256xbf16, #tpu.memory_space<vmem>>, vector<32x256xbf16>,
    %c1 = arith.constant 1 : index
    %c0_44 = arith.constant 0 : index
    %c0_45 = arith.constant 0 : index
    %55 = vector.load %arg6[%c1, %c0_44, %c0_45] : memref<3x64x128xbf16, #tpu.memory_space<vmem>>, vector<1x64x128xbf16>
    %56 = vector.shape_cast %55 : vector<1x64x128xbf16> to vector<64x128xbf16>
    %c0_46 = arith.constant 0 : index
    %c0_47 = arith.constant 0 : index
    %57 = vector.load %arg13[%c0_46, %c0_47] : memref<128x256xbf16, #tpu.memory_space<vmem>>, vector<128x256xbf16>
    %cst_48 = arith.constant dense<0.000000e+00> : vector<64x256xf32>
    %58 = tpu.matmul %56, %57, %cst_48 {dimension_numbers = #tpu.dot_dimension_numbers<[1], [0], [0], [1], [0, 0, 1, 1], [], []>} : vector<64x128xbf16>, vector<128x256xbf16>, vector<64x256xf32> -> vector<64x256xf32>
    %c1_49 = arith.constant 1 : index
    %c0_50 = arith.constant 0 : index
    %c0_51 = arith.constant 0 : index
    %59 = vector.load %arg7[%c1_49, %c0_50, %c0_51] : memref<3x64x1xf32, #tpu.memory_space<vmem>>, vector<1x64x1xf32>
    %60 = vector.shape_cast %59 : vector<1x64x1xf32> to vector<64x1xf32>
    %61 = vector.broadcast %60 : vector<64x1xf32> to vector<64x256xf32>
    %62 = arith.addf %58, %61 : vector<64x256xf32>
    %c1_52 = arith.constant 1 : index
    %c0_53 = arith.constant 0 : index
    %c0_54 = arith.constant 0 : index
    %63 = vector.load %arg8[%c1_52, %c0_53, %c0_54] : memref<3x32x32xbf16, #tpu.memory_space<vmem>>, vector<1x32x32xbf16>
    %64 = vector.shape_cast %63 : vector<1x32x32xbf16> to vector<32x32xbf16>
    %65 = vector.extract_strided_slice %62 {offsets = [0, 0], sizes = [32, 256], strides = [1, 1]} : vector<64x256xf32> to vector<32x256xf32>
    %cst_55 = arith.constant 0.000000e+00 : f32
    %66 = vector.broadcast %cst_55 : f32 to vector<32x256xf32>
    %67 = arith.maximumf %65, %66 : vector<32x256xf32>
    %68 = arith.truncf %67 : vector<32x256xf32> to vector<32x256xbf16>
    %cst_56 = arith.constant dense<0.000000e+00> : vector<32x256xf32>
    %69 = tpu.matmul %64, %68, %cst_56 {dimension_numbers = #tpu.dot_dimension_numbers<[1], [0], [0], [1], [0, 0, 1, 1], [], []>} : vector<32x32xbf16>, vector<32x256xbf16>, vector<32x256xf32> -> vector<32x256xf32>
    %c1_57 = arith.constant 1 : index
    %c0_58 = arith.constant 0 : index
    %c0_59 = arith.constant 0 : index
    %70 = vector.load %arg9[%c1_57, %c0_58, %c0_59] : memref<3x32x1xf32, #tpu.memory_space<vmem>>, vector<1x32x1xf32>
    %71 = vector.shape_cast %70 : vector<1x32x1xf32> to vector<32x1xf32>
    %72 = vector.broadcast %71 : vector<32x1xf32> to vector<32x256xf32>
    %73 = arith.addf %69, %72 : vector<32x256xf32>
    %74 = vector.extract_strided_slice %62 {offsets = [32, 0], sizes = [32, 256], strides = [1, 1]} : vector<64x256xf32> to vector<32x256xf32>
    %75 = arith.addf %74, %73 : vector<32x256xf32>
    %cst_60 = arith.constant 0.000000e+00 : f32
    %76 = vector.broadcast %cst_60 : f32 to vector<32x256xf32>
    %c0_61 = arith.constant 0 : index
    %c0_62 = arith.constant 0 : index
    %77 = vector.load %arg14[%c0_61, %c0_62] : memref<32x256xf32, #tpu.memory_space<vmem>>, vector<32x256xf32>
    tpu.vector_store %arg14[%c0_61, %c0_62], %76 {strides = array<i32>} : memref<32x256xf32, #tpu.memory_space<vmem>>, vector<32x256xf32>,
    %78 = tpu.iota {dimensions = array<i32: 1>} : vector<8x256xi32>
    %79 = tpu.iota {dimensions = array<i32: 0>} : vector<8x256xi32>
    %c0_i32_63 = arith.constant 0 : i32
    %c32_i32_64 = arith.constant 32 : i32
    %80 = arith.addi %c0_i32_63, %c32_i32_64 : i32
    %c1_i32_65 = arith.constant 1 : i32
    scf.for %arg15 = %c0_i32_63 to %80 step %c1_i32_65  : i32 {
      %c8_i32 = arith.constant 8 : i32
      %173 = arith.muli %arg15, %c8_i32 : i32
      %174 = tpu.assume_multiple %173, 8 : i32
      %c0_118 = arith.constant 0 : index
      %175 = arith.index_cast %174 : i32 to index
      %c0_119 = arith.constant 0 : index
      %176 = vector.load %arg3[%c0_118, %175, %c0_119] : memref<1x256x1xi32, #tpu.memory_space<vmem>>, vector<1x8x1xi32>
      %177 = vector.shape_cast %176 : vector<1x8x1xi32> to vector<8x1xi32>
      %178 = vector.broadcast %177 : vector<8x1xi32> to vector<8x256xi32>
      %179 = vector.broadcast %1 : vector<1x256xi32> to vector<8x256xi32>
      %180 = arith.cmpi eq, %178, %179 : vector<8x256xi32>
      %181 = vector.shape_cast %180 : vector<8x256xi1> to vector<1x8x256xi1>
      %182 = vector.shape_cast %75 : vector<32x256xf32> to vector<32x1x256xf32>
      %cst_120 = arith.constant -1.000000e+30 : f32
      %183 = vector.shape_cast %181 : vector<1x8x256xi1> to vector<1x8x256xi1>
      %184 = vector.broadcast %183 : vector<1x8x256xi1> to vector<32x8x256xi1>
      %185 = vector.shape_cast %182 : vector<32x1x256xf32> to vector<32x1x256xf32>
      %186 = vector.broadcast %185 : vector<32x1x256xf32> to vector<32x8x256xf32>
      %187 = vector.broadcast %cst_120 : f32 to vector<32x8x256xf32>
      %188 = arith.select %184, %186, %187 : vector<32x8x256xi1>, vector<32x8x256xf32>
      %cst_121 = arith.constant dense<0xFF800000> : vector<32x8xf32>
      %189 = vector.multi_reduction <maximumf>, %188, %cst_121 [2] : vector<32x8x256xf32> to vector<32x8xf32>
      %190 = vector.broadcast %174 : i32 to vector<8x256xi32>
      %191 = arith.addi %79, %190 : vector<8x256xi32>
      %192 = arith.cmpi eq, %191, %78 : vector<8x256xi32>
      %193 = arith.extui %192 : vector<8x256xi1> to vector<8x256xi32>
      %194 = arith.sitofp %193 : vector<8x256xi32> to vector<8x256xf32>
      %c0_122 = arith.constant 0 : index
      %c0_123 = arith.constant 0 : index
      %195 = vector.load %arg14[%c0_122, %c0_123] : memref<32x256xf32, #tpu.memory_space<vmem>>, vector<32x256xf32>
      %cst_124 = arith.constant dense<0.000000e+00> : vector<32x256xf32>
      %196 = tpu.matmul %189, %194, %cst_124 {dimension_numbers = #tpu.dot_dimension_numbers<[1], [0], [0], [1], [0, 0, 1, 1], [], []>} : vector<32x8xf32>, vector<8x256xf32>, vector<32x256xf32> -> vector<32x256xf32>
      %197 = arith.addf %195, %196 : vector<32x256xf32>
      %c0_125 = arith.constant 0 : index
      %c0_126 = arith.constant 0 : index
      %198 = vector.load %arg14[%c0_125, %c0_126] : memref<32x256xf32, #tpu.memory_space<vmem>>, vector<32x256xf32>
      tpu.vector_store %arg14[%c0_125, %c0_126], %197 {strides = array<i32>} : memref<32x256xf32, #tpu.memory_space<vmem>>, vector<32x256xf32>,
    }
    %c32_i32_66 = arith.constant 32 : i32
    %c0_67 = arith.constant 0 : index
    %c0_68 = arith.constant 0 : index
    %81 = vector.load %arg14[%c0_67, %c0_68] : memref<32x256xf32, #tpu.memory_space<vmem>>, vector<32x256xf32>
    %cst_69 = arith.constant 0.000000e+00 : f32
    %82 = vector.broadcast %cst_69 : f32 to vector<32x256xf32>
    %83 = arith.maximumf %75, %82 : vector<32x256xf32>
    %84 = arith.truncf %83 : vector<32x256xf32> to vector<32x256xbf16>
    %c0_70 = arith.constant 0 : index
    %c0_71 = arith.constant 0 : index
    %85 = vector.load %arg13[%c0_70, %c0_71] : memref<128x256xbf16, #tpu.memory_space<vmem>>, vector<32x256xbf16>
    tpu.vector_store %arg13[%c0_70, %c0_71], %84 {strides = array<i32>} : memref<128x256xbf16, #tpu.memory_space<vmem>>, vector<32x256xbf16>,
    %cst_72 = arith.constant 0.000000e+00 : f32
    %86 = vector.broadcast %cst_72 : f32 to vector<32x256xf32>
    %87 = arith.maximumf %81, %86 : vector<32x256xf32>
    %88 = arith.truncf %87 : vector<32x256xf32> to vector<32x256xbf16>
    %c32_73 = arith.constant 32 : index
    %c0_74 = arith.constant 0 : index
    %89 = vector.load %arg13[%c32_73, %c0_74] : memref<128x256xbf16, #tpu.memory_space<vmem>>, vector<32x256xbf16>
    tpu.vector_store %arg13[%c32_73, %c0_74], %88 {strides = array<i32>} : memref<128x256xbf16, #tpu.memory_space<vmem>>, vector<32x256xbf16>,
    %90 = arith.truncf %75 : vector<32x256xf32> to vector<32x256xbf16>
    %c64_75 = arith.constant 64 : index
    %c0_76 = arith.constant 0 : index
    %91 = vector.load %arg13[%c64_75, %c0_76] : memref<128x256xbf16, #tpu.memory_space<vmem>>, vector<32x256xbf16>
    tpu.vector_store %arg13[%c64_75, %c0_76], %90 {strides = array<i32>} : memref<128x256xbf16, #tpu.memory_space<vmem>>, vector<32x256xbf16>,
    %92 = arith.truncf %81 : vector<32x256xf32> to vector<32x256xbf16>
    %c96_77 = arith.constant 96 : index
    %c0_78 = arith.constant 0 : index
    %93 = vector.load %arg13[%c96_77, %c0_78] : memref<128x256xbf16, #tpu.memory_space<vmem>>, vector<32x256xbf16>
    tpu.vector_store %arg13[%c96_77, %c0_78], %92 {strides = array<i32>} : memref<128x256xbf16, #tpu.memory_space<vmem>>, vector<32x256xbf16>,
    %c2 = arith.constant 2 : index
    %c0_79 = arith.constant 0 : index
    %c0_80 = arith.constant 0 : index
    %94 = vector.load %arg6[%c2, %c0_79, %c0_80] : memref<3x64x128xbf16, #tpu.memory_space<vmem>>, vector<1x64x128xbf16>
    %95 = vector.shape_cast %94 : vector<1x64x128xbf16> to vector<64x128xbf16>
    %c0_81 = arith.constant 0 : index
    %c0_82 = arith.constant 0 : index
    %96 = vector.load %arg13[%c0_81, %c0_82] : memref<128x256xbf16, #tpu.memory_space<vmem>>, vector<128x256xbf16>
    %cst_83 = arith.constant dense<0.000000e+00> : vector<64x256xf32>
    %97 = tpu.matmul %95, %96, %cst_83 {dimension_numbers = #tpu.dot_dimension_numbers<[1], [0], [0], [1], [0, 0, 1, 1], [], []>} : vector<64x128xbf16>, vector<128x256xbf16>, vector<64x256xf32> -> vector<64x256xf32>
    %c2_84 = arith.constant 2 : index
    %c0_85 = arith.constant 0 : index
    %c0_86 = arith.constant 0 : index
    %98 = vector.load %arg7[%c2_84, %c0_85, %c0_86] : memref<3x64x1xf32, #tpu.memory_space<vmem>>, vector<1x64x1xf32>
    %99 = vector.shape_cast %98 : vector<1x64x1xf32> to vector<64x1xf32>
    %100 = vector.broadcast %99 : vector<64x1xf32> to vector<64x256xf32>
    %101 = arith.addf %97, %100 : vector<64x256xf32>
    %c2_87 = arith.constant 2 : index
    %c0_88 = arith.constant 0 : index
    %c0_89 = arith.constant 0 : index
    %102 = vector.load %arg8[%c2_87, %c0_88, %c0_89] : memref<3x32x32xbf16, #tpu.memory_space<vmem>>, vector<1x32x32xbf16>
    %103 = vector.shape_cast %102 : vector<1x32x32xbf16> to vector<32x32xbf16>
    %104 = vector.extract_strided_slice %101 {offsets = [0, 0], sizes = [32, 256], strides = [1, 1]} : vector<64x256xf32> to vector<32x256xf32>
    %cst_90 = arith.constant 0.000000e+00 : f32
    %105 = vector.broadcast %cst_90 : f32 to vector<32x256xf32>
    %106 = arith.maximumf %104, %105 : vector<32x256xf32>
    %107 = arith.truncf %106 : vector<32x256xf32> to vector<32x256xbf16>
    %cst_91 = arith.constant dense<0.000000e+00> : vector<32x256xf32>
    %108 = tpu.matmul %103, %107, %cst_91 {dimension_numbers = #tpu.dot_dimension_numbers<[1], [0], [0], [1], [0, 0, 1, 1], [], []>} : vector<32x32xbf16>, vector<32x256xbf16>, vector<32x256xf32> -> vector<32x256xf32>
    %c2_92 = arith.constant 2 : index
    %c0_93 = arith.constant 0 : index
    %c0_94 = arith.constant 0 : index
    %109 = vector.load %arg9[%c2_92, %c0_93, %c0_94] : memref<3x32x1xf32, #tpu.memory_space<vmem>>, vector<1x32x1xf32>
    %110 = vector.shape_cast %109 : vector<1x32x1xf32> to vector<32x1xf32>
    %111 = vector.broadcast %110 : vector<32x1xf32> to vector<32x256xf32>
    %112 = arith.addf %108, %111 : vector<32x256xf32>
    %113 = vector.extract_strided_slice %101 {offsets = [32, 0], sizes = [32, 256], strides = [1, 1]} : vector<64x256xf32> to vector<32x256xf32>
    %114 = arith.addf %113, %112 : vector<32x256xf32>
    %c0_95 = arith.constant 0 : index
    %c0_96 = arith.constant 0 : index
    %115 = vector.load %arg10[%c0_95, %c0_96] : memref<40x32xbf16, #tpu.memory_space<vmem>>, vector<40x32xbf16>
    %116 = arith.truncf %114 : vector<32x256xf32> to vector<32x256xbf16>
    %cst_97 = arith.constant dense<0.000000e+00> : vector<40x256xf32>
    %117 = tpu.matmul %115, %116, %cst_97 {dimension_numbers = #tpu.dot_dimension_numbers<[1], [0], [0], [1], [0, 0, 1, 1], [], []>} : vector<40x32xbf16>, vector<32x256xbf16>, vector<40x256xf32> -> vector<40x256xf32>
    %c0_98 = arith.constant 0 : index
    %c0_99 = arith.constant 0 : index
    %118 = vector.load %arg11[%c0_98, %c0_99] : memref<40x1xf32, #tpu.memory_space<vmem>>, vector<40x1xf32>
    %119 = vector.broadcast %118 : vector<40x1xf32> to vector<40x256xf32>
    %120 = arith.addf %117, %119 : vector<40x256xf32>
    %121 = tpu.iota {dimensions = array<i32: 1>} : vector<1x512xi32>
    %c2_i32 = arith.constant 2 : i32
    %122 = arith.muli %arg0, %c2_i32 : i32
    %c0_100 = arith.constant 0 : index
    %c0_101 = arith.constant 0 : index
    %c0_102 = arith.constant 0 : index
    %123 = vector.load %arg3[%c0_100, %c0_101, %c0_102] : memref<1x256x1xi32, #tpu.memory_space<vmem>>, vector<1x128x1xi32>
    %124 = vector.shape_cast %123 : vector<1x128x1xi32> to vector<128x1xi32>
    %c0_i32_103 = arith.constant 0 : i32
    %125 = arith.addi %122, %c0_i32_103 : i32
    %c512_i32 = arith.constant 512 : i32
    %126 = arith.muli %125, %c512_i32 : i32
    %127 = vector.broadcast %126 : i32 to vector<1x512xi32>
    %128 = arith.addi %121, %127 : vector<1x512xi32>
    %129 = vector.broadcast %124 : vector<128x1xi32> to vector<128x512xi32>
    %130 = vector.broadcast %128 : vector<1x512xi32> to vector<128x512xi32>
    %131 = arith.cmpi eq, %129, %130 : vector<128x512xi32>
    %132 = arith.extui %131 : vector<128x512xi1> to vector<128x512xi32>
    %133 = arith.sitofp %132 : vector<128x512xi32> to vector<128x512xf32>
    %134 = arith.truncf %133 : vector<128x512xf32> to vector<128x512xbf16>
    %135 = vector.extract_strided_slice %120 {offsets = [0, 0], sizes = [40, 128], strides = [1, 1]} : vector<40x256xf32> to vector<40x128xf32>
    %136 = arith.truncf %135 : vector<40x128xf32> to vector<40x128xbf16>
    %cst_104 = arith.constant dense<0.000000e+00> : vector<40x512xf32>
    %137 = tpu.matmul %136, %134, %cst_104 {dimension_numbers = #tpu.dot_dimension_numbers<[1], [0], [0], [1], [0, 0, 1, 1], [], []>} : vector<40x128xbf16>, vector<128x512xbf16>, vector<40x512xf32> -> vector<40x512xf32>
    %138 = vector.extract_strided_slice %137 {offsets = [32, 0], sizes = [1, 512], strides = [1, 1]} : vector<40x512xf32> to vector<1x512xf32>
    %cst_105 = arith.constant 1.000000e+00 : f32
    %139 = vector.broadcast %cst_105 : f32 to vector<1x512xf32>
    %140 = arith.maximumf %138, %139 : vector<1x512xf32>
    %141 = tpu.reciprocal %140 {approx = true} : vector<1x512xf32> -> vector<1x512xf32>
    %142 = vector.extract_strided_slice %137 {offsets = [0, 0], sizes = [32, 512], strides = [1, 1]} : vector<40x512xf32> to vector<32x512xf32>
    %143 = vector.broadcast %141 : vector<1x512xf32> to vector<32x512xf32>
    %144 = arith.mulf %142, %143 : vector<32x512xf32>
    %c0_106 = arith.constant 0 : index
    %c0_107 = arith.constant 0 : index
    %c0_108 = arith.constant 0 : index
    %145 = vector.load %arg12[%c0_106, %c0_107, %c0_108] : memref<2x32x512xf32, #tpu.memory_space<vmem>>, vector<1x32x512xf32>
    %146 = vector.shape_cast %145 : vector<1x32x512xf32> to vector<32x512xf32>
    %147 = vector.shape_cast %144 : vector<32x512xf32> to vector<1x32x512xf32>
    tpu.vector_store %arg12[%c0_106, %c0_107, %c0_108], %147 {strides = array<i32>} : memref<2x32x512xf32, #tpu.memory_space<vmem>>, vector<1x32x512xf32>,
    %c0_109 = arith.constant 0 : index
    %c128 = arith.constant 128 : index
    %c0_110 = arith.constant 0 : index
    %148 = vector.load %arg3[%c0_109, %c128, %c0_110] : memref<1x256x1xi32, #tpu.memory_space<vmem>>, vector<1x128x1xi32>
    %149 = vector.shape_cast %148 : vector<1x128x1xi32> to vector<128x1xi32>
    %c1_i32_111 = arith.constant 1 : i32
    %150 = arith.addi %122, %c1_i32_111 : i32
    %c512_i32_112 = arith.constant 512 : i32
    %151 = arith.muli %150, %c512_i32_112 : i32
    %152 = vector.broadcast %151 : i32 to vector<1x512xi32>
    %153 = arith.addi %121, %152 : vector<1x512xi32>
    %154 = vector.broadcast %149 : vector<128x1xi32> to vector<128x512xi32>
    %155 = vector.broadcast %153 : vector<1x512xi32> to vector<128x512xi32>
    %156 = arith.cmpi eq, %154, %155 : vector<128x512xi32>
    %157 = arith.extui %156 : vector<128x512xi1> to vector<128x512xi32>
    %158 = arith.sitofp %157 : vector<128x512xi32> to vector<128x512xf32>
    %159 = arith.truncf %158 : vector<128x512xf32> to vector<128x512xbf16>
    %160 = vector.extract_strided_slice %120 {offsets = [0, 128], sizes = [40, 128], strides = [1, 1]} : vector<40x256xf32> to vector<40x128xf32>
    %161 = arith.truncf %160 : vector<40x128xf32> to vector<40x128xbf16>
    %cst_113 = arith.constant dense<0.000000e+00> : vector<40x512xf32>
    %162 = tpu.matmul %161, %159, %cst_113 {dimension_numbers = #tpu.dot_dimension_numbers<[1], [0], [0], [1], [0, 0, 1, 1], [], []>} : vector<40x128xbf16>, vector<128x512xbf16>, vector<40x512xf32> -> vector<40x512xf32>
    %163 = vector.extract_strided_slice %162 {offsets = [32, 0], sizes = [1, 512], strides = [1, 1]} : vector<40x512xf32> to vector<1x512xf32>
    %cst_114 = arith.constant 1.000000e+00 : f32
    %164 = vector.broadcast %cst_114 : f32 to vector<1x512xf32>
    %165 = arith.maximumf %163, %164 : vector<1x512xf32>
    %166 = tpu.reciprocal %165 {approx = true} : vector<1x512xf32> -> vector<1x512xf32>
    %167 = vector.extract_strided_slice %162 {offsets = [0, 0], sizes = [32, 512], strides = [1, 1]} : vector<40x512xf32> to vector<32x512xf32>
    %168 = vector.broadcast %166 : vector<1x512xf32> to vector<32x512xf32>
    %169 = arith.mulf %167, %168 : vector<32x512xf32>
    %c1_115 = arith.constant 1 : index
    %c0_116 = arith.constant 0 : index
    %c0_117 = arith.constant 0 : index
    %170 = vector.load %arg12[%c1_115, %c0_116, %c0_117] : memref<2x32x512xf32, #tpu.memory_space<vmem>>, vector<1x32x512xf32>
    %171 = vector.shape_cast %170 : vector<1x32x512xf32> to vector<32x512xf32>
    %172 = vector.shape_cast %169 : vector<32x512xf32> to vector<1x32x512xf32>
    tpu.vector_store %arg12[%c1_115, %c0_116, %c0_117], %172 {strides = array<i32>} : memref<2x32x512xf32, #tpu.memory_space<vmem>>, vector<1x32x512xf32>,
    return
  }
  func.func @transform_0(%arg0: i32) -> (i32, i32, i32) {
    %c0_i32 = arith.constant 0 : i32
    %c0_i32_0 = arith.constant 0 : i32
    %c0_i32_1 = arith.constant 0 : i32
    return %arg0, %c0_i32, %c0_i32_0 : i32, i32, i32
  }
  func.func @transform_1(%arg0: i32) -> (i32, i32, i32) {
    %c0_i32 = arith.constant 0 : i32
    %c0_i32_0 = arith.constant 0 : i32
    %c0_i32_1 = arith.constant 0 : i32
    return %arg0, %c0_i32, %c0_i32_0 : i32, i32, i32
  }
  func.func @transform_2(%arg0: i32) -> (i32, i32, i32) {
    %c0_i32 = arith.constant 0 : i32
    %c0_i32_0 = arith.constant 0 : i32
    %c0_i32_1 = arith.constant 0 : i32
    return %arg0, %c0_i32, %c0_i32_0 : i32, i32, i32
  }
  func.func @transform_3(%arg0: i32) -> (i32, i32) {
    %c0_i32 = arith.constant 0 : i32
    %c0_i32_0 = arith.constant 0 : i32
    %c0_i32_1 = arith.constant 0 : i32
    return %c0_i32, %c0_i32_0 : i32, i32
  }
  func.func @transform_4(%arg0: i32) -> (i32, i32) {
    %c0_i32 = arith.constant 0 : i32
    %c0_i32_0 = arith.constant 0 : i32
    %c0_i32_1 = arith.constant 0 : i32
    return %c0_i32, %c0_i32_0 : i32, i32
  }
  func.func @transform_5(%arg0: i32) -> (i32, i32, i32) {
    %c0_i32 = arith.constant 0 : i32
    %c0_i32_0 = arith.constant 0 : i32
    %c0_i32_1 = arith.constant 0 : i32
    %c0_i32_2 = arith.constant 0 : i32
    return %c0_i32, %c0_i32_0, %c0_i32_1 : i32, i32, i32
  }
  func.func @transform_6(%arg0: i32) -> (i32, i32, i32) {
    %c0_i32 = arith.constant 0 : i32
    %c0_i32_0 = arith.constant 0 : i32
    %c0_i32_1 = arith.constant 0 : i32
    %c0_i32_2 = arith.constant 0 : i32
    return %c0_i32, %c0_i32_0, %c0_i32_1 : i32, i32, i32
  }
  func.func @transform_7(%arg0: i32) -> (i32, i32, i32) {
    %c0_i32 = arith.constant 0 : i32
    %c0_i32_0 = arith.constant 0 : i32
    %c0_i32_1 = arith.constant 0 : i32
    %c0_i32_2 = arith.constant 0 : i32
    return %c0_i32, %c0_i32_0, %c0_i32_1 : i32, i32, i32
  }
  func.func @transform_8(%arg0: i32) -> (i32, i32, i32) {
    %c0_i32 = arith.constant 0 : i32
    %c0_i32_0 = arith.constant 0 : i32
    %c0_i32_1 = arith.constant 0 : i32
    %c0_i32_2 = arith.constant 0 : i32
    return %c0_i32, %c0_i32_0, %c0_i32_1 : i32, i32, i32
  }
  func.func @transform_9(%arg0: i32) -> (i32, i32) {
    %c0_i32 = arith.constant 0 : i32
    %c0_i32_0 = arith.constant 0 : i32
    %c0_i32_1 = arith.constant 0 : i32
    return %c0_i32, %c0_i32_0 : i32, i32
  }
  func.func @transform_10(%arg0: i32) -> (i32, i32) {
    %c0_i32 = arith.constant 0 : i32
    %c0_i32_0 = arith.constant 0 : i32
    %c0_i32_1 = arith.constant 0 : i32
    return %c0_i32, %c0_i32_0 : i32, i32
  }
  func.func @transform_11(%arg0: i32) -> (i32, i32, i32) {
    %c0_i32 = arith.constant 0 : i32
    %c0_i32_0 = arith.constant 0 : i32
    %c0_i32_1 = arith.constant 0 : i32
    return %arg0, %c0_i32, %c0_i32_0 : i32, i32, i32
  }
}

</mosaic_0001>

<llo_original>
// kernel: tpu_custom_call.1
$region0: #{tpu_custom_call.1}
  #allocation0 [shape = 'u32[]', space=smem, size = 0x4, offset = 0x4, fixed_abs, tag = 'smem constant byte address 0x4 - core index']
  #allocation1 [shape = 'u32[72,128]{1,0:T(1,128)}', space=vmem, size = 0x9000, scoped, tag = 'internal scratch']
  #allocation2 [shape = 'bf16[128,256]{1,0:T(8,128)(2,1)}', space=vmem, size = 0x10000, scoped, tag = 'scratch operand']
  #allocation3 [shape = 'f32[32,256]{1,0:T(8,128)}', space=vmem, size = 0x8000, scoped, tag = 'scratch operand']
  %s0 = inlined_call_operand.vmem [shape: f32[1,8,256], index: 0, kind: input, shape index: {}]
  %s1 = inlined_call_operand.vmem [shape: s32[1,1,256], index: 1, kind: input, shape index: {}]
  %s2 = inlined_call_operand.vmem [shape: s32[1,256,1], index: 2, kind: input, shape index: {}]
  %s3 = inlined_call_operand.vmem [shape: bf16[64,8], index: 3, kind: input, shape index: {}]
  %s4 = inlined_call_operand.vmem [shape: f32[64,1], index: 4, kind: input, shape index: {}]
  %s5 = inlined_call_operand.vmem [shape: bf16[3,64,128], index: 5, kind: input, shape index: {}]
  %s6 = inlined_call_operand.vmem [shape: f32[3,64,1], index: 6, kind: input, shape index: {}]
  %s7 = inlined_call_operand.vmem [shape: bf16[3,32,32], index: 7, kind: input, shape index: {}]
  %s8 = inlined_call_operand.vmem [shape: f32[3,32,1], index: 8, kind: input, shape index: {}]
  %s9 = inlined_call_operand.vmem [shape: bf16[40,32], index: 9, kind: input, shape index: {}]
  %s10 = inlined_call_operand.vmem [shape: f32[40,1], index: 10, kind: input, shape index: {}]
  %s11 = inlined_call_operand.hbm [shape: f32[2,32,512], index: 11, kind: output, shape index: {}]
  %s12 = sld [smem:[#allocation0]]
  $region68: #{tpu_custom_call.1} parent=0
    _
  %s14 = ssub.s32 1, %s12
  %s15 = scalar_select 0, %s14, %s12
  $region1: #{tpu_custom_call.1} parent=0
    #allocation4 [shape = 'u8[131072]{0}', space=vmem, size = 0x20000, scoped, tag = 'output window, operand 0, single buffered']
    #allocation5 [shape = 's32[1]{0}', space=sflag, size = 0x4, scoped, tag = 'scoped memory for tpu_custom_call.1']
    %16 = vsyncpa [#allocation5], 0
    // Predicated region
    $region2: #{tpu_custom_call.1} parent=1 // pred_check
      _
    $region3: #{tpu_custom_call.1} parent=1 // pred_check_branch
      %18 = sbr.rel (0) target = $region5
    $region4: #{tpu_custom_call.1} parent=1 // pred_region
      _
    $region5: #{tpu_custom_call.1} parent=1 // pred_fallthru
      _
    // Predicated region
    $region6: #{tpu_custom_call.1} parent=1 // pred_check
      _
    $region7: #{tpu_custom_call.1} parent=1 // pred_check_branch
      %20 = sbr.rel (0) target = $region9
    $region8: #{tpu_custom_call.1} parent=1 // pred_region
      _
    $region9: #{tpu_custom_call.1} parent=1 // pred_fallthru
      _
    // Predicated region
    $region10: #{tpu_custom_call.1} parent=1 // pred_check
      _
    $region11: #{tpu_custom_call.1} parent=1 // pred_check_branch
      %22 = sbr.rel (0) target = $region13
    $region12: #{tpu_custom_call.1} parent=1 // pred_region
      _
    $region13: #{tpu_custom_call.1} parent=1 // pred_fallthru
      _
    // Predicated region
    $region14: #{tpu_custom_call.1} parent=1 // pred_check
      _
    $region15: #{tpu_custom_call.1} parent=1 // pred_check_branch
      %24 = sbr.rel (0) target = $region17
    $region16: #{tpu_custom_call.1} parent=1 // pred_region
      _
    $region17: #{tpu_custom_call.1} parent=1 // pred_fallthru
      _
    // Predicated region
    $region18: #{tpu_custom_call.1} parent=1 // pred_check
      _
    $region19: #{tpu_custom_call.1} parent=1 // pred_check_branch
      %26 = sbr.rel (0) target = $region21
    $region20: #{tpu_custom_call.1} parent=1 // pred_region
      _
    $region21: #{tpu_custom_call.1} parent=1 // pred_fallthru
      _
    // Predicated region
    $region22: #{tpu_custom_call.1} parent=1 // pred_check
      _
    $region23: #{tpu_custom_call.1} parent=1 // pred_check_branch
      %28 = sbr.rel (0) target = $region25
    $region24: #{tpu_custom_call.1} parent=1 // pred_region
      _
    $region25: #{tpu_custom_call.1} parent=1 // pred_fallthru
      _
    // Predicated region
    $region26: #{tpu_custom_call.1} parent=1 // pred_check
      _
    $region27: #{tpu_custom_call.1} parent=1 // pred_check_branch
      %30 = sbr.rel (0) target = $region29
    $region28: #{tpu_custom_call.1} parent=1 // pred_region
      _
    $region29: #{tpu_custom_call.1} parent=1 // pred_fallthru
      _
    // Predicated region
    $region30: #{tpu_custom_call.1} parent=1 // pred_check
      _
    $region31: #{tpu_custom_call.1} parent=1 // pred_check_branch
      %32 = sbr.rel (0) target = $region33
    $region32: #{tpu_custom_call.1} parent=1 // pred_region
      _
    $region33: #{tpu_custom_call.1} parent=1 // pred_fallthru
      _
    // Predicated region
    $region34: #{tpu_custom_call.1} parent=1 // pred_check
      _
    $region35: #{tpu_custom_call.1} parent=1 // pred_check_branch
      %34 = sbr.rel (0) target = $region37
    $region36: #{tpu_custom_call.1} parent=1 // pred_region
      _
    $region37: #{tpu_custom_call.1} parent=1 // pred_fallthru
      _
    // Predicated region
    $region38: #{tpu_custom_call.1} parent=1 // pred_check
      _
    $region39: #{tpu_custom_call.1} parent=1 // pred_check_branch
      %36 = sbr.rel (0) target = $region41
    $region40: #{tpu_custom_call.1} parent=1 // pred_region
      _
    $region41: #{tpu_custom_call.1} parent=1 // pred_fallthru
      _
    // Predicated region
    $region42: #{tpu_custom_call.1} parent=1 // pred_check
      _
    $region43: #{tpu_custom_call.1} parent=1 // pred_check_branch
      %38 = sbr.rel (0) target = $region45
    $region44: #{tpu_custom_call.1} parent=1 // pred_region
      _
    $region45: #{tpu_custom_call.1} parent=1 // pred_fallthru
      _
    %v40 = vld [vmem:[%s1] sm:$0x3]
    %v41 = vld [vmem:[%s3] sm:$0xf]
    %v42 = vld [vmem:[%s3 + $0x4] sm:$0xf]
    %v43 = vld [vmem:[%s3 + $0x8] sm:$0xf]
    %v44 = vld [vmem:[%s3 + $0xc] sm:$0xf]
    %v45 = vld [vmem:[%s3 + $0x10] sm:$0xf]
    %v46 = vld [vmem:[%s3 + $0x14] sm:$0xf]
    %v47 = vld [vmem:[%s3 + $0x18] sm:$0xf]
    %v48 = vld [vmem:[%s3 + $0x1c] sm:$0xf]
    %v49 = vld [vmem:[%s0] sm:$0xff]
    %v50 = vld [vmem:[%s0 + $0x8] sm:$0xff]
    %v51 = vpack.c.bf16 %v49, %v49
    %v52 = vpack.c.bf16 %v50, %v50
    %v53 = vld [vmem:[%s4] sm:$0xff]
    %v54 = vld [vmem:[%s4 + $0x8] sm:$0xff]
    %v55 = vld [vmem:[%s4 + $0x10] sm:$0xff]
    %v56 = vld [vmem:[%s4 + $0x18] sm:$0xff]
    %v57 = vld [vmem:[%s4 + $0x20] sm:$0xff]
    %v58 = vld [vmem:[%s4 + $0x28] sm:$0xff]
    %v59 = vld [vmem:[%s4 + $0x30] sm:$0xff]
    %v60 = vld [vmem:[%s4 + $0x38] sm:$0xff]
    %62 = vset.pattern.permute.xlu0 0
    %63 = vperm.xlu0 %62, %v53
    %v64 = vpop.permute.xlu0 %63
    %67 = vset.pattern.permute.xlu0 0
    %68 = vperm.xlu0 %67, %v54
    %v69 = vpop.permute.xlu0 %68
    %72 = vset.pattern.permute.xlu0 0
    %73 = vperm.xlu0 %72, %v55
    %v74 = vpop.permute.xlu0 %73
    %77 = vset.pattern.permute.xlu0 0
    %78 = vperm.xlu0 %77, %v56
    %v79 = vpop.permute.xlu0 %78
    %82 = vset.pattern.permute.xlu0 0
    %83 = vperm.xlu0 %82, %v57
    %v84 = vpop.permute.xlu0 %83
    %87 = vset.pattern.permute.xlu0 0
    %88 = vperm.xlu0 %87, %v58
    %v89 = vpop.permute.xlu0 %88
    %92 = vset.pattern.permute.xlu0 0
    %93 = vperm.xlu0 %92, %v59
    %v94 = vpop.permute.xlu0 %93
    %97 = vset.pattern.permute.xlu0 0
    %98 = vperm.xlu0 %97, %v60
    %v99 = vpop.permute.xlu0 %98
    %v109 = vunpack.c.l.b16 %v41
    %v110 = vunpack.c.l.b16 %v42
    %v111 = vunpack.c.l.b16 %v43
    %v112 = vunpack.c.l.b16 %v44
    %v113 = vunpack.c.l.b16 %v45
    %v114 = vunpack.c.l.b16 %v46
    %v115 = vunpack.c.l.b16 %v47
    %v116 = vunpack.c.l.b16 %v48
    %v117 = vpack.c.b16 %v110, %v109
    %v118 = vpack.c.b16 %v112, %v111
    %v119 = vpack.c.b16 %v114, %v113
    %v120 = vpack.c.b16 %v116, %v115
    %vm121 = vcmask 64512
    %v123 = vsel %vm121, %v117, 0
    %v126 = vsel %vm121, %v118, 0
    %v129 = vsel %vm121, %v119, 0
    %v132 = vsel %vm121, %v120, 0
    %vm134 = vcmask 1043456
    %v136 = vsel %vm134, %v51, 0
    %v139 = vsel %vm134, %v52, 0
    %141 = vmatpush.bf16.msra.mxu0 0
    %142 = vmatpush.bf16.msra.mxu0 0
    %143 = vmatpush.bf16.msra.mxu0 0
    %144 = vmatpush.bf16.msra.mxu0 0
    %145 = vmatpush.bf16.msra.mxu0 0
    %146 = vmatpush.bf16.msra.mxu0 0
    %147 = vmatpush.bf16.msra.mxu0 0
    %148 = vmatpush.bf16.msra.mxu0 %v136
    %149 = vmatmul.bf16.gmra.mxu0 %v123
    %v150 = vpop.f32.mrf.mxu0
    %v151 = vadd.f32 %v64, %v150
    %v152 = vpop.f32.mrf.mxu0
    %v153 = vadd.f32 %v69, %v152
    %154 = vmatmul.bf16.gmra.mxu0 %v126
    %v155 = vpop.f32.mrf.mxu0
    %v156 = vadd.f32 %v74, %v155
    %v157 = vpop.f32.mrf.mxu0
    %v158 = vadd.f32 %v79, %v157
    %159 = vmatmul.bf16.gmra.mxu0 %v129
    %v160 = vpop.f32.mrf.mxu0
    %v161 = vadd.f32 %v84, %v160
    %v162 = vpop.f32.mrf.mxu0
    %v163 = vadd.f32 %v89, %v162
    %164 = vmatmul.bf16.gmra.mxu0 %v132
    %v165 = vpop.f32.mrf.mxu0
    %v166 = vadd.f32 %v94, %v165
    %v167 = vpop.f32.mrf.mxu0
    %v168 = vadd.f32 %v99, %v167
    %169 = vdwg.mxu0
    %170 = vmatpush.bf16.msra.mxu0 0
    %171 = vmatpush.bf16.msra.mxu0 0
    %172 = vmatpush.bf16.msra.mxu0 0
    %173 = vmatpush.bf16.msra.mxu0 0
    %174 = vmatpush.bf16.msra.mxu0 0
    %175 = vmatpush.bf16.msra.mxu0 0
    %176 = vmatpush.bf16.msra.mxu0 0
    %177 = vmatpush.bf16.msra.mxu0 %v139
    %178 = vmatmul.bf16.gmra.mxu0 %v123
    %v179 = vpop.f32.mrf.mxu0
    %v180 = vadd.f32 %v64, %v179
    %v181 = vpop.f32.mrf.mxu0
    %v182 = vadd.f32 %v69, %v181
    %183 = vmatmul.bf16.gmra.mxu0 %v126
    %v184 = vpop.f32.mrf.mxu0
    %v185 = vadd.f32 %v74, %v184
    %v186 = vpop.f32.mrf.mxu0
    %v187 = vadd.f32 %v79, %v186
    %188 = vmatmul.bf16.gmra.mxu0 %v129
    %v189 = vpop.f32.mrf.mxu0
    %v190 = vadd.f32 %v84, %v189
    %v191 = vpop.f32.mrf.mxu0
    %v192 = vadd.f32 %v89, %v191
    %193 = vmatmul.bf16.gmra.mxu0 %v132
    %v194 = vpop.f32.mrf.mxu0
    %v195 = vadd.f32 %v94, %v194
    %v196 = vpop.f32.mrf.mxu0
    %v197 = vadd.f32 %v99, %v196
    %198 = vdwg.mxu0
    %v199 = vmax.f32 %v151, 0.0
    %v200 = vmax.f32 %v180, 0.0
    %v201 = vmax.f32 %v153, 0.0
    %v202 = vmax.f32 %v182, 0.0
    %v203 = vmax.f32 %v156, 0.0
    %v204 = vmax.f32 %v185, 0.0
    %v205 = vmax.f32 %v158, 0.0
    %v206 = vmax.f32 %v187, 0.0
    %v207 = vmax.f32 %v161, 0.0
    %v208 = vmax.f32 %v190, 0.0
    %v209 = vmax.f32 %v163, 0.0
    %v210 = vmax.f32 %v192, 0.0
    %v211 = vmax.f32 %v166, 0.0
    %v212 = vmax.f32 %v195, 0.0
    %v213 = vmax.f32 %v168, 0.0
    %v214 = vmax.f32 %v197, 0.0
    %v215 = vpack.c.bf16 %v200, %v199
    %v216 = vpack.c.bf16 %v202, %v201
    %v217 = vpack.c.bf16 %v204, %v203
    %v218 = vpack.c.bf16 %v206, %v205
    %v219 = vpack.c.bf16 %v208, %v207
    %v220 = vpack.c.bf16 %v210, %v209
    %v221 = vpack.c.bf16 %v212, %v211
    %v222 = vpack.c.bf16 %v214, %v213
    %223 = vst [vmem:[#allocation2] sm:$0xff] %v215
    %224 = vst [vmem:[#allocation2 + $0x8] sm:$0xff] %v216
    %225 = vst [vmem:[#allocation2 + $0x10] sm:$0xff] %v217
    %226 = vst [vmem:[#allocation2 + $0x18] sm:$0xff] %v218
    %227 = vst [vmem:[#allocation2 + $0x20] sm:$0xff] %v219
    %228 = vst [vmem:[#allocation2 + $0x28] sm:$0xff] %v220
    %229 = vst [vmem:[#allocation2 + $0x30] sm:$0xff] %v221
    %230 = vst [vmem:[#allocation2 + $0x38] sm:$0xff] %v222
    %v231 = vpack.c.bf16 %v180, %v151
    %v232 = vpack.c.bf16 %v182, %v153
    %v233 = vpack.c.bf16 %v185, %v156
    %v234 = vpack.c.bf16 %v187, %v158
    %v235 = vpack.c.bf16 %v190, %v161
    %v236 = vpack.c.bf16 %v192, %v163
    %v237 = vpack.c.bf16 %v195, %v166
    %v238 = vpack.c.bf16 %v197, %v168
    %239 = vst [vmem:[#allocation2 + $0x40] sm:$0xff] %v231
    %240 = vst [vmem:[#allocation2 + $0x48] sm:$0xff] %v232
    %241 = vst [vmem:[#allocation2 + $0x50] sm:$0xff] %v233
    %242 = vst [vmem:[#allocation2 + $0x58] sm:$0xff] %v234
    %243 = vst [vmem:[#allocation2 + $0x60] sm:$0xff] %v235
    %244 = vst [vmem:[#allocation2 + $0x68] sm:$0xff] %v236
    %245 = vst [vmem:[#allocation2 + $0x70] sm:$0xff] %v237
    %246 = vst [vmem:[#allocation2 + $0x78] sm:$0xff] %v238
    %v247 = vld [vmem:[%s5] sm:$0xf]
    %v248 = vld [vmem:[%s5 + $0x4] sm:$0xf]
    %v249 = vld [vmem:[%s5 + $0x8] sm:$0xf]
    %v250 = vld [vmem:[%s5 + $0xc] sm:$0xf]
    %v251 = vld [vmem:[%s5 + $0x10] sm:$0xf]
    %v252 = vld [vmem:[%s5 + $0x14] sm:$0xf]
    %v253 = vld [vmem:[%s5 + $0x18] sm:$0xf]
    %v254 = vld [vmem:[%s5 + $0x1c] sm:$0xf]
    %v255 = vld [vmem:[#allocation2] sm:$0xff]
    %v256 = vld [vmem:[#allocation2 + $0x8] sm:$0xff]
    %v257 = vld [vmem:[#allocation2 + $0x10] sm:$0xff]
    %v258 = vld [vmem:[#allocation2 + $0x18] sm:$0xff]
    %v259 = vld [vmem:[#allocation2 + $0x20] sm:$0xff]
    %v260 = vld [vmem:[#allocation2 + $0x28] sm:$0xff]
    %v261 = vld [vmem:[#allocation2 + $0x30] sm:$0xff]
    %v262 = vld [vmem:[#allocation2 + $0x38] sm:$0xff]
    %v263 = vld [vmem:[#allocation2 + $0x40] sm:$0xff]
    %v264 = vld [vmem:[#allocation2 + $0x48] sm:$0xff]
    %v265 = vld [vmem:[#allocation2 + $0x50] sm:$0xff]
    %v266 = vld [vmem:[#allocation2 + $0x58] sm:$0xff]
    %v267 = vld [vmem:[#allocation2 + $0x60] sm:$0xff]
    %v268 = vld [vmem:[#allocation2 + $0x68] sm:$0xff]
    %v269 = vld [vmem:[#allocation2 + $0x70] sm:$0xff]
    %v270 = vld [vmem:[#allocation2 + $0x78] sm:$0xff]
    %v271 = vld [vmem:[%s6] sm:$0xff]
    %v272 = vld [vmem:[%s6 + $0x8] sm:$0xff]
    %v273 = vld [vmem:[%s6 + $0x10] sm:$0xff]
    %v274 = vld [vmem:[%s6 + $0x18] sm:$0xff]
    %v275 = vld [vmem:[%s6 + $0x20] sm:$0xff]
    %v276 = vld [vmem:[%s6 + $0x28] sm:$0xff]
    %v277 = vld [vmem:[%s6 + $0x30] sm:$0xff]
    %v278 = vld [vmem:[%s6 + $0x38] sm:$0xff]
    %280 = vset.pattern.permute.xlu0 0
    %281 = vperm.xlu0 %280, %v271
    %v282 = vpop.permute.xlu0 %281
    %285 = vset.pattern.permute.xlu0 0
    %286 = vperm.xlu0 %285, %v272
    %v287 = vpop.permute.xlu0 %286
    %290 = vset.pattern.permute.xlu0 0
    %291 = vperm.xlu0 %290, %v273
    %v292 = vpop.permute.xlu0 %291
    %295 = vset.pattern.permute.xlu0 0
    %296 = vperm.xlu0 %295, %v274
    %v297 = vpop.permute.xlu0 %296
    %300 = vset.pattern.permute.xlu0 0
    %301 = vperm.xlu0 %300, %v275
    %v302 = vpop.permute.xlu0 %301
    %305 = vset.pattern.permute.xlu0 0
    %306 = vperm.xlu0 %305, %v276
    %v307 = vpop.permute.xlu0 %306
    %310 = vset.pattern.permute.xlu0 0
    %311 = vperm.xlu0 %310, %v277
    %v312 = vpop.permute.xlu0 %311
    %315 = vset.pattern.permute.xlu0 0
    %316 = vperm.xlu0 %315, %v278
    %v317 = vpop.permute.xlu0 %316
    %v327 = vunpack.c.l.b16 %v247
    %v328 = vunpack.c.l.b16 %v248
    %v329 = vunpack.c.l.b16 %v249
    %v330 = vunpack.c.l.b16 %v250
    %v331 = vunpack.c.l.b16 %v251
    %v332 = vunpack.c.l.b16 %v252
    %v333 = vunpack.c.l.b16 %v253
    %v334 = vunpack.c.l.b16 %v254
    %v335 = vpack.c.b16 %v328, %v327
    %v336 = vpack.c.b16 %v330, %v329
    %v337 = vpack.c.b16 %v332, %v331
    %v338 = vpack.c.b16 %v334, %v333
    %v359 = vunpack.c.l.b16 %v255
    %v360 = vunpack.c.h.b16 %v255
    %v361 = vunpack.c.l.b16 %v256
    %v362 = vunpack.c.h.b16 %v256
    %v363 = vunpack.c.l.b16 %v257
    %v364 = vunpack.c.h.b16 %v257
    %v365 = vunpack.c.l.b16 %v258
    %v366 = vunpack.c.h.b16 %v258
    %v367 = vunpack.c.l.b16 %v259
    %v368 = vunpack.c.h.b16 %v259
    %v369 = vunpack.c.l.b16 %v260
    %v370 = vunpack.c.h.b16 %v260
    %v371 = vunpack.c.l.b16 %v261
    %v372 = vunpack.c.h.b16 %v261
    %v373 = vunpack.c.l.b16 %v262
    %v374 = vunpack.c.h.b16 %v262
    %v375 = vunpack.c.l.b16 %v263
    %v376 = vunpack.c.h.b16 %v263
    %v377 = vunpack.c.l.b16 %v264
    %v378 = vunpack.c.h.b16 %v264
    %v379 = vunpack.c.l.b16 %v265
    %v380 = vunpack.c.h.b16 %v265
    %v381 = vunpack.c.l.b16 %v266
    %v382 = vunpack.c.h.b16 %v266
    %v383 = vunpack.c.l.b16 %v267
    %v384 = vunpack.c.h.b16 %v267
    %v385 = vunpack.c.l.b16 %v268
    %v386 = vunpack.c.h.b16 %v268
    %v387 = vunpack.c.l.b16 %v269
    %v388 = vunpack.c.h.b16 %v269
    %v389 = vunpack.c.l.b16 %v270
    %v390 = vunpack.c.h.b16 %v270
    %v391 = vpack.c.b16 %v361, %v359
    %v392 = vpack.c.b16 %v362, %v360
    %v393 = vpack.c.b16 %v365, %v363
    %v394 = vpack.c.b16 %v366, %v364
    %v395 = vpack.c.b16 %v369, %v367
    %v396 = vpack.c.b16 %v370, %v368
    %v397 = vpack.c.b16 %v373, %v371
    %v398 = vpack.c.b16 %v374, %v372
    %v399 = vpack.c.b16 %v377, %v375
    %v400 = vpack.c.b16 %v378, %v376
    %v401 = vpack.c.b16 %v381, %v379
    %v402 = vpack.c.b16 %v382, %v380
    %v403 = vpack.c.b16 %v385, %v383
    %v404 = vpack.c.b16 %v386, %v384
    %v405 = vpack.c.b16 %v389, %v387
    %v406 = vpack.c.b16 %v390, %v388
    %423 = vmatpush.bf16.msra.mxu0 %v405
    %424 = vmatpush.bf16.msra.mxu0 %v403
    %425 = vmatpush.bf16.msra.mxu0 %v401
    %426 = vmatpush.bf16.msra.mxu0 %v399
    %427 = vmatpush.bf16.msra.mxu0 %v397
    %428 = vmatpush.bf16.msra.mxu0 %v395
    %429 = vmatpush.bf16.msra.mxu0 %v393
    %430 = vmatpush.bf16.msra.mxu0 %v391
    %431 = vmatmul.bf16.gmra.mxu0 %v335
    %v432 = vpop.f32.mrf.mxu0
    %v433 = vadd.f32 %v282, %v432
    %v434 = vpop.f32.mrf.mxu0
    %v435 = vadd.f32 %v287, %v434
    %436 = vmatmul.bf16.gmra.mxu0 %v336
    %v437 = vpop.f32.mrf.mxu0
    %v438 = vadd.f32 %v292, %v437
    %v439 = vpop.f32.mrf.mxu0
    %v440 = vadd.f32 %v297, %v439
    %441 = vmatmul.bf16.gmra.mxu0 %v337
    %v442 = vpop.f32.mrf.mxu0
    %v443 = vadd.f32 %v302, %v442
    %v444 = vpop.f32.mrf.mxu0
    %v445 = vadd.f32 %v307, %v444
    %446 = vmatmul.bf16.gmra.mxu0 %v338
    %v447 = vpop.f32.mrf.mxu0
    %v448 = vadd.f32 %v312, %v447
    %v449 = vpop.f32.mrf.mxu0
    %v450 = vadd.f32 %v317, %v449
    %451 = vdwg.mxu0
    %452 = vmatpush.bf16.msra.mxu0 %v406
    %453 = vmatpush.bf16.msra.mxu0 %v404
    %454 = vmatpush.bf16.msra.mxu0 %v402
    %455 = vmatpush.bf16.msra.mxu0 %v400
    %456 = vmatpush.bf16.msra.mxu0 %v398
    %457 = vmatpush.bf16.msra.mxu0 %v396
    %458 = vmatpush.bf16.msra.mxu0 %v394
    %459 = vmatpush.bf16.msra.mxu0 %v392
    %460 = vmatmul.bf16.gmra.mxu0 %v335
    %v461 = vpop.f32.mrf.mxu0
    %v462 = vadd.f32 %v282, %v461
    %v463 = vpop.f32.mrf.mxu0
    %v464 = vadd.f32 %v287, %v463
    %465 = vmatmul.bf16.gmra.mxu0 %v336
    %v466 = vpop.f32.mrf.mxu0
    %v467 = vadd.f32 %v292, %v466
    %v468 = vpop.f32.mrf.mxu0
    %v469 = vadd.f32 %v297, %v468
    %470 = vmatmul.bf16.gmra.mxu0 %v337
    %v471 = vpop.f32.mrf.mxu0
    %v472 = vadd.f32 %v302, %v471
    %v473 = vpop.f32.mrf.mxu0
    %v474 = vadd.f32 %v307, %v473
    %475 = vmatmul.bf16.gmra.mxu0 %v338
    %v476 = vpop.f32.mrf.mxu0
    %v477 = vadd.f32 %v312, %v476
    %v478 = vpop.f32.mrf.mxu0
    %v479 = vadd.f32 %v317, %v478
    %480 = vdwg.mxu0
    %v481 = vld [vmem:[%s7] sm:$0xf]
    %v482 = vld [vmem:[%s7 + $0x4] sm:$0xf]
    %v483 = vld [vmem:[%s7 + $0x8] sm:$0xf]
    %v484 = vld [vmem:[%s7 + $0xc] sm:$0xf]
    %v485 = vmax.f32 %v433, 0.0
    %v486 = vmax.f32 %v462, 0.0
    %v487 = vmax.f32 %v435, 0.0
    %v488 = vmax.f32 %v464, 0.0
    %v489 = vmax.f32 %v438, 0.0
    %v490 = vmax.f32 %v467, 0.0
    %v491 = vmax.f32 %v440, 0.0
    %v492 = vmax.f32 %v469, 0.0
    %v493 = vpack.c.bf16 %v487, %v485
    %v494 = vpack.c.bf16 %v488, %v486
    %v495 = vpack.c.bf16 %v491, %v489
    %v496 = vpack.c.bf16 %v492, %v490
    %v497 = vld [vmem:[%s8] sm:$0xff]
    %v498 = vld [vmem:[%s8 + $0x8] sm:$0xff]
    %v499 = vld [vmem:[%s8 + $0x10] sm:$0xff]
    %v500 = vld [vmem:[%s8 + $0x18] sm:$0xff]
    %502 = vset.pattern.permute.xlu0 0
    %503 = vperm.xlu0 %502, %v497
    %v504 = vpop.permute.xlu0 %503
    %507 = vset.pattern.permute.xlu0 0
    %508 = vperm.xlu0 %507, %v498
    %v509 = vpop.permute.xlu0 %508
    %512 = vset.pattern.permute.xlu0 0
    %513 = vperm.xlu0 %512, %v499
    %v514 = vpop.permute.xlu0 %513
    %517 = vset.pattern.permute.xlu0 0
    %518 = vperm.xlu0 %517, %v500
    %v519 = vpop.permute.xlu0 %518
    %v525 = vunpack.c.l.b16 %v481
    %v526 = vunpack.c.l.b16 %v482
    %v527 = vunpack.c.l.b16 %v483
    %v528 = vunpack.c.l.b16 %v484
    %v529 = vpack.c.b16 %v526, %v525
    %v530 = vpack.c.b16 %v528, %v527
    %vm531 = vcmask 261120
    %v533 = vsel %vm531, %v529, 0
    %v536 = vsel %vm531, %v530, 0
    %538 = vmatpush.bf16.msra.mxu0 0
    %539 = vmatpush.bf16.msra.mxu0 0
    %540 = vmatpush.bf16.msra.mxu0 0
    %541 = vmatpush.bf16.msra.mxu0 0
    %542 = vmatpush.bf16.msra.mxu0 0
    %543 = vmatpush.bf16.msra.mxu0 0
    %544 = vmatpush.bf16.msra.mxu0 %v495
    %545 = vmatpush.bf16.msra.mxu0 %v493
    %546 = vmatmul.bf16.gmra.mxu0 %v533
    %v547 = vpop.f32.mrf.mxu0
    %v548 = vadd.f32 %v504, %v547
    %v549 = vpop.f32.mrf.mxu0
    %v550 = vadd.f32 %v509, %v549
    %551 = vmatmul.bf16.gmra.mxu0 %v536
    %v552 = vpop.f32.mrf.mxu0
    %v553 = vadd.f32 %v514, %v552
    %v554 = vpop.f32.mrf.mxu0
    %v555 = vadd.f32 %v519, %v554
    %556 = vdwg.mxu0
    %557 = vmatpush.bf16.msra.mxu0 0
    %558 = vmatpush.bf16.msra.mxu0 0
    %559 = vmatpush.bf16.msra.mxu0 0
    %560 = vmatpush.bf16.msra.mxu0 0
    %561 = vmatpush.bf16.msra.mxu0 0
    %562 = vmatpush.bf16.msra.mxu0 0
    %563 = vmatpush.bf16.msra.mxu0 %v496
    %564 = vmatpush.bf16.msra.mxu0 %v494
    %565 = vmatmul.bf16.gmra.mxu0 %v533
    %v566 = vpop.f32.mrf.mxu0
    %v567 = vadd.f32 %v504, %v566
    %v568 = vpop.f32.mrf.mxu0
    %v569 = vadd.f32 %v509, %v568
    %570 = vmatmul.bf16.gmra.mxu0 %v536
    %v571 = vpop.f32.mrf.mxu0
    %v572 = vadd.f32 %v514, %v571
    %v573 = vpop.f32.mrf.mxu0
    %v574 = vadd.f32 %v519, %v573
    %575 = vdwg.mxu0
    %v576 = vadd.f32 %v443, %v548
    %v577 = vadd.f32 %v472, %v567
    %v578 = vadd.f32 %v445, %v550
    %v579 = vadd.f32 %v474, %v569
    %v580 = vadd.f32 %v448, %v553
    %v581 = vadd.f32 %v477, %v572
    %v582 = vadd.f32 %v450, %v555
    %v583 = vadd.f32 %v479, %v574
    %584 = vst [vmem:[#allocation3] sm:$0xff] 0.0
    %585 = vst [vmem:[#allocation3 + $0x8] sm:$0xff] 0.0
    %586 = vst [vmem:[#allocation3 + $0x10] sm:$0xff] 0.0
    %587 = vst [vmem:[#allocation3 + $0x18] sm:$0xff] 0.0
    %588 = vst [vmem:[#allocation3 + $0x20] sm:$0xff] 0.0
    %589 = vst [vmem:[#allocation3 + $0x28] sm:$0xff] 0.0
    %590 = vst [vmem:[#allocation3 + $0x30] sm:$0xff] 0.0
    %591 = vst [vmem:[#allocation3 + $0x38] sm:$0xff] 0.0
    %v592 = vlaneseq
    %v593 = vand.u32 %v592, 127
    %v594 = vadd.s32 %v593, 128
    %v595 = vlaneseq
    %v596 = vshrl.u32 %v595, 7
    loop: start=0, step=1, limit=32
    $region46: #{tpu_custom_call.1} parent=1 // loop_pre_header
      _
    $region47: #{tpu_custom_call.1} parent=1 // loop_header
      %s598 = sphi 0, %s602
      %p599 = scmp.ge.s32.totalorder %s598, 32
    $region48: #{tpu_custom_call.1} parent=1 // loop_header_branch
      %601 = sbr.rel (%p599) target = $region52
    $region49: #{tpu_custom_call.1} parent=1 // loop_body
      %s603 = smul.u32 %s598, 8
      %s604 = scalar_lea.vmem %s2, %s603
      %v605 = vld [vmem:[%s604] sm:$0xff]
      %606 = vset.pattern.permute.xlu0 0
      %607 = vperm.xlu0 %606, %v605
      %v608 = vpop.permute.xlu0 %607
      %v609 = vperm.slane %v40, 0
      %v610 = vperm.slane %v40, 1
      %vm611 = vcmp.eq.s32.totalorder %v608, %v609
      %vm612 = vcmp.eq.s32.totalorder %v608, %v610
      %v621 = vrot.slane %v577, 7
      %v622 = vrot.slane %v579, 7
      %v623 = vrot.slane %v581, 7
      %v624 = vrot.slane %v583, 7
      %vm625 = vcmask 1040384
      %v626 = vsel %vm625, %v576, %v621
      %vm627 = vcmask 1041409
      %v628 = vsel %vm627, %v576, %v621
      %v629 = vrot.slane %v628, 1
      %vm630 = vcmask 1042434
      %v631 = vsel %vm630, %v576, %v621
      %v632 = vrot.slane %v631, 2
      %vm633 = vcmask 1043459
      %v634 = vsel %vm633, %v576, %v621
      %v635 = vrot.slane %v634, 3
      %vm636 = vcmask 1044484
      %v637 = vsel %vm636, %v576, %v621
      %v638 = vrot.slane %v637, 4
      %vm639 = vcmask 1045509
      %v640 = vsel %vm639, %v576, %v621
      %v641 = vrot.slane %v640, 5
      %vm642 = vcmask 1046534
      %v643 = vsel %vm642, %v576, %v621
      %v644 = vrot.slane %v643, 6
      %vm645 = vcmask 1046528
      %v646 = vsel %vm645, %v621, %v576
      %v647 = vrot.slane %v646, 7
      %v648 = vsel %vm625, %v578, %v622
      %v649 = vsel %vm627, %v578, %v622
      %v650 = vrot.slane %v649, 1
      %v651 = vsel %vm630, %v578, %v622
      %v652 = vrot.slane %v651, 2
      %v653 = vsel %vm633, %v578, %v622
      %v654 = vrot.slane %v653, 3
      %v655 = vsel %vm636, %v578, %v622
      %v656 = vrot.slane %v655, 4
      %v657 = vsel %vm639, %v578, %v622
      %v658 = vrot.slane %v657, 5
      %v659 = vsel %vm642, %v578, %v622
      %v660 = vrot.slane %v659, 6
      %v661 = vsel %vm645, %v622, %v578
      %v662 = vrot.slane %v661, 7
      %v663 = vsel %vm625, %v580, %v623
      %v664 = vsel %vm627, %v580, %v623
      %v665 = vrot.slane %v664, 1
      %v666 = vsel %vm630, %v580, %v623
      %v667 = vrot.slane %v666, 2
      %v668 = vsel %vm633, %v580, %v623
      %v669 = vrot.slane %v668, 3
      %v670 = vsel %vm636, %v580, %v623
      %v671 = vrot.slane %v670, 4
      %v672 = vsel %vm639, %v580, %v623
      %v673 = vrot.slane %v672, 5
      %v674 = vsel %vm642, %v580, %v623
      %v675 = vrot.slane %v674, 6
      %v676 = vsel %vm645, %v623, %v580
      %v677 = vrot.slane %v676, 7
      %v678 = vsel %vm625, %v582, %v624
      %v679 = vsel %vm627, %v582, %v624
      %v680 = vrot.slane %v679, 1
      %v681 = vsel %vm630, %v582, %v624
      %v682 = vrot.slane %v681, 2
      %v683 = vsel %vm633, %v582, %v624
      %v684 = vrot.slane %v683, 3
      %v685 = vsel %vm636, %v582, %v624
      %v686 = vrot.slane %v685, 4
      %v687 = vsel %vm639, %v582, %v624
      %v688 = vrot.slane %v687, 5
      %v689 = vsel %vm642, %v582, %v624
      %v690 = vrot.slane %v689, 6
      %v691 = vsel %vm645, %v624, %v582
      %v692 = vrot.slane %v691, 7
      %v693 = vsel %vm611, 1, 0
      %v694 = vsel %vm612, 1, 0
      %vm695 = vcmp.eq.s32.totalorder %v693, 1
      %vm696 = vcmp.eq.s32.totalorder %v694, 1
      %v697 = vperm.slane %v626, 0
      %v698 = vperm.slane %v626, 1
      %v699 = vperm.slane %v629, 0
      %v700 = vperm.slane %v629, 1
      %v701 = vperm.slane %v632, 0
      %v702 = vperm.slane %v632, 1
      %v703 = vperm.slane %v635, 0
      %v704 = vperm.slane %v635, 1
      %v705 = vperm.slane %v638, 0
      %v706 = vperm.slane %v638, 1
      %v707 = vperm.slane %v641, 0
      %v708 = vperm.slane %v641, 1
      %v709 = vperm.slane %v644, 0
      %v710 = vperm.slane %v644, 1
      %v711 = vperm.slane %v647, 0
      %v712 = vperm.slane %v647, 1
      %v713 = vperm.slane %v648, 0
      %v714 = vperm.slane %v648, 1
      %v715 = vperm.slane %v650, 0
      %v716 = vperm.slane %v650, 1
      %v717 = vperm.slane %v652, 0
      %v718 = vperm.slane %v652, 1
      %v719 = vperm.slane %v654, 0
      %v720 = vperm.slane %v654, 1
      %v721 = vperm.slane %v656, 0
      %v722 = vperm.slane %v656, 1
      %v723 = vperm.slane %v658, 0
      %v724 = vperm.slane %v658, 1
      %v725 = vperm.slane %v660, 0
      %v726 = vperm.slane %v660, 1
      %v727 = vperm.slane %v662, 0
      %v728 = vperm.slane %v662, 1
      %v729 = vperm.slane %v663, 0
      %v730 = vperm.slane %v663, 1
      %v731 = vperm.slane %v665, 0
      %v732 = vperm.slane %v665, 1
      %v733 = vperm.slane %v667, 0
      %v734 = vperm.slane %v667, 1
      %v735 = vperm.slane %v669, 0
      %v736 = vperm.slane %v669, 1
      %v737 = vperm.slane %v671, 0
      %v738 = vperm.slane %v671, 1
      %v739 = vperm.slane %v673, 0
      %v740 = vperm.slane %v673, 1
      %v741 = vperm.slane %v675, 0
      %v742 = vperm.slane %v675, 1
      %v743 = vperm.slane %v677, 0
      %v744 = vperm.slane %v677, 1
      %v745 = vperm.slane %v678, 0
      %v746 = vperm.slane %v678, 1
      %v747 = vperm.slane %v680, 0
      %v748 = vperm.slane %v680, 1
      %v749 = vperm.slane %v682, 0
      %v750 = vperm.slane %v682, 1
      %v751 = vperm.slane %v684, 0
      %v752 = vperm.slane %v684, 1
      %v753 = vperm.slane %v686, 0
      %v754 = vperm.slane %v686, 1
      %v755 = vperm.slane %v688, 0
      %v756 = vperm.slane %v688, 1
      %v757 = vperm.slane %v690, 0
      %v758 = vperm.slane %v690, 1
      %v759 = vperm.slane %v692, 0
      %v760 = vperm.slane %v692, 1
      %v825 = vsel %vm695, %v697, -1e+30
      %v826 = vsel %vm696, %v698, -1e+30
      %v827 = vsel %vm695, %v699, -1e+30
      %v828 = vsel %vm696, %v700, -1e+30
      %v829 = vsel %vm695, %v701, -1e+30
      %v830 = vsel %vm696, %v702, -1e+30
      %v831 = vsel %vm695, %v703, -1e+30
      %v832 = vsel %vm696, %v704, -1e+30
      %v833 = vsel %vm695, %v705, -1e+30
      %v834 = vsel %vm696, %v706, -1e+30
      %v835 = vsel %vm695, %v707, -1e+30
      %v836 = vsel %vm696, %v708, -1e+30
      %v837 = vsel %vm695, %v709, -1e+30
      %v838 = vsel %vm696, %v710, -1e+30
      %v839 = vsel %vm695, %v711, -1e+30
      %v840 = vsel %vm696, %v712, -1e+30
      %v841 = vsel %vm695, %v713, -1e+30
      %v842 = vsel %vm696, %v714, -1e+30
      %v843 = vsel %vm695, %v715, -1e+30
      %v844 = vsel %vm696, %v716, -1e+30
      %v845 = vsel %vm695, %v717, -1e+30
      %v846 = vsel %vm696, %v718, -1e+30
      %v847 = vsel %vm695, %v719, -1e+30
      %v848 = vsel %vm696, %v720, -1e+30
      %v849 = vsel %vm695, %v721, -1e+30
      %v850 = vsel %vm696, %v722, -1e+30
      %v851 = vsel %vm695, %v723, -1e+30
      %v852 = vsel %vm696, %v724, -1e+30
      %v853 = vsel %vm695, %v725, -1e+30
      %v854 = vsel %vm696, %v726, -1e+30
      %v855 = vsel %vm695, %v727, -1e+30
      %v856 = vsel %vm696, %v728, -1e+30
      %v857 = vsel %vm695, %v729, -1e+30
      %v858 = vsel %vm696, %v730, -1e+30
      %v859 = vsel %vm695, %v731, -1e+30
      %v860 = vsel %vm696, %v732, -1e+30
      %v861 = vsel %vm695, %v733, -1e+30
      %v862 = vsel %vm696, %v734, -1e+30
      %v863 = vsel %vm695, %v735, -1e+30
      %v864 = vsel %vm696, %v736, -1e+30
      %v865 = vsel %vm695, %v737, -1e+30
      %v866 = vsel %vm696, %v738, -1e+30
      %v867 = vsel %vm695, %v739, -1e+30
      %v868 = vsel %vm696, %v740, -1e+30
      %v869 = vsel %vm695, %v741, -1e+30
      %v870 = vsel %vm696, %v742, -1e+30
      %v871 = vsel %vm695, %v743, -1e+30
      %v872 = vsel %vm696, %v744, -1e+30
      %v873 = vsel %vm695, %v745, -1e+30
      %v874 = vsel %vm696, %v746, -1e+30
      %v875 = vsel %vm695, %v747, -1e+30
      %v876 = vsel %vm696, %v748, -1e+30
      %v877 = vsel %vm695, %v749, -1e+30
      %v878 = vsel %vm696, %v750, -1e+30
      %v879 = vsel %vm695, %v751, -1e+30
      %v880 = vsel %vm696, %v752, -1e+30
      %v881 = vsel %vm695, %v753, -1e+30
      %v882 = vsel %vm696, %v754, -1e+30
      %v883 = vsel %vm695, %v755, -1e+30
      %v884 = vsel %vm696, %v756, -1e+30
      %v885 = vsel %vm695, %v757, -1e+30
      %v886 = vsel %vm696, %v758, -1e+30
      %v887 = vsel %vm695, %v759, -1e+30
      %v888 = vsel %vm696, %v760, -1e+30
      %v889 = vmax.f32 %v825, %v826
      %890 = vmax.xlane.f32.xlu0 %v889
      %v891 = vpop.xlane.xlu0 %890
      %v892 = vmax.f32 %v827, %v828
      %893 = vmax.xlane.f32.xlu0 %v892
      %v894 = vpop.xlane.xlu0 %893
      %v895 = vmax.f32 %v829, %v830
      %896 = vmax.xlane.f32.xlu0 %v895
      %v897 = vpop.xlane.xlu0 %896
      %v898 = vmax.f32 %v831, %v832
      %899 = vmax.xlane.f32.xlu0 %v898
      %v900 = vpop.xlane.xlu0 %899
      %v901 = vmax.f32 %v833, %v834
      %902 = vmax.xlane.f32.xlu0 %v901
      %v903 = vpop.xlane.xlu0 %902
      %v904 = vmax.f32 %v835, %v836
      %905 = vmax.xlane.f32.xlu0 %v904
      %v906 = vpop.xlane.xlu0 %905
      %v907 = vmax.f32 %v837, %v838
      %908 = vmax.xlane.f32.xlu0 %v907
      %v909 = vpop.xlane.xlu0 %908
      %v910 = vmax.f32 %v839, %v840
      %911 = vmax.xlane.f32.xlu0 %v910
      %v912 = vpop.xlane.xlu0 %911
      %v913 = vmax.f32 %v841, %v842
      %914 = vmax.xlane.f32.xlu0 %v913
      %v915 = vpop.xlane.xlu0 %914
      %v916 = vmax.f32 %v843, %v844
      %917 = vmax.xlane.f32.xlu0 %v916
      %v918 = vpop.xlane.xlu0 %917
      %v919 = vmax.f32 %v845, %v846
      %920 = vmax.xlane.f32.xlu0 %v919
      %v921 = vpop.xlane.xlu0 %920
      %v922 = vmax.f32 %v847, %v848
      %923 = vmax.xlane.f32.xlu0 %v922
      %v924 = vpop.xlane.xlu0 %923
      %v925 = vmax.f32 %v849, %v850
      %926 = vmax.xlane.f32.xlu0 %v925
      %v927 = vpop.xlane.xlu0 %926
      %v928 = vmax.f32 %v851, %v852
      %929 = vmax.xlane.f32.xlu0 %v928
      %v930 = vpop.xlane.xlu0 %929
      %v931 = vmax.f32 %v853, %v854
      %932 = vmax.xlane.f32.xlu0 %v931
      %v933 = vpop.xlane.xlu0 %932
      %v934 = vmax.f32 %v855, %v856
      %935 = vmax.xlane.f32.xlu0 %v934
      %v936 = vpop.xlane.xlu0 %935
      %v937 = vmax.f32 %v857, %v858
      %938 = vmax.xlane.f32.xlu0 %v937
      %v939 = vpop.xlane.xlu0 %938
      %v940 = vmax.f32 %v859, %v860
      %941 = vmax.xlane.f32.xlu0 %v940
      %v942 = vpop.xlane.xlu0 %941
      %v943 = vmax.f32 %v861, %v862
      %944 = vmax.xlane.f32.xlu0 %v943
      %v945 = vpop.xlane.xlu0 %944
      %v946 = vmax.f32 %v863, %v864
      %947 = vmax.xlane.f32.xlu0 %v946
      %v948 = vpop.xlane.xlu0 %947
      %v949 = vmax.f32 %v865, %v866
      %950 = vmax.xlane.f32.xlu0 %v949
      %v951 = vpop.xlane.xlu0 %950
      %v952 = vmax.f32 %v867, %v868
      %953 = vmax.xlane.f32.xlu0 %v952
      %v954 = vpop.xlane.xlu0 %953
      %v955 = vmax.f32 %v869, %v870
      %956 = vmax.xlane.f32.xlu0 %v955
      %v957 = vpop.xlane.xlu0 %956
      %v958 = vmax.f32 %v871, %v872
      %959 = vmax.xlane.f32.xlu0 %v958
      %v960 = vpop.xlane.xlu0 %959
      %v961 = vmax.f32 %v873, %v874
      %962 = vmax.xlane.f32.xlu0 %v961
      %v963 = vpop.xlane.xlu0 %962
      %v964 = vmax.f32 %v875, %v876
      %965 = vmax.xlane.f32.xlu0 %v964
      %v966 = vpop.xlane.xlu0 %965
      %v967 = vmax.f32 %v877, %v878
      %968 = vmax.xlane.f32.xlu0 %v967
      %v969 = vpop.xlane.xlu0 %968
      %v970 = vmax.f32 %v879, %v880
      %971 = vmax.xlane.f32.xlu0 %v970
      %v972 = vpop.xlane.xlu0 %971
      %v973 = vmax.f32 %v881, %v882
      %974 = vmax.xlane.f32.xlu0 %v973
      %v975 = vpop.xlane.xlu0 %974
      %v976 = vmax.f32 %v883, %v884
      %977 = vmax.xlane.f32.xlu0 %v976
      %v978 = vpop.xlane.xlu0 %977
      %v979 = vmax.f32 %v885, %v886
      %980 = vmax.xlane.f32.xlu0 %v979
      %v981 = vpop.xlane.xlu0 %980
      %v982 = vmax.f32 %v887, %v888
      %983 = vmax.xlane.f32.xlu0 %v982
      %v984 = vpop.xlane.xlu0 %983
      %v985 = vstv %s603
      %v986 = vadd.s32 %v596, %v985
      %vm987 = vcmp.eq.s32.totalorder %v986, %v593
      %vm988 = vcmp.eq.s32.totalorder %v986, %v594
      %v989 = vsel %vm987, 1, 0
      %v990 = vsel %vm988, 1, 0
      %v991 = vcvt.s32.f32 %v989
      %v992 = vcvt.s32.f32 %v990
      %v993 = vld [vmem:[#allocation3] sm:$0xff]
      %v994 = vld [vmem:[#allocation3 + $0x8] sm:$0xff]
      %v995 = vld [vmem:[#allocation3 + $0x10] sm:$0xff]
      %v996 = vld [vmem:[#allocation3 + $0x18] sm:$0xff]
      %v997 = vld [vmem:[#allocation3 + $0x20] sm:$0xff]
      %v998 = vld [vmem:[#allocation3 + $0x28] sm:$0xff]
      %v999 = vld [vmem:[#allocation3 + $0x30] sm:$0xff]
      %v1000 = vld [vmem:[#allocation3 + $0x38] sm:$0xff]
      %v1033 = vperm.slane %v891, %v593
      %v1034 = vperm.slane %v894, %v593
      %v1035 = vperm.slane %v897, %v593
      %v1036 = vperm.slane %v900, %v593
      %v1037 = vperm.slane %v903, %v593
      %v1038 = vperm.slane %v906, %v593
      %v1039 = vperm.slane %v909, %v593
      %v1040 = vperm.slane %v912, %v593
      %v1041 = vperm.slane %v915, %v593
      %v1042 = vperm.slane %v918, %v593
      %v1043 = vperm.slane %v921, %v593
      %v1044 = vperm.slane %v924, %v593
      %v1045 = vperm.slane %v927, %v593
      %v1046 = vperm.slane %v930, %v593
      %v1047 = vperm.slane %v933, %v593
      %v1048 = vperm.slane %v936, %v593
      %v1049 = vperm.slane %v939, %v593
      %v1050 = vperm.slane %v942, %v593
      %v1051 = vperm.slane %v945, %v593
      %v1052 = vperm.slane %v948, %v593
      %v1053 = vperm.slane %v951, %v593
      %v1054 = vperm.slane %v954, %v593
      %v1055 = vperm.slane %v957, %v593
      %v1056 = vperm.slane %v960, %v593
      %v1057 = vperm.slane %v963, %v593
      %v1058 = vperm.slane %v966, %v593
      %v1059 = vperm.slane %v969, %v593
      %v1060 = vperm.slane %v972, %v593
      %v1061 = vperm.slane %v975, %v593
      %v1062 = vperm.slane %v978, %v593
      %v1063 = vperm.slane %v981, %v593
      %v1064 = vperm.slane %v984, %v593
      %v1065 = vsel %vm627, %v1034, %v1033
      %v1066 = vsel %vm630, %v1035, %v1065
      %v1067 = vsel %vm633, %v1036, %v1066
      %v1068 = vsel %vm636, %v1037, %v1067
      %v1069 = vsel %vm639, %v1038, %v1068
      %v1070 = vsel %vm642, %v1039, %v1069
      %vm1071 = vcmask 1047559
      %v1072 = vsel %vm1071, %v1040, %v1070
      %v1073 = vsel %vm627, %v1042, %v1041
      %v1074 = vsel %vm630, %v1043, %v1073
      %v1075 = vsel %vm633, %v1044, %v1074
      %v1076 = vsel %vm636, %v1045, %v1075
      %v1077 = vsel %vm639, %v1046, %v1076
      %v1078 = vsel %vm642, %v1047, %v1077
      %v1079 = vsel %vm1071, %v1048, %v1078
      %v1080 = vsel %vm627, %v1050, %v1049
      %v1081 = vsel %vm630, %v1051, %v1080
      %v1082 = vsel %vm633, %v1052, %v1081
      %v1083 = vsel %vm636, %v1053, %v1082
      %v1084 = vsel %vm639, %v1054, %v1083
      %v1085 = vsel %vm642, %v1055, %v1084
      %v1086 = vsel %vm1071, %v1056, %v1085
      %v1087 = vsel %vm627, %v1058, %v1057
      %v1088 = vsel %vm630, %v1059, %v1087
      %v1089 = vsel %vm633, %v1060, %v1088
      %v1090 = vsel %vm636, %v1061, %v1089
      %v1091 = vsel %vm639, %v1062, %v1090
      %v1092 = vsel %vm642, %v1063, %v1091
      %v1093 = vsel %vm1071, %v1064, %v1092
      %v1094 = vsel %vm121, %v1072, 0
      %v1096 = vsel %vm121, %v1079, 0
      %v1098 = vsel %vm121, %v1086, 0
      %v1100 = vsel %vm121, %v1093, 0
      %1102 = vmatpush.msra.mxu0 0.0
      %1103 = vmatpush.msra.mxu0 0.0
      %1104 = vmatpush.msra.mxu0 0.0
      %1105 = vmatpush.msra.mxu0 0.0
      %1106 = vmatpush.msra.mxu0 0.0
      %1107 = vmatpush.msra.mxu0 0.0
      %1108 = vmatpush.msra.mxu0 0.0
      %1109 = vmatpush.msra.mxu0 0.0
      %1110 = vmatpush.msra.mxu0 0.0
      %1111 = vmatpush.msra.mxu0 0.0
      %1112 = vmatpush.msra.mxu0 0.0
      %1113 = vmatpush.msra.mxu0 0.0
      %1114 = vmatpush.msra.mxu0 0.0
      %1115 = vmatpush.msra.mxu0 0.0
      %1116 = vmatpush.msra.mxu0 0.0
      %1117 = vmatpush.msra.mxu0 %v991
      %1118 = vmatmul.f32.gmra.mxu0 %v1094
      %v1119 = vpop.f32.mrf.mxu0
      %v1120 = vadd.f32 0.0, %v1119
      %1121 = vmatmul.f32.gmra.mxu0 %v1096
      %v1122 = vpop.f32.mrf.mxu0
      %v1123 = vadd.f32 0.0, %v1122
      %1124 = vmatmul.f32.gmra.mxu0 %v1098
      %v1125 = vpop.f32.mrf.mxu0
      %v1126 = vadd.f32 0.0, %v1125
      %1127 = vmatmul.f32.gmra.mxu0 %v1100
      %v1128 = vpop.f32.mrf.mxu0
      %v1129 = vadd.f32 0.0, %v1128
      %1130 = vdwg.mxu0
      %1131 = vmatpush.msra.mxu0 0.0
      %1132 = vmatpush.msra.mxu0 0.0
      %1133 = vmatpush.msra.mxu0 0.0
      %1134 = vmatpush.msra.mxu0 0.0
      %1135 = vmatpush.msra.mxu0 0.0
      %1136 = vmatpush.msra.mxu0 0.0
      %1137 = vmatpush.msra.mxu0 0.0
      %1138 = vmatpush.msra.mxu0 0.0
      %1139 = vmatpush.msra.mxu0 0.0
      %1140 = vmatpush.msra.mxu0 0.0
      %1141 = vmatpush.msra.mxu0 0.0
      %1142 = vmatpush.msra.mxu0 0.0
      %1143 = vmatpush.msra.mxu0 0.0
      %1144 = vmatpush.msra.mxu0 0.0
      %1145 = vmatpush.msra.mxu0 0.0
      %1146 = vmatpush.msra.mxu0 %v992
      %1147 = vmatmul.f32.gmra.mxu0 %v1094
      %v1148 = vpop.f32.mrf.mxu0
      %v1149 = vadd.f32 0.0, %v1148
      %1150 = vmatmul.f32.gmra.mxu0 %v1096
      %v1151 = vpop.f32.mrf.mxu0
      %v1152 = vadd.f32 0.0, %v1151
      %1153 = vmatmul.f32.gmra.mxu0 %v1098
      %v1154 = vpop.f32.mrf.mxu0
      %v1155 = vadd.f32 0.0, %v1154
      %1156 = vmatmul.f32.gmra.mxu0 %v1100
      %v1157 = vpop.f32.mrf.mxu0
      %v1158 = vadd.f32 0.0, %v1157
      %1159 = vdwg.mxu0
      %v1160 = vadd.f32 %v993, %v1120
      %v1161 = vadd.f32 %v994, %v1149
      %v1162 = vadd.f32 %v995, %v1123
      %v1163 = vadd.f32 %v996, %v1152
      %v1164 = vadd.f32 %v997, %v1126
      %v1165 = vadd.f32 %v998, %v1155
      %v1166 = vadd.f32 %v999, %v1129
      %v1167 = vadd.f32 %v1000, %v1158
      %1168 = vst [vmem:[#allocation3] sm:$0xff] %v1160
      %1169 = vst [vmem:[#allocation3 + $0x8] sm:$0xff] %v1161
      %1170 = vst [vmem:[#allocation3 + $0x10] sm:$0xff] %v1162
      %1171 = vst [vmem:[#allocation3 + $0x18] sm:$0xff] %v1163
      %1172 = vst [vmem:[#allocation3 + $0x20] sm:$0xff] %v1164
      %1173 = vst [vmem:[#allocation3 + $0x28] sm:$0xff] %v1165
      %1174 = vst [vmem:[#allocation3 + $0x30] sm:$0xff] %v1166
      %1175 = vst [vmem:[#allocation3 + $0x38] sm:$0xff] %v1167
    $region50: #{tpu_custom_call.1} parent=1 // loop_footer
      %s602 = sadd.s32 1, %s598
    $region51: #{tpu_custom_call.1} parent=1 // loop_footer_branch
      %597 = sbr.rel target = $region47
    $region52: #{tpu_custom_call.1} parent=1 // loop_exit
      _
    %v1176 = vld [vmem:[#allocation3] sm:$0xff]
    %v1177 = vld [vmem:[#allocation3 + $0x8] sm:$0xff]
    %v1178 = vld [vmem:[#allocation3 + $0x10] sm:$0xff]
    %v1179 = vld [vmem:[#allocation3 + $0x18] sm:$0xff]
    %v1180 = vld [vmem:[#allocation3 + $0x20] sm:$0xff]
    %v1181 = vld [vmem:[#allocation3 + $0x28] sm:$0xff]
    %v1182 = vld [vmem:[#allocation3 + $0x30] sm:$0xff]
    %v1183 = vld [vmem:[#allocation3 + $0x38] sm:$0xff]
    %v1184 = vmax.f32 %v576, 0.0
    %v1185 = vmax.f32 %v577, 0.0
    %v1186 = vmax.f32 %v578, 0.0
    %v1187 = vmax.f32 %v579, 0.0
    %v1188 = vmax.f32 %v580, 0.0
    %v1189 = vmax.f32 %v581, 0.0
    %v1190 = vmax.f32 %v582, 0.0
    %v1191 = vmax.f32 %v583, 0.0
    %v1192 = vpack.c.bf16 %v1185, %v1184
    %v1193 = vpack.c.bf16 %v1187, %v1186
    %v1194 = vpack.c.bf16 %v1189, %v1188
    %v1195 = vpack.c.bf16 %v1191, %v1190
    %1196 = vst [vmem:[#allocation2] sm:$0xff] %v1192
    %1197 = vst [vmem:[#allocation2 + $0x8] sm:$0xff] %v1193
    %1198 = vst [vmem:[#allocation2 + $0x10] sm:$0xff] %v1194
    %1199 = vst [vmem:[#allocation2 + $0x18] sm:$0xff] %v1195
    %v1200 = vmax.f32 %v1176, 0.0
    %v1201 = vmax.f32 %v1177, 0.0
    %v1202 = vmax.f32 %v1178, 0.0
    %v1203 = vmax.f32 %v1179, 0.0
    %v1204 = vmax.f32 %v1180, 0.0
    %v1205 = vmax.f32 %v1181, 0.0
    %v1206 = vmax.f32 %v1182, 0.0
    %v1207 = vmax.f32 %v1183, 0.0
    %v1208 = vpack.c.bf16 %v1201, %v1200
    %v1209 = vpack.c.bf16 %v1203, %v1202
    %v1210 = vpack.c.bf16 %v1205, %v1204
    %v1211 = vpack.c.bf16 %v1207, %v1206
    %1212 = vst [vmem:[#allocation2 + $0x20] sm:$0xff] %v1208
    %1213 = vst [vmem:[#allocation2 + $0x28] sm:$0xff] %v1209
    %1214 = vst [vmem:[#allocation2 + $0x30] sm:$0xff] %v1210
    %1215 = vst [vmem:[#allocation2 + $0x38] sm:$0xff] %v1211
    %v1216 = vpack.c.bf16 %v577, %v576
    %v1217 = vpack.c.bf16 %v579, %v578
    %v1218 = vpack.c.bf16 %v581, %v580
    %v1219 = vpack.c.bf16 %v583, %v582
    %1220 = vst [vmem:[#allocation2 + $0x40] sm:$0xff] %v1216
    %1221 = vst [vmem:[#allocation2 + $0x48] sm:$0xff] %v1217
    %1222 = vst [vmem:[#allocation2 + $0x50] sm:$0xff] %v1218
    %1223 = vst [vmem:[#allocation2 + $0x58] sm:$0xff] %v1219
    %v1224 = vpack.c.bf16 %v1177, %v1176
    %v1225 = vpack.c.bf16 %v1179, %v1178
    %v1226 = vpack.c.bf16 %v1181, %v1180
    %v1227 = vpack.c.bf16 %v1183, %v1182
    %1228 = vst [vmem:[#allocation2 + $0x60] sm:$0xff] %v1224
    %1229 = vst [vmem:[#allocation2 + $0x68] sm:$0xff] %v1225
    %1230 = vst [vmem:[#allocation2 + $0x70] sm:$0xff] %v1226
    %1231 = vst [vmem:[#allocation2 + $0x78] sm:$0xff] %v1227
    %s1232 = scalar_lea.vmem %s5, 32
    %v1233 = vld [vmem:[%s1232] sm:$0xf]
    %v1234 = vld [vmem:[%s1232 + $0x4] sm:$0xf]
    %v1235 = vld [vmem:[%s1232 + $0x8] sm:$0xf]
    %v1236 = vld [vmem:[%s1232 + $0xc] sm:$0xf]
    %v1237 = vld [vmem:[%s1232 + $0x10] sm:$0xf]
    %v1238 = vld [vmem:[%s1232 + $0x14] sm:$0xf]
    %v1239 = vld [vmem:[%s1232 + $0x18] sm:$0xf]
    %v1240 = vld [vmem:[%s1232 + $0x1c] sm:$0xf]
    %v1241 = vld [vmem:[#allocation2] sm:$0xff]
    %v1242 = vld [vmem:[#allocation2 + $0x8] sm:$0xff]
    %v1243 = vld [vmem:[#allocation2 + $0x10] sm:$0xff]
    %v1244 = vld [vmem:[#allocation2 + $0x18] sm:$0xff]
    %v1245 = vld [vmem:[#allocation2 + $0x20] sm:$0xff]
    %v1246 = vld [vmem:[#allocation2 + $0x28] sm:$0xff]
    %v1247 = vld [vmem:[#allocation2 + $0x30] sm:$0xff]
    %v1248 = vld [vmem:[#allocation2 + $0x38] sm:$0xff]
    %v1249 = vld [vmem:[#allocation2 + $0x40] sm:$0xff]
    %v1250 = vld [vmem:[#allocation2 + $0x48] sm:$0xff]
    %v1251 = vld [vmem:[#allocation2 + $0x50] sm:$0xff]
    %v1252 = vld [vmem:[#allocation2 + $0x58] sm:$0xff]
    %v1253 = vld [vmem:[#allocation2 + $0x60] sm:$0xff]
    %v1254 = vld [vmem:[#allocation2 + $0x68] sm:$0xff]
    %v1255 = vld [vmem:[#allocation2 + $0x70] sm:$0xff]
    %v1256 = vld [vmem:[#allocation2 + $0x78] sm:$0xff]
    %s1257 = scalar_lea.vmem %s6, 64
    %v1258 = vld [vmem:[%s1257] sm:$0xff]
    %v1259 = vld [vmem:[%s1257 + $0x8] sm:$0xff]
    %v1260 = vld [vmem:[%s1257 + $0x10] sm:$0xff]
    %v1261 = vld [vmem:[%s1257 + $0x18] sm:$0xff]
    %v1262 = vld [vmem:[%s1257 + $0x20] sm:$0xff]
    %v1263 = vld [vmem:[%s1257 + $0x28] sm:$0xff]
    %v1264 = vld [vmem:[%s1257 + $0x30] sm:$0xff]
    %v1265 = vld [vmem:[%s1257 + $0x38] sm:$0xff]
    %1267 = vset.pattern.permute.xlu0 0
    %1268 = vperm.xlu0 %1267, %v1258
    %v1269 = vpop.permute.xlu0 %1268
    %1272 = vset.pattern.permute.xlu0 0
    %1273 = vperm.xlu0 %1272, %v1259
    %v1274 = vpop.permute.xlu0 %1273
    %1277 = vset.pattern.permute.xlu0 0
    %1278 = vperm.xlu0 %1277, %v1260
    %v1279 = vpop.permute.xlu0 %1278
    %1282 = vset.pattern.permute.xlu0 0
    %1283 = vperm.xlu0 %1282, %v1261
    %v1284 = vpop.permute.xlu0 %1283
    %1287 = vset.pattern.permute.xlu0 0
    %1288 = vperm.xlu0 %1287, %v1262
    %v1289 = vpop.permute.xlu0 %1288
    %1292 = vset.pattern.permute.xlu0 0
    %1293 = vperm.xlu0 %1292, %v1263
    %v1294 = vpop.permute.xlu0 %1293
    %1297 = vset.pattern.permute.xlu0 0
    %1298 = vperm.xlu0 %1297, %v1264
    %v1299 = vpop.permute.xlu0 %1298
    %1302 = vset.pattern.permute.xlu0 0
    %1303 = vperm.xlu0 %1302, %v1265
    %v1304 = vpop.permute.xlu0 %1303
    %v1314 = vunpack.c.l.b16 %v1233
    %v1315 = vunpack.c.l.b16 %v1234
    %v1316 = vunpack.c.l.b16 %v1235
    %v1317 = vunpack.c.l.b16 %v1236
    %v1318 = vunpack.c.l.b16 %v1237
    %v1319 = vunpack.c.l.b16 %v1238
    %v1320 = vunpack.c.l.b16 %v1239
    %v1321 = vunpack.c.l.b16 %v1240
    %v1322 = vpack.c.b16 %v1315, %v1314
    %v1323 = vpack.c.b16 %v1317, %v1316
    %v1324 = vpack.c.b16 %v1319, %v1318
    %v1325 = vpack.c.b16 %v1321, %v1320
    %v1346 = vunpack.c.l.b16 %v1241
    %v1347 = vunpack.c.h.b16 %v1241
    %v1348 = vunpack.c.l.b16 %v1242
    %v1349 = vunpack.c.h.b16 %v1242
    %v1350 = vunpack.c.l.b16 %v1243
    %v1351 = vunpack.c.h.b16 %v1243
    %v1352 = vunpack.c.l.b16 %v1244
    %v1353 = vunpack.c.h.b16 %v1244
    %v1354 = vunpack.c.l.b16 %v1245
    %v1355 = vunpack.c.h.b16 %v1245
    %v1356 = vunpack.c.l.b16 %v1246
    %v1357 = vunpack.c.h.b16 %v1246
    %v1358 = vunpack.c.l.b16 %v1247
    %v1359 = vunpack.c.h.b16 %v1247
    %v1360 = vunpack.c.l.b16 %v1248
    %v1361 = vunpack.c.h.b16 %v1248
    %v1362 = vunpack.c.l.b16 %v1249
    %v1363 = vunpack.c.h.b16 %v1249
    %v1364 = vunpack.c.l.b16 %v1250
    %v1365 = vunpack.c.h.b16 %v1250
    %v1366 = vunpack.c.l.b16 %v1251
    %v1367 = vunpack.c.h.b16 %v1251
    %v1368 = vunpack.c.l.b16 %v1252
    %v1369 = vunpack.c.h.b16 %v1252
    %v1370 = vunpack.c.l.b16 %v1253
    %v1371 = vunpack.c.h.b16 %v1253
    %v1372 = vunpack.c.l.b16 %v1254
    %v1373 = vunpack.c.h.b16 %v1254
    %v1374 = vunpack.c.l.b16 %v1255
    %v1375 = vunpack.c.h.b16 %v1255
    %v1376 = vunpack.c.l.b16 %v1256
    %v1377 = vunpack.c.h.b16 %v1256
    %v1378 = vpack.c.b16 %v1348, %v1346
    %v1379 = vpack.c.b16 %v1349, %v1347
    %v1380 = vpack.c.b16 %v1352, %v1350
    %v1381 = vpack.c.b16 %v1353, %v1351
    %v1382 = vpack.c.b16 %v1356, %v1354
    %v1383 = vpack.c.b16 %v1357, %v1355
    %v1384 = vpack.c.b16 %v1360, %v1358
    %v1385 = vpack.c.b16 %v1361, %v1359
    %v1386 = vpack.c.b16 %v1364, %v1362
    %v1387 = vpack.c.b16 %v1365, %v1363
    %v1388 = vpack.c.b16 %v1368, %v1366
    %v1389 = vpack.c.b16 %v1369, %v1367
    %v1390 = vpack.c.b16 %v1372, %v1370
    %v1391 = vpack.c.b16 %v1373, %v1371
    %v1392 = vpack.c.b16 %v1376, %v1374
    %v1393 = vpack.c.b16 %v1377, %v1375
    %1410 = vmatpush.bf16.msra.mxu0 %v1392
    %1411 = vmatpush.bf16.msra.mxu0 %v1390
    %1412 = vmatpush.bf16.msra.mxu0 %v1388
    %1413 = vmatpush.bf16.msra.mxu0 %v1386
    %1414 = vmatpush.bf16.msra.mxu0 %v1384
    %1415 = vmatpush.bf16.msra.mxu0 %v1382
    %1416 = vmatpush.bf16.msra.mxu0 %v1380
    %1417 = vmatpush.bf16.msra.mxu0 %v1378
    %1418 = vmatmul.bf16.gmra.mxu0 %v1322
    %v1419 = vpop.f32.mrf.mxu0
    %v1420 = vadd.f32 %v1269, %v1419
    %v1421 = vpop.f32.mrf.mxu0
    %v1422 = vadd.f32 %v1274, %v1421
    %1423 = vmatmul.bf16.gmra.mxu0 %v1323
    %v1424 = vpop.f32.mrf.mxu0
    %v1425 = vadd.f32 %v1279, %v1424
    %v1426 = vpop.f32.mrf.mxu0
    %v1427 = vadd.f32 %v1284, %v1426
    %1428 = vmatmul.bf16.gmra.mxu0 %v1324
    %v1429 = vpop.f32.mrf.mxu0
    %v1430 = vadd.f32 %v1289, %v1429
    %v1431 = vpop.f32.mrf.mxu0
    %v1432 = vadd.f32 %v1294, %v1431
    %1433 = vmatmul.bf16.gmra.mxu0 %v1325
    %v1434 = vpop.f32.mrf.mxu0
    %v1435 = vadd.f32 %v1299, %v1434
    %v1436 = vpop.f32.mrf.mxu0
    %v1437 = vadd.f32 %v1304, %v1436
    %1438 = vdwg.mxu0
    %1439 = vmatpush.bf16.msra.mxu0 %v1393
    %1440 = vmatpush.bf16.msra.mxu0 %v1391
    %1441 = vmatpush.bf16.msra.mxu0 %v1389
    %1442 = vmatpush.bf16.msra.mxu0 %v1387
    %1443 = vmatpush.bf16.msra.mxu0 %v1385
    %1444 = vmatpush.bf16.msra.mxu0 %v1383
    %1445 = vmatpush.bf16.msra.mxu0 %v1381
    %1446 = vmatpush.bf16.msra.mxu0 %v1379
    %1447 = vmatmul.bf16.gmra.mxu0 %v1322
    %v1448 = vpop.f32.mrf.mxu0
    %v1449 = vadd.f32 %v1269, %v1448
    %v1450 = vpop.f32.mrf.mxu0
    %v1451 = vadd.f32 %v1274, %v1450
    %1452 = vmatmul.bf16.gmra.mxu0 %v1323
    %v1453 = vpop.f32.mrf.mxu0
    %v1454 = vadd.f32 %v1279, %v1453
    %v1455 = vpop.f32.mrf.mxu0
    %v1456 = vadd.f32 %v1284, %v1455
    %1457 = vmatmul.bf16.gmra.mxu0 %v1324
    %v1458 = vpop.f32.mrf.mxu0
    %v1459 = vadd.f32 %v1289, %v1458
    %v1460 = vpop.f32.mrf.mxu0
    %v1461 = vadd.f32 %v1294, %v1460
    %1462 = vmatmul.bf16.gmra.mxu0 %v1325
    %v1463 = vpop.f32.mrf.mxu0
    %v1464 = vadd.f32 %v1299, %v1463
    %v1465 = vpop.f32.mrf.mxu0
    %v1466 = vadd.f32 %v1304, %v1465
    %1467 = vdwg.mxu0
    %s1468 = scalar_lea.vmem %s7, 16
    %v1469 = vld [vmem:[%s1468] sm:$0xf]
    %v1470 = vld [vmem:[%s1468 + $0x4] sm:$0xf]
    %v1471 = vld [vmem:[%s1468 + $0x8] sm:$0xf]
    %v1472 = vld [vmem:[%s1468 + $0xc] sm:$0xf]
    %v1473 = vmax.f32 %v1420, 0.0
    %v1474 = vmax.f32 %v1449, 0.0
    %v1475 = vmax.f32 %v1422, 0.0
    %v1476 = vmax.f32 %v1451, 0.0
    %v1477 = vmax.f32 %v1425, 0.0
    %v1478 = vmax.f32 %v1454, 0.0
    %v1479 = vmax.f32 %v1427, 0.0
    %v1480 = vmax.f32 %v1456, 0.0
    %v1481 = vpack.c.bf16 %v1475, %v1473
    %v1482 = vpack.c.bf16 %v1476, %v1474
    %v1483 = vpack.c.bf16 %v1479, %v1477
    %v1484 = vpack.c.bf16 %v1480, %v1478
    %s1485 = scalar_lea.vmem %s8, 32
    %v1486 = vld [vmem:[%s1485] sm:$0xff]
    %v1487 = vld [vmem:[%s1485 + $0x8] sm:$0xff]
    %v1488 = vld [vmem:[%s1485 + $0x10] sm:$0xff]
    %v1489 = vld [vmem:[%s1485 + $0x18] sm:$0xff]
    %1491 = vset.pattern.permute.xlu0 0
    %1492 = vperm.xlu0 %1491, %v1486
    %v1493 = vpop.permute.xlu0 %1492
    %1496 = vset.pattern.permute.xlu0 0
    %1497 = vperm.xlu0 %1496, %v1487
    %v1498 = vpop.permute.xlu0 %1497
    %1501 = vset.pattern.permute.xlu0 0
    %1502 = vperm.xlu0 %1501, %v1488
    %v1503 = vpop.permute.xlu0 %1502
    %1506 = vset.pattern.permute.xlu0 0
    %1507 = vperm.xlu0 %1506, %v1489
    %v1508 = vpop.permute.xlu0 %1507
    %v1514 = vunpack.c.l.b16 %v1469
    %v1515 = vunpack.c.l.b16 %v1470
    %v1516 = vunpack.c.l.b16 %v1471
    %v1517 = vunpack.c.l.b16 %v1472
    %v1518 = vpack.c.b16 %v1515, %v1514
    %v1519 = vpack.c.b16 %v1517, %v1516
    %v1521 = vsel %vm531, %v1518, 0
    %v1524 = vsel %vm531, %v1519, 0
    %1526 = vmatpush.bf16.msra.mxu0 0
    %1527 = vmatpush.bf16.msra.mxu0 0
    %1528 = vmatpush.bf16.msra.mxu0 0
    %1529 = vmatpush.bf16.msra.mxu0 0
    %1530 = vmatpush.bf16.msra.mxu0 0
    %1531 = vmatpush.bf16.msra.mxu0 0
    %1532 = vmatpush.bf16.msra.mxu0 %v1483
    %1533 = vmatpush.bf16.msra.mxu0 %v1481
    %1534 = vmatmul.bf16.gmra.mxu0 %v1521
    %v1535 = vpop.f32.mrf.mxu0
    %v1536 = vadd.f32 %v1493, %v1535
    %v1537 = vpop.f32.mrf.mxu0
    %v1538 = vadd.f32 %v1498, %v1537
    %1539 = vmatmul.bf16.gmra.mxu0 %v1524
    %v1540 = vpop.f32.mrf.mxu0
    %v1541 = vadd.f32 %v1503, %v1540
    %v1542 = vpop.f32.mrf.mxu0
    %v1543 = vadd.f32 %v1508, %v1542
    %1544 = vdwg.mxu0
    %1545 = vmatpush.bf16.msra.mxu0 0
    %1546 = vmatpush.bf16.msra.mxu0 0
    %1547 = vmatpush.bf16.msra.mxu0 0
    %1548 = vmatpush.bf16.msra.mxu0 0
    %1549 = vmatpush.bf16.msra.mxu0 0
    %1550 = vmatpush.bf16.msra.mxu0 0
    %1551 = vmatpush.bf16.msra.mxu0 %v1484
    %1552 = vmatpush.bf16.msra.mxu0 %v1482
    %1553 = vmatmul.bf16.gmra.mxu0 %v1521
    %v1554 = vpop.f32.mrf.mxu0
    %v1555 = vadd.f32 %v1493, %v1554
    %v1556 = vpop.f32.mrf.mxu0
    %v1557 = vadd.f32 %v1498, %v1556
    %1558 = vmatmul.bf16.gmra.mxu0 %v1524
    %v1559 = vpop.f32.mrf.mxu0
    %v1560 = vadd.f32 %v1503, %v1559
    %v1561 = vpop.f32.mrf.mxu0
    %v1562 = vadd.f32 %v1508, %v1561
    %1563 = vdwg.mxu0
    %v1564 = vadd.f32 %v1430, %v1536
    %v1565 = vadd.f32 %v1459, %v1555
    %v1566 = vadd.f32 %v1432, %v1538
    %v1567 = vadd.f32 %v1461, %v1557
    %v1568 = vadd.f32 %v1435, %v1541
    %v1569 = vadd.f32 %v1464, %v1560
    %v1570 = vadd.f32 %v1437, %v1543
    %v1571 = vadd.f32 %v1466, %v1562
    %1572 = vst [vmem:[#allocation3] sm:$0xff] 0.0
    %1573 = vst [vmem:[#allocation3 + $0x8] sm:$0xff] 0.0
    %1574 = vst [vmem:[#allocation3 + $0x10] sm:$0xff] 0.0
    %1575 = vst [vmem:[#allocation3 + $0x18] sm:$0xff] 0.0
    %1576 = vst [vmem:[#allocation3 + $0x20] sm:$0xff] 0.0
    %1577 = vst [vmem:[#allocation3 + $0x28] sm:$0xff] 0.0
    %1578 = vst [vmem:[#allocation3 + $0x30] sm:$0xff] 0.0
    %1579 = vst [vmem:[#allocation3 + $0x38] sm:$0xff] 0.0
    loop: start=0, step=1, limit=32
    $region53: #{tpu_custom_call.1} parent=1 // loop_pre_header
      _
    $region54: #{tpu_custom_call.1} parent=1 // loop_header
      %s1581 = sphi 0, %s1585
      %p1582 = scmp.ge.s32.totalorder %s1581, 32
    $region55: #{tpu_custom_call.1} parent=1 // loop_header_branch
      %1584 = sbr.rel (%p1582) target = $region59
    $region56: #{tpu_custom_call.1} parent=1 // loop_body
      %s1586 = smul.u32 %s1581, 8
      %s1587 = scalar_lea.vmem %s2, %s1586
      %v1588 = vld [vmem:[%s1587] sm:$0xff]
      %1589 = vset.pattern.permute.xlu0 0
      %1590 = vperm.xlu0 %1589, %v1588
      %v1591 = vpop.permute.xlu0 %1590
      %v1592 = vperm.slane %v40, 0
      %v1593 = vperm.slane %v40, 1
      %vm1594 = vcmp.eq.s32.totalorder %v1591, %v1592
      %vm1595 = vcmp.eq.s32.totalorder %v1591, %v1593
      %v1604 = vrot.slane %v1565, 7
      %v1605 = vrot.slane %v1567, 7
      %v1606 = vrot.slane %v1569, 7
      %v1607 = vrot.slane %v1571, 7
      %vm1608 = vcmask 1040384
      %v1609 = vsel %vm1608, %v1564, %v1604
      %vm1610 = vcmask 1041409
      %v1611 = vsel %vm1610, %v1564, %v1604
      %v1612 = vrot.slane %v1611, 1
      %vm1613 = vcmask 1042434
      %v1614 = vsel %vm1613, %v1564, %v1604
      %v1615 = vrot.slane %v1614, 2
      %vm1616 = vcmask 1043459
      %v1617 = vsel %vm1616, %v1564, %v1604
      %v1618 = vrot.slane %v1617, 3
      %vm1619 = vcmask 1044484
      %v1620 = vsel %vm1619, %v1564, %v1604
      %v1621 = vrot.slane %v1620, 4
      %vm1622 = vcmask 1045509
      %v1623 = vsel %vm1622, %v1564, %v1604
      %v1624 = vrot.slane %v1623, 5
      %vm1625 = vcmask 1046534
      %v1626 = vsel %vm1625, %v1564, %v1604
      %v1627 = vrot.slane %v1626, 6
      %vm1628 = vcmask 1046528
      %v1629 = vsel %vm1628, %v1604, %v1564
      %v1630 = vrot.slane %v1629, 7
      %v1631 = vsel %vm1608, %v1566, %v1605
      %v1632 = vsel %vm1610, %v1566, %v1605
      %v1633 = vrot.slane %v1632, 1
      %v1634 = vsel %vm1613, %v1566, %v1605
      %v1635 = vrot.slane %v1634, 2
      %v1636 = vsel %vm1616, %v1566, %v1605
      %v1637 = vrot.slane %v1636, 3
      %v1638 = vsel %vm1619, %v1566, %v1605
      %v1639 = vrot.slane %v1638, 4
      %v1640 = vsel %vm1622, %v1566, %v1605
      %v1641 = vrot.slane %v1640, 5
      %v1642 = vsel %vm1625, %v1566, %v1605
      %v1643 = vrot.slane %v1642, 6
      %v1644 = vsel %vm1628, %v1605, %v1566
      %v1645 = vrot.slane %v1644, 7
      %v1646 = vsel %vm1608, %v1568, %v1606
      %v1647 = vsel %vm1610, %v1568, %v1606
      %v1648 = vrot.slane %v1647, 1
      %v1649 = vsel %vm1613, %v1568, %v1606
      %v1650 = vrot.slane %v1649, 2
      %v1651 = vsel %vm1616, %v1568, %v1606
      %v1652 = vrot.slane %v1651, 3
      %v1653 = vsel %vm1619, %v1568, %v1606
      %v1654 = vrot.slane %v1653, 4
      %v1655 = vsel %vm1622, %v1568, %v1606
      %v1656 = vrot.slane %v1655, 5
      %v1657 = vsel %vm1625, %v1568, %v1606
      %v1658 = vrot.slane %v1657, 6
      %v1659 = vsel %vm1628, %v1606, %v1568
      %v1660 = vrot.slane %v1659, 7
      %v1661 = vsel %vm1608, %v1570, %v1607
      %v1662 = vsel %vm1610, %v1570, %v1607
      %v1663 = vrot.slane %v1662, 1
      %v1664 = vsel %vm1613, %v1570, %v1607
      %v1665 = vrot.slane %v1664, 2
      %v1666 = vsel %vm1616, %v1570, %v1607
      %v1667 = vrot.slane %v1666, 3
      %v1668 = vsel %vm1619, %v1570, %v1607
      %v1669 = vrot.slane %v1668, 4
      %v1670 = vsel %vm1622, %v1570, %v1607
      %v1671 = vrot.slane %v1670, 5
      %v1672 = vsel %vm1625, %v1570, %v1607
      %v1673 = vrot.slane %v1672, 6
      %v1674 = vsel %vm1628, %v1607, %v1570
      %v1675 = vrot.slane %v1674, 7
      %v1676 = vsel %vm1594, 1, 0
      %v1677 = vsel %vm1595, 1, 0
      %vm1678 = vcmp.eq.s32.totalorder %v1676, 1
      %vm1679 = vcmp.eq.s32.totalorder %v1677, 1
      %v1680 = vperm.slane %v1609, 0
      %v1681 = vperm.slane %v1609, 1
      %v1682 = vperm.slane %v1612, 0
      %v1683 = vperm.slane %v1612, 1
      %v1684 = vperm.slane %v1615, 0
      %v1685 = vperm.slane %v1615, 1
      %v1686 = vperm.slane %v1618, 0
      %v1687 = vperm.slane %v1618, 1
      %v1688 = vperm.slane %v1621, 0
      %v1689 = vperm.slane %v1621, 1
      %v1690 = vperm.slane %v1624, 0
      %v1691 = vperm.slane %v1624, 1
      %v1692 = vperm.slane %v1627, 0
      %v1693 = vperm.slane %v1627, 1
      %v1694 = vperm.slane %v1630, 0
      %v1695 = vperm.slane %v1630, 1
      %v1696 = vperm.slane %v1631, 0
      %v1697 = vperm.slane %v1631, 1
      %v1698 = vperm.slane %v1633, 0
      %v1699 = vperm.slane %v1633, 1
      %v1700 = vperm.slane %v1635, 0
      %v1701 = vperm.slane %v1635, 1
      %v1702 = vperm.slane %v1637, 0
      %v1703 = vperm.slane %v1637, 1
      %v1704 = vperm.slane %v1639, 0
      %v1705 = vperm.slane %v1639, 1
      %v1706 = vperm.slane %v1641, 0
      %v1707 = vperm.slane %v1641, 1
      %v1708 = vperm.slane %v1643, 0
      %v1709 = vperm.slane %v1643, 1
      %v1710 = vperm.slane %v1645, 0
      %v1711 = vperm.slane %v1645, 1
      %v1712 = vperm.slane %v1646, 0
      %v1713 = vperm.slane %v1646, 1
      %v1714 = vperm.slane %v1648, 0
      %v1715 = vperm.slane %v1648, 1
      %v1716 = vperm.slane %v1650, 0
      %v1717 = vperm.slane %v1650, 1
      %v1718 = vperm.slane %v1652, 0
      %v1719 = vperm.slane %v1652, 1
      %v1720 = vperm.slane %v1654, 0
      %v1721 = vperm.slane %v1654, 1
      %v1722 = vperm.slane %v1656, 0
      %v1723 = vperm.slane %v1656, 1
      %v1724 = vperm.slane %v1658, 0
      %v1725 = vperm.slane %v1658, 1
      %v1726 = vperm.slane %v1660, 0
      %v1727 = vperm.slane %v1660, 1
      %v1728 = vperm.slane %v1661, 0
      %v1729 = vperm.slane %v1661, 1
      %v1730 = vperm.slane %v1663, 0
      %v1731 = vperm.slane %v1663, 1
      %v1732 = vperm.slane %v1665, 0
      %v1733 = vperm.slane %v1665, 1
      %v1734 = vperm.slane %v1667, 0
      %v1735 = vperm.slane %v1667, 1
      %v1736 = vperm.slane %v1669, 0
      %v1737 = vperm.slane %v1669, 1
      %v1738 = vperm.slane %v1671, 0
      %v1739 = vperm.slane %v1671, 1
      %v1740 = vperm.slane %v1673, 0
      %v1741 = vperm.slane %v1673, 1
      %v1742 = vperm.slane %v1675, 0
      %v1743 = vperm.slane %v1675, 1
      %v1808 = vsel %vm1678, %v1680, -1e+30
      %v1809 = vsel %vm1679, %v1681, -1e+30
      %v1810 = vsel %vm1678, %v1682, -1e+30
      %v1811 = vsel %vm1679, %v1683, -1e+30
      %v1812 = vsel %vm1678, %v1684, -1e+30
      %v1813 = vsel %vm1679, %v1685, -1e+30
      %v1814 = vsel %vm1678, %v1686, -1e+30
      %v1815 = vsel %vm1679, %v1687, -1e+30
      %v1816 = vsel %vm1678, %v1688, -1e+30
      %v1817 = vsel %vm1679, %v1689, -1e+30
      %v1818 = vsel %vm1678, %v1690, -1e+30
      %v1819 = vsel %vm1679, %v1691, -1e+30
      %v1820 = vsel %vm1678, %v1692, -1e+30
      %v1821 = vsel %vm1679, %v1693, -1e+30
      %v1822 = vsel %vm1678, %v1694, -1e+30
      %v1823 = vsel %vm1679, %v1695, -1e+30
      %v1824 = vsel %vm1678, %v1696, -1e+30
      %v1825 = vsel %vm1679, %v1697, -1e+30
      %v1826 = vsel %vm1678, %v1698, -1e+30
      %v1827 = vsel %vm1679, %v1699, -1e+30
      %v1828 = vsel %vm1678, %v1700, -1e+30
      %v1829 = vsel %vm1679, %v1701, -1e+30
      %v1830 = vsel %vm1678, %v1702, -1e+30
      %v1831 = vsel %vm1679, %v1703, -1e+30
      %v1832 = vsel %vm1678, %v1704, -1e+30
      %v1833 = vsel %vm1679, %v1705, -1e+30
      %v1834 = vsel %vm1678, %v1706, -1e+30
      %v1835 = vsel %vm1679, %v1707, -1e+30
      %v1836 = vsel %vm1678, %v1708, -1e+30
      %v1837 = vsel %vm1679, %v1709, -1e+30
      %v1838 = vsel %vm1678, %v1710, -1e+30
      %v1839 = vsel %vm1679, %v1711, -1e+30
      %v1840 = vsel %vm1678, %v1712, -1e+30
      %v1841 = vsel %vm1679, %v1713, -1e+30
      %v1842 = vsel %vm1678, %v1714, -1e+30
      %v1843 = vsel %vm1679, %v1715, -1e+30
      %v1844 = vsel %vm1678, %v1716, -1e+30
      %v1845 = vsel %vm1679, %v1717, -1e+30
      %v1846 = vsel %vm1678, %v1718, -1e+30
      %v1847 = vsel %vm1679, %v1719, -1e+30
      %v1848 = vsel %vm1678, %v1720, -1e+30
      %v1849 = vsel %vm1679, %v1721, -1e+30
      %v1850 = vsel %vm1678, %v1722, -1e+30
      %v1851 = vsel %vm1679, %v1723, -1e+30
      %v1852 = vsel %vm1678, %v1724, -1e+30
      %v1853 = vsel %vm1679, %v1725, -1e+30
      %v1854 = vsel %vm1678, %v1726, -1e+30
      %v1855 = vsel %vm1679, %v1727, -1e+30
      %v1856 = vsel %vm1678, %v1728, -1e+30
      %v1857 = vsel %vm1679, %v1729, -1e+30
      %v1858 = vsel %vm1678, %v1730, -1e+30
      %v1859 = vsel %vm1679, %v1731, -1e+30
      %v1860 = vsel %vm1678, %v1732, -1e+30
      %v1861 = vsel %vm1679, %v1733, -1e+30
      %v1862 = vsel %vm1678, %v1734, -1e+30
      %v1863 = vsel %vm1679, %v1735, -1e+30
      %v1864 = vsel %vm1678, %v1736, -1e+30
      %v1865 = vsel %vm1679, %v1737, -1e+30
      %v1866 = vsel %vm1678, %v1738, -1e+30
      %v1867 = vsel %vm1679, %v1739, -1e+30
      %v1868 = vsel %vm1678, %v1740, -1e+30
      %v1869 = vsel %vm1679, %v1741, -1e+30
      %v1870 = vsel %vm1678, %v1742, -1e+30
      %v1871 = vsel %vm1679, %v1743, -1e+30
      %v1872 = vmax.f32 %v1808, %v1809
      %1873 = vmax.xlane.f32.xlu0 %v1872
      %v1874 = vpop.xlane.xlu0 %1873
      %v1875 = vmax.f32 %v1810, %v1811
      %1876 = vmax.xlane.f32.xlu0 %v1875
      %v1877 = vpop.xlane.xlu0 %1876
      %v1878 = vmax.f32 %v1812, %v1813
      %1879 = vmax.xlane.f32.xlu0 %v1878
      %v1880 = vpop.xlane.xlu0 %1879
      %v1881 = vmax.f32 %v1814, %v1815
      %1882 = vmax.xlane.f32.xlu0 %v1881
      %v1883 = vpop.xlane.xlu0 %1882
      %v1884 = vmax.f32 %v1816, %v1817
      %1885 = vmax.xlane.f32.xlu0 %v1884
      %v1886 = vpop.xlane.xlu0 %1885
      %v1887 = vmax.f32 %v1818, %v1819
      %1888 = vmax.xlane.f32.xlu0 %v1887
      %v1889 = vpop.xlane.xlu0 %1888
      %v1890 = vmax.f32 %v1820, %v1821
      %1891 = vmax.xlane.f32.xlu0 %v1890
      %v1892 = vpop.xlane.xlu0 %1891
      %v1893 = vmax.f32 %v1822, %v1823
      %1894 = vmax.xlane.f32.xlu0 %v1893
      %v1895 = vpop.xlane.xlu0 %1894
      %v1896 = vmax.f32 %v1824, %v1825
      %1897 = vmax.xlane.f32.xlu0 %v1896
      %v1898 = vpop.xlane.xlu0 %1897
      %v1899 = vmax.f32 %v1826, %v1827
      %1900 = vmax.xlane.f32.xlu0 %v1899
      %v1901 = vpop.xlane.xlu0 %1900
      %v1902 = vmax.f32 %v1828, %v1829
      %1903 = vmax.xlane.f32.xlu0 %v1902
      %v1904 = vpop.xlane.xlu0 %1903
      %v1905 = vmax.f32 %v1830, %v1831
      %1906 = vmax.xlane.f32.xlu0 %v1905
      %v1907 = vpop.xlane.xlu0 %1906
      %v1908 = vmax.f32 %v1832, %v1833
      %1909 = vmax.xlane.f32.xlu0 %v1908
      %v1910 = vpop.xlane.xlu0 %1909
      %v1911 = vmax.f32 %v1834, %v1835
      %1912 = vmax.xlane.f32.xlu0 %v1911
      %v1913 = vpop.xlane.xlu0 %1912
      %v1914 = vmax.f32 %v1836, %v1837
      %1915 = vmax.xlane.f32.xlu0 %v1914
      %v1916 = vpop.xlane.xlu0 %1915
      %v1917 = vmax.f32 %v1838, %v1839
      %1918 = vmax.xlane.f32.xlu0 %v1917
      %v1919 = vpop.xlane.xlu0 %1918
      %v1920 = vmax.f32 %v1840, %v1841
      %1921 = vmax.xlane.f32.xlu0 %v1920
      %v1922 = vpop.xlane.xlu0 %1921
      %v1923 = vmax.f32 %v1842, %v1843
      %1924 = vmax.xlane.f32.xlu0 %v1923
      %v1925 = vpop.xlane.xlu0 %1924
      %v1926 = vmax.f32 %v1844, %v1845
      %1927 = vmax.xlane.f32.xlu0 %v1926
      %v1928 = vpop.xlane.xlu0 %1927
      %v1929 = vmax.f32 %v1846, %v1847
      %1930 = vmax.xlane.f32.xlu0 %v1929
      %v1931 = vpop.xlane.xlu0 %1930
      %v1932 = vmax.f32 %v1848, %v1849
      %1933 = vmax.xlane.f32.xlu0 %v1932
      %v1934 = vpop.xlane.xlu0 %1933
      %v1935 = vmax.f32 %v1850, %v1851
      %1936 = vmax.xlane.f32.xlu0 %v1935
      %v1937 = vpop.xlane.xlu0 %1936
      %v1938 = vmax.f32 %v1852, %v1853
      %1939 = vmax.xlane.f32.xlu0 %v1938
      %v1940 = vpop.xlane.xlu0 %1939
      %v1941 = vmax.f32 %v1854, %v1855
      %1942 = vmax.xlane.f32.xlu0 %v1941
      %v1943 = vpop.xlane.xlu0 %1942
      %v1944 = vmax.f32 %v1856, %v1857
      %1945 = vmax.xlane.f32.xlu0 %v1944
      %v1946 = vpop.xlane.xlu0 %1945
      %v1947 = vmax.f32 %v1858, %v1859
      %1948 = vmax.xlane.f32.xlu0 %v1947
      %v1949 = vpop.xlane.xlu0 %1948
      %v1950 = vmax.f32 %v1860, %v1861
      %1951 = vmax.xlane.f32.xlu0 %v1950
      %v1952 = vpop.xlane.xlu0 %1951
      %v1953 = vmax.f32 %v1862, %v1863
      %1954 = vmax.xlane.f32.xlu0 %v1953
      %v1955 = vpop.xlane.xlu0 %1954
      %v1956 = vmax.f32 %v1864, %v1865
      %1957 = vmax.xlane.f32.xlu0 %v1956
      %v1958 = vpop.xlane.xlu0 %1957
      %v1959 = vmax.f32 %v1866, %v1867
      %1960 = vmax.xlane.f32.xlu0 %v1959
      %v1961 = vpop.xlane.xlu0 %1960
      %v1962 = vmax.f32 %v1868, %v1869
      %1963 = vmax.xlane.f32.xlu0 %v1962
      %v1964 = vpop.xlane.xlu0 %1963
      %v1965 = vmax.f32 %v1870, %v1871
      %1966 = vmax.xlane.f32.xlu0 %v1965
      %v1967 = vpop.xlane.xlu0 %1966
      %v1968 = vstv %s1586
      %v1969 = vadd.s32 %v596, %v1968
      %vm1970 = vcmp.eq.s32.totalorder %v1969, %v593
      %vm1971 = vcmp.eq.s32.totalorder %v1969, %v594
      %v1972 = vsel %vm1970, 1, 0
      %v1973 = vsel %vm1971, 1, 0
      %v1974 = vcvt.s32.f32 %v1972
      %v1975 = vcvt.s32.f32 %v1973
      %v1976 = vld [vmem:[#allocation3] sm:$0xff]
      %v1977 = vld [vmem:[#allocation3 + $0x8] sm:$0xff]
      %v1978 = vld [vmem:[#allocation3 + $0x10] sm:$0xff]
      %v1979 = vld [vmem:[#allocation3 + $0x18] sm:$0xff]
      %v1980 = vld [vmem:[#allocation3 + $0x20] sm:$0xff]
      %v1981 = vld [vmem:[#allocation3 + $0x28] sm:$0xff]
      %v1982 = vld [vmem:[#allocation3 + $0x30] sm:$0xff]
      %v1983 = vld [vmem:[#allocation3 + $0x38] sm:$0xff]
      %v2016 = vperm.slane %v1874, %v593
      %v2017 = vperm.slane %v1877, %v593
      %v2018 = vperm.slane %v1880, %v593
      %v2019 = vperm.slane %v1883, %v593
      %v2020 = vperm.slane %v1886, %v593
      %v2021 = vperm.slane %v1889, %v593
      %v2022 = vperm.slane %v1892, %v593
      %v2023 = vperm.slane %v1895, %v593
      %v2024 = vperm.slane %v1898, %v593
      %v2025 = vperm.slane %v1901, %v593
      %v2026 = vperm.slane %v1904, %v593
      %v2027 = vperm.slane %v1907, %v593
      %v2028 = vperm.slane %v1910, %v593
      %v2029 = vperm.slane %v1913, %v593
      %v2030 = vperm.slane %v1916, %v593
      %v2031 = vperm.slane %v1919, %v593
      %v2032 = vperm.slane %v1922, %v593
      %v2033 = vperm.slane %v1925, %v593
      %v2034 = vperm.slane %v1928, %v593
      %v2035 = vperm.slane %v1931, %v593
      %v2036 = vperm.slane %v1934, %v593
      %v2037 = vperm.slane %v1937, %v593
      %v2038 = vperm.slane %v1940, %v593
      %v2039 = vperm.slane %v1943, %v593
      %v2040 = vperm.slane %v1946, %v593
      %v2041 = vperm.slane %v1949, %v593
      %v2042 = vperm.slane %v1952, %v593
      %v2043 = vperm.slane %v1955, %v593
      %v2044 = vperm.slane %v1958, %v593
      %v2045 = vperm.slane %v1961, %v593
      %v2046 = vperm.slane %v1964, %v593
      %v2047 = vperm.slane %v1967, %v593
      %v2048 = vsel %vm1610, %v2017, %v2016
      %v2049 = vsel %vm1613, %v2018, %v2048
      %v2050 = vsel %vm1616, %v2019, %v2049
      %v2051 = vsel %vm1619, %v2020, %v2050
      %v2052 = vsel %vm1622, %v2021, %v2051
      %v2053 = vsel %vm1625, %v2022, %v2052
      %vm2054 = vcmask 1047559
      %v2055 = vsel %vm2054, %v2023, %v2053
      %v2056 = vsel %vm1610, %v2025, %v2024
      %v2057 = vsel %vm1613, %v2026, %v2056
      %v2058 = vsel %vm1616, %v2027, %v2057
      %v2059 = vsel %vm1619, %v2028, %v2058
      %v2060 = vsel %vm1622, %v2029, %v2059
      %v2061 = vsel %vm1625, %v2030, %v2060
      %v2062 = vsel %vm2054, %v2031, %v2061
      %v2063 = vsel %vm1610, %v2033, %v2032
      %v2064 = vsel %vm1613, %v2034, %v2063
      %v2065 = vsel %vm1616, %v2035, %v2064
      %v2066 = vsel %vm1619, %v2036, %v2065
      %v2067 = vsel %vm1622, %v2037, %v2066
      %v2068 = vsel %vm1625, %v2038, %v2067
      %v2069 = vsel %vm2054, %v2039, %v2068
      %v2070 = vsel %vm1610, %v2041, %v2040
      %v2071 = vsel %vm1613, %v2042, %v2070
      %v2072 = vsel %vm1616, %v2043, %v2071
      %v2073 = vsel %vm1619, %v2044, %v2072
      %v2074 = vsel %vm1622, %v2045, %v2073
      %v2075 = vsel %vm1625, %v2046, %v2074
      %v2076 = vsel %vm2054, %v2047, %v2075
      %v2077 = vsel %vm121, %v2055, 0
      %v2079 = vsel %vm121, %v2062, 0
      %v2081 = vsel %vm121, %v2069, 0
      %v2083 = vsel %vm121, %v2076, 0
      %2085 = vmatpush.msra.mxu0 0.0
      %2086 = vmatpush.msra.mxu0 0.0
      %2087 = vmatpush.msra.mxu0 0.0
      %2088 = vmatpush.msra.mxu0 0.0
      %2089 = vmatpush.msra.mxu0 0.0
      %2090 = vmatpush.msra.mxu0 0.0
      %2091 = vmatpush.msra.mxu0 0.0
      %2092 = vmatpush.msra.mxu0 0.0
      %2093 = vmatpush.msra.mxu0 0.0
      %2094 = vmatpush.msra.mxu0 0.0
      %2095 = vmatpush.msra.mxu0 0.0
      %2096 = vmatpush.msra.mxu0 0.0
      %2097 = vmatpush.msra.mxu0 0.0
      %2098 = vmatpush.msra.mxu0 0.0
      %2099 = vmatpush.msra.mxu0 0.0
      %2100 = vmatpush.msra.mxu0 %v1974
      %2101 = vmatmul.f32.gmra.mxu0 %v2077
      %v2102 = vpop.f32.mrf.mxu0
      %v2103 = vadd.f32 0.0, %v2102
      %2104 = vmatmul.f32.gmra.mxu0 %v2079
      %v2105 = vpop.f32.mrf.mxu0
      %v2106 = vadd.f32 0.0, %v2105
      %2107 = vmatmul.f32.gmra.mxu0 %v2081
      %v2108 = vpop.f32.mrf.mxu0
      %v2109 = vadd.f32 0.0, %v2108
      %2110 = vmatmul.f32.gmra.mxu0 %v2083
      %v2111 = vpop.f32.mrf.mxu0
      %v2112 = vadd.f32 0.0, %v2111
      %2113 = vdwg.mxu0
      %2114 = vmatpush.msra.mxu0 0.0
      %2115 = vmatpush.msra.mxu0 0.0
      %2116 = vmatpush.msra.mxu0 0.0
      %2117 = vmatpush.msra.mxu0 0.0
      %2118 = vmatpush.msra.mxu0 0.0
      %2119 = vmatpush.msra.mxu0 0.0
      %2120 = vmatpush.msra.mxu0 0.0
      %2121 = vmatpush.msra.mxu0 0.0
      %2122 = vmatpush.msra.mxu0 0.0
      %2123 = vmatpush.msra.mxu0 0.0
      %2124 = vmatpush.msra.mxu0 0.0
      %2125 = vmatpush.msra.mxu0 0.0
      %2126 = vmatpush.msra.mxu0 0.0
      %2127 = vmatpush.msra.mxu0 0.0
      %2128 = vmatpush.msra.mxu0 0.0
      %2129 = vmatpush.msra.mxu0 %v1975
      %2130 = vmatmul.f32.gmra.mxu0 %v2077
      %v2131 = vpop.f32.mrf.mxu0
      %v2132 = vadd.f32 0.0, %v2131
      %2133 = vmatmul.f32.gmra.mxu0 %v2079
      %v2134 = vpop.f32.mrf.mxu0
      %v2135 = vadd.f32 0.0, %v2134
      %2136 = vmatmul.f32.gmra.mxu0 %v2081
      %v2137 = vpop.f32.mrf.mxu0
      %v2138 = vadd.f32 0.0, %v2137
      %2139 = vmatmul.f32.gmra.mxu0 %v2083
      %v2140 = vpop.f32.mrf.mxu0
      %v2141 = vadd.f32 0.0, %v2140
      %2142 = vdwg.mxu0
      %v2143 = vadd.f32 %v1976, %v2103
      %v2144 = vadd.f32 %v1977, %v2132
      %v2145 = vadd.f32 %v1978, %v2106
      %v2146 = vadd.f32 %v1979, %v2135
      %v2147 = vadd.f32 %v1980, %v2109
      %v2148 = vadd.f32 %v1981, %v2138
      %v2149 = vadd.f32 %v1982, %v2112
      %v2150 = vadd.f32 %v1983, %v2141
      %2151 = vst [vmem:[#allocation3] sm:$0xff] %v2143
      %2152 = vst [vmem:[#allocation3 + $0x8] sm:$0xff] %v2144
      %2153 = vst [vmem:[#allocation3 + $0x10] sm:$0xff] %v2145
      %2154 = vst [vmem:[#allocation3 + $0x18] sm:$0xff] %v2146
      %2155 = vst [vmem:[#allocation3 + $0x20] sm:$0xff] %v2147
      %2156 = vst [vmem:[#allocation3 + $0x28] sm:$0xff] %v2148
      %2157 = vst [vmem:[#allocation3 + $0x30] sm:$0xff] %v2149
      %2158 = vst [vmem:[#allocation3 + $0x38] sm:$0xff] %v2150
    $region57: #{tpu_custom_call.1} parent=1 // loop_footer
      %s1585 = sadd.s32 1, %s1581
    $region58: #{tpu_custom_call.1} parent=1 // loop_footer_branch
      %1580 = sbr.rel target = $region54
    $region59: #{tpu_custom_call.1} parent=1 // loop_exit
      _
    %v2159 = vld [vmem:[#allocation3] sm:$0xff]
    %v2160 = vld [vmem:[#allocation3 + $0x8] sm:$0xff]
    %v2161 = vld [vmem:[#allocation3 + $0x10] sm:$0xff]
    %v2162 = vld [vmem:[#allocation3 + $0x18] sm:$0xff]
    %v2163 = vld [vmem:[#allocation3 + $0x20] sm:$0xff]
    %v2164 = vld [vmem:[#allocation3 + $0x28] sm:$0xff]
    %v2165 = vld [vmem:[#allocation3 + $0x30] sm:$0xff]
    %v2166 = vld [vmem:[#allocation3 + $0x38] sm:$0xff]
    %v2167 = vmax.f32 %v1564, 0.0
    %v2168 = vmax.f32 %v1565, 0.0
    %v2169 = vmax.f32 %v1566, 0.0
    %v2170 = vmax.f32 %v1567, 0.0
    %v2171 = vmax.f32 %v1568, 0.0
    %v2172 = vmax.f32 %v1569, 0.0
    %v2173 = vmax.f32 %v1570, 0.0
    %v2174 = vmax.f32 %v1571, 0.0
    %v2175 = vpack.c.bf16 %v2168, %v2167
    %v2176 = vpack.c.bf16 %v2170, %v2169
    %v2177 = vpack.c.bf16 %v2172, %v2171
    %v2178 = vpack.c.bf16 %v2174, %v2173
    %2179 = vst [vmem:[#allocation2] sm:$0xff] %v2175
    %2180 = vst [vmem:[#allocation2 + $0x8] sm:$0xff] %v2176
    %2181 = vst [vmem:[#allocation2 + $0x10] sm:$0xff] %v2177
    %2182 = vst [vmem:[#allocation2 + $0x18] sm:$0xff] %v2178
    %v2183 = vmax.f32 %v2159, 0.0
    %v2184 = vmax.f32 %v2160, 0.0
    %v2185 = vmax.f32 %v2161, 0.0
    %v2186 = vmax.f32 %v2162, 0.0
    %v2187 = vmax.f32 %v2163, 0.0
    %v2188 = vmax.f32 %v2164, 0.0
    %v2189 = vmax.f32 %v2165, 0.0
    %v2190 = vmax.f32 %v2166, 0.0
    %v2191 = vpack.c.bf16 %v2184, %v2183
    %v2192 = vpack.c.bf16 %v2186, %v2185
    %v2193 = vpack.c.bf16 %v2188, %v2187
    %v2194 = vpack.c.bf16 %v2190, %v2189
    %2195 = vst [vmem:[#allocation2 + $0x20] sm:$0xff] %v2191
    %2196 = vst [vmem:[#allocation2 + $0x28] sm:$0xff] %v2192
    %2197 = vst [vmem:[#allocation2 + $0x30] sm:$0xff] %v2193
    %2198 = vst [vmem:[#allocation2 + $0x38] sm:$0xff] %v2194
    %v2199 = vpack.c.bf16 %v1565, %v1564
    %v2200 = vpack.c.bf16 %v1567, %v1566
    %v2201 = vpack.c.bf16 %v1569, %v1568
    %v2202 = vpack.c.bf16 %v1571, %v1570
    %2203 = vst [vmem:[#allocation2 + $0x40] sm:$0xff] %v2199
    %2204 = vst [vmem:[#allocation2 + $0x48] sm:$0xff] %v2200
    %2205 = vst [vmem:[#allocation2 + $0x50] sm:$0xff] %v2201
    %2206 = vst [vmem:[#allocation2 + $0x58] sm:$0xff] %v2202
    %v2207 = vpack.c.bf16 %v2160, %v2159
    %v2208 = vpack.c.bf16 %v2162, %v2161
    %v2209 = vpack.c.bf16 %v2164, %v2163
    %v2210 = vpack.c.bf16 %v2166, %v2165
    %2211 = vst [vmem:[#allocation2 + $0x60] sm:$0xff] %v2207
    %2212 = vst [vmem:[#allocation2 + $0x68] sm:$0xff] %v2208
    %2213 = vst [vmem:[#allocation2 + $0x70] sm:$0xff] %v2209
    %2214 = vst [vmem:[#allocation2 + $0x78] sm:$0xff] %v2210
    %s2215 = scalar_lea.vmem %s5, 64
    %v2216 = vld [vmem:[%s2215] sm:$0xf]
    %v2217 = vld [vmem:[%s2215 + $0x4] sm:$0xf]
    %v2218 = vld [vmem:[%s2215 + $0x8] sm:$0xf]
    %v2219 = vld [vmem:[%s2215 + $0xc] sm:$0xf]
    %v2220 = vld [vmem:[%s2215 + $0x10] sm:$0xf]
    %v2221 = vld [vmem:[%s2215 + $0x14] sm:$0xf]
    %v2222 = vld [vmem:[%s2215 + $0x18] sm:$0xf]
    %v2223 = vld [vmem:[%s2215 + $0x1c] sm:$0xf]
    %v2224 = vld [vmem:[#allocation2] sm:$0xff]
    %v2225 = vld [vmem:[#allocation2 + $0x8] sm:$0xff]
    %v2226 = vld [vmem:[#allocation2 + $0x10] sm:$0xff]
    %v2227 = vld [vmem:[#allocation2 + $0x18] sm:$0xff]
    %v2228 = vld [vmem:[#allocation2 + $0x20] sm:$0xff]
    %v2229 = vld [vmem:[#allocation2 + $0x28] sm:$0xff]
    %v2230 = vld [vmem:[#allocation2 + $0x30] sm:$0xff]
    %v2231 = vld [vmem:[#allocation2 + $0x38] sm:$0xff]
    %v2232 = vld [vmem:[#allocation2 + $0x40] sm:$0xff]
    %v2233 = vld [vmem:[#allocation2 + $0x48] sm:$0xff]
    %v2234 = vld [vmem:[#allocation2 + $0x50] sm:$0xff]
    %v2235 = vld [vmem:[#allocation2 + $0x58] sm:$0xff]
    %v2236 = vld [vmem:[#allocation2 + $0x60] sm:$0xff]
    %v2237 = vld [vmem:[#allocation2 + $0x68] sm:$0xff]
    %v2238 = vld [vmem:[#allocation2 + $0x70] sm:$0xff]
    %v2239 = vld [vmem:[#allocation2 + $0x78] sm:$0xff]
    %s2240 = scalar_lea.vmem %s6, 128
    %v2241 = vld [vmem:[%s2240] sm:$0xff]
    %v2242 = vld [vmem:[%s2240 + $0x8] sm:$0xff]
    %v2243 = vld [vmem:[%s2240 + $0x10] sm:$0xff]
    %v2244 = vld [vmem:[%s2240 + $0x18] sm:$0xff]
    %v2245 = vld [vmem:[%s2240 + $0x20] sm:$0xff]
    %v2246 = vld [vmem:[%s2240 + $0x28] sm:$0xff]
    %v2247 = vld [vmem:[%s2240 + $0x30] sm:$0xff]
    %v2248 = vld [vmem:[%s2240 + $0x38] sm:$0xff]
    %2250 = vset.pattern.permute.xlu0 0
    %2251 = vperm.xlu0 %2250, %v2241
    %v2252 = vpop.permute.xlu0 %2251
    %2255 = vset.pattern.permute.xlu0 0
    %2256 = vperm.xlu0 %2255, %v2242
    %v2257 = vpop.permute.xlu0 %2256
    %2260 = vset.pattern.permute.xlu0 0
    %2261 = vperm.xlu0 %2260, %v2243
    %v2262 = vpop.permute.xlu0 %2261
    %2265 = vset.pattern.permute.xlu0 0
    %2266 = vperm.xlu0 %2265, %v2244
    %v2267 = vpop.permute.xlu0 %2266
    %2270 = vset.pattern.permute.xlu0 0
    %2271 = vperm.xlu0 %2270, %v2245
    %v2272 = vpop.permute.xlu0 %2271
    %2275 = vset.pattern.permute.xlu0 0
    %2276 = vperm.xlu0 %2275, %v2246
    %v2277 = vpop.permute.xlu0 %2276
    %2280 = vset.pattern.permute.xlu0 0
    %2281 = vperm.xlu0 %2280, %v2247
    %v2282 = vpop.permute.xlu0 %2281
    %2285 = vset.pattern.permute.xlu0 0
    %2286 = vperm.xlu0 %2285, %v2248
    %v2287 = vpop.permute.xlu0 %2286
    %v2297 = vunpack.c.l.b16 %v2216
    %v2298 = vunpack.c.l.b16 %v2217
    %v2299 = vunpack.c.l.b16 %v2218
    %v2300 = vunpack.c.l.b16 %v2219
    %v2301 = vunpack.c.l.b16 %v2220
    %v2302 = vunpack.c.l.b16 %v2221
    %v2303 = vunpack.c.l.b16 %v2222
    %v2304 = vunpack.c.l.b16 %v2223
    %v2305 = vpack.c.b16 %v2298, %v2297
    %v2306 = vpack.c.b16 %v2300, %v2299
    %v2307 = vpack.c.b16 %v2302, %v2301
    %v2308 = vpack.c.b16 %v2304, %v2303
    %v2329 = vunpack.c.l.b16 %v2224
    %v2330 = vunpack.c.h.b16 %v2224
    %v2331 = vunpack.c.l.b16 %v2225
    %v2332 = vunpack.c.h.b16 %v2225
    %v2333 = vunpack.c.l.b16 %v2226
    %v2334 = vunpack.c.h.b16 %v2226
    %v2335 = vunpack.c.l.b16 %v2227
    %v2336 = vunpack.c.h.b16 %v2227
    %v2337 = vunpack.c.l.b16 %v2228
    %v2338 = vunpack.c.h.b16 %v2228
    %v2339 = vunpack.c.l.b16 %v2229
    %v2340 = vunpack.c.h.b16 %v2229
    %v2341 = vunpack.c.l.b16 %v2230
    %v2342 = vunpack.c.h.b16 %v2230
    %v2343 = vunpack.c.l.b16 %v2231
    %v2344 = vunpack.c.h.b16 %v2231
    %v2345 = vunpack.c.l.b16 %v2232
    %v2346 = vunpack.c.h.b16 %v2232
    %v2347 = vunpack.c.l.b16 %v2233
    %v2348 = vunpack.c.h.b16 %v2233
    %v2349 = vunpack.c.l.b16 %v2234
    %v2350 = vunpack.c.h.b16 %v2234
    %v2351 = vunpack.c.l.b16 %v2235
    %v2352 = vunpack.c.h.b16 %v2235
    %v2353 = vunpack.c.l.b16 %v2236
    %v2354 = vunpack.c.h.b16 %v2236
    %v2355 = vunpack.c.l.b16 %v2237
    %v2356 = vunpack.c.h.b16 %v2237
    %v2357 = vunpack.c.l.b16 %v2238
    %v2358 = vunpack.c.h.b16 %v2238
    %v2359 = vunpack.c.l.b16 %v2239
    %v2360 = vunpack.c.h.b16 %v2239
    %v2361 = vpack.c.b16 %v2331, %v2329
    %v2362 = vpack.c.b16 %v2332, %v2330
    %v2363 = vpack.c.b16 %v2335, %v2333
    %v2364 = vpack.c.b16 %v2336, %v2334
    %v2365 = vpack.c.b16 %v2339, %v2337
    %v2366 = vpack.c.b16 %v2340, %v2338
    %v2367 = vpack.c.b16 %v2343, %v2341
    %v2368 = vpack.c.b16 %v2344, %v2342
    %v2369 = vpack.c.b16 %v2347, %v2345
    %v2370 = vpack.c.b16 %v2348, %v2346
    %v2371 = vpack.c.b16 %v2351, %v2349
    %v2372 = vpack.c.b16 %v2352, %v2350
    %v2373 = vpack.c.b16 %v2355, %v2353
    %v2374 = vpack.c.b16 %v2356, %v2354
    %v2375 = vpack.c.b16 %v2359, %v2357
    %v2376 = vpack.c.b16 %v2360, %v2358
    %2393 = vmatpush.bf16.msra.mxu0 %v2375
    %2394 = vmatpush.bf16.msra.mxu0 %v2373
    %2395 = vmatpush.bf16.msra.mxu0 %v2371
    %2396 = vmatpush.bf16.msra.mxu0 %v2369
    %2397 = vmatpush.bf16.msra.mxu0 %v2367
    %2398 = vmatpush.bf16.msra.mxu0 %v2365
    %2399 = vmatpush.bf16.msra.mxu0 %v2363
    %2400 = vmatpush.bf16.msra.mxu0 %v2361
    %2401 = vmatmul.bf16.gmra.mxu0 %v2305
    %v2402 = vpop.f32.mrf.mxu0
    %v2403 = vadd.f32 %v2252, %v2402
    %v2404 = vpop.f32.mrf.mxu0
    %v2405 = vadd.f32 %v2257, %v2404
    %2406 = vmatmul.bf16.gmra.mxu0 %v2306
    %v2407 = vpop.f32.mrf.mxu0
    %v2408 = vadd.f32 %v2262, %v2407
    %v2409 = vpop.f32.mrf.mxu0
    %v2410 = vadd.f32 %v2267, %v2409
    %2411 = vmatmul.bf16.gmra.mxu0 %v2307
    %v2412 = vpop.f32.mrf.mxu0
    %v2413 = vadd.f32 %v2272, %v2412
    %v2414 = vpop.f32.mrf.mxu0
    %v2415 = vadd.f32 %v2277, %v2414
    %2416 = vmatmul.bf16.gmra.mxu0 %v2308
    %v2417 = vpop.f32.mrf.mxu0
    %v2418 = vadd.f32 %v2282, %v2417
    %v2419 = vpop.f32.mrf.mxu0
    %v2420 = vadd.f32 %v2287, %v2419
    %2421 = vdwg.mxu0
    %2422 = vmatpush.bf16.msra.mxu0 %v2376
    %2423 = vmatpush.bf16.msra.mxu0 %v2374
    %2424 = vmatpush.bf16.msra.mxu0 %v2372
    %2425 = vmatpush.bf16.msra.mxu0 %v2370
    %2426 = vmatpush.bf16.msra.mxu0 %v2368
    %2427 = vmatpush.bf16.msra.mxu0 %v2366
    %2428 = vmatpush.bf16.msra.mxu0 %v2364
    %2429 = vmatpush.bf16.msra.mxu0 %v2362
    %2430 = vmatmul.bf16.gmra.mxu0 %v2305
    %v2431 = vpop.f32.mrf.mxu0
    %v2432 = vadd.f32 %v2252, %v2431
    %v2433 = vpop.f32.mrf.mxu0
    %v2434 = vadd.f32 %v2257, %v2433
    %2435 = vmatmul.bf16.gmra.mxu0 %v2306
    %v2436 = vpop.f32.mrf.mxu0
    %v2437 = vadd.f32 %v2262, %v2436
    %v2438 = vpop.f32.mrf.mxu0
    %v2439 = vadd.f32 %v2267, %v2438
    %2440 = vmatmul.bf16.gmra.mxu0 %v2307
    %v2441 = vpop.f32.mrf.mxu0
    %v2442 = vadd.f32 %v2272, %v2441
    %v2443 = vpop.f32.mrf.mxu0
    %v2444 = vadd.f32 %v2277, %v2443
    %2445 = vmatmul.bf16.gmra.mxu0 %v2308
    %v2446 = vpop.f32.mrf.mxu0
    %v2447 = vadd.f32 %v2282, %v2446
    %v2448 = vpop.f32.mrf.mxu0
    %v2449 = vadd.f32 %v2287, %v2448
    %2450 = vdwg.mxu0
    %s2451 = scalar_lea.vmem %s7, 32
    %v2452 = vld [vmem:[%s2451] sm:$0xf]
    %v2453 = vld [vmem:[%s2451 + $0x4] sm:$0xf]
    %v2454 = vld [vmem:[%s2451 + $0x8] sm:$0xf]
    %v2455 = vld [vmem:[%s2451 + $0xc] sm:$0xf]
    %v2456 = vmax.f32 %v2403, 0.0
    %v2457 = vmax.f32 %v2432, 0.0
    %v2458 = vmax.f32 %v2405, 0.0
    %v2459 = vmax.f32 %v2434, 0.0
    %v2460 = vmax.f32 %v2408, 0.0
    %v2461 = vmax.f32 %v2437, 0.0
    %v2462 = vmax.f32 %v2410, 0.0
    %v2463 = vmax.f32 %v2439, 0.0
    %v2464 = vpack.c.bf16 %v2458, %v2456
    %v2465 = vpack.c.bf16 %v2459, %v2457
    %v2466 = vpack.c.bf16 %v2462, %v2460
    %v2467 = vpack.c.bf16 %v2463, %v2461
    %s2468 = scalar_lea.vmem %s8, 64
    %v2469 = vld [vmem:[%s2468] sm:$0xff]
    %v2470 = vld [vmem:[%s2468 + $0x8] sm:$0xff]
    %v2471 = vld [vmem:[%s2468 + $0x10] sm:$0xff]
    %v2472 = vld [vmem:[%s2468 + $0x18] sm:$0xff]
    %2474 = vset.pattern.permute.xlu0 0
    %2475 = vperm.xlu0 %2474, %v2469
    %v2476 = vpop.permute.xlu0 %2475
    %2479 = vset.pattern.permute.xlu0 0
    %2480 = vperm.xlu0 %2479, %v2470
    %v2481 = vpop.permute.xlu0 %2480
    %2484 = vset.pattern.permute.xlu0 0
    %2485 = vperm.xlu0 %2484, %v2471
    %v2486 = vpop.permute.xlu0 %2485
    %2489 = vset.pattern.permute.xlu0 0
    %2490 = vperm.xlu0 %2489, %v2472
    %v2491 = vpop.permute.xlu0 %2490
    %v2497 = vunpack.c.l.b16 %v2452
    %v2498 = vunpack.c.l.b16 %v2453
    %v2499 = vunpack.c.l.b16 %v2454
    %v2500 = vunpack.c.l.b16 %v2455
    %v2501 = vpack.c.b16 %v2498, %v2497
    %v2502 = vpack.c.b16 %v2500, %v2499
    %v2504 = vsel %vm531, %v2501, 0
    %v2507 = vsel %vm531, %v2502, 0
    %2509 = vmatpush.bf16.msra.mxu0 0
    %2510 = vmatpush.bf16.msra.mxu0 0
    %2511 = vmatpush.bf16.msra.mxu0 0
    %2512 = vmatpush.bf16.msra.mxu0 0
    %2513 = vmatpush.bf16.msra.mxu0 0
    %2514 = vmatpush.bf16.msra.mxu0 0
    %2515 = vmatpush.bf16.msra.mxu0 %v2466
    %2516 = vmatpush.bf16.msra.mxu0 %v2464
    %2517 = vmatmul.bf16.gmra.mxu0 %v2504
    %v2518 = vpop.f32.mrf.mxu0
    %v2519 = vadd.f32 %v2476, %v2518
    %v2520 = vpop.f32.mrf.mxu0
    %v2521 = vadd.f32 %v2481, %v2520
    %2522 = vmatmul.bf16.gmra.mxu0 %v2507
    %v2523 = vpop.f32.mrf.mxu0
    %v2524 = vadd.f32 %v2486, %v2523
    %v2525 = vpop.f32.mrf.mxu0
    %v2526 = vadd.f32 %v2491, %v2525
    %2527 = vdwg.mxu0
    %2528 = vmatpush.bf16.msra.mxu0 0
    %2529 = vmatpush.bf16.msra.mxu0 0
    %2530 = vmatpush.bf16.msra.mxu0 0
    %2531 = vmatpush.bf16.msra.mxu0 0
    %2532 = vmatpush.bf16.msra.mxu0 0
    %2533 = vmatpush.bf16.msra.mxu0 0
    %2534 = vmatpush.bf16.msra.mxu0 %v2467
    %2535 = vmatpush.bf16.msra.mxu0 %v2465
    %2536 = vmatmul.bf16.gmra.mxu0 %v2504
    %v2537 = vpop.f32.mrf.mxu0
    %v2538 = vadd.f32 %v2476, %v2537
    %v2539 = vpop.f32.mrf.mxu0
    %v2540 = vadd.f32 %v2481, %v2539
    %2541 = vmatmul.bf16.gmra.mxu0 %v2507
    %v2542 = vpop.f32.mrf.mxu0
    %v2543 = vadd.f32 %v2486, %v2542
    %v2544 = vpop.f32.mrf.mxu0
    %v2545 = vadd.f32 %v2491, %v2544
    %2546 = vdwg.mxu0
    %v2547 = vadd.f32 %v2413, %v2519
    %v2548 = vadd.f32 %v2442, %v2538
    %v2549 = vadd.f32 %v2415, %v2521
    %v2550 = vadd.f32 %v2444, %v2540
    %v2551 = vadd.f32 %v2418, %v2524
    %v2552 = vadd.f32 %v2447, %v2543
    %v2553 = vadd.f32 %v2420, %v2526
    %v2554 = vadd.f32 %v2449, %v2545
    %v2555 = vld [vmem:[%s9] sm:$0xf]
    %v2556 = vld [vmem:[%s9 + $0x4] sm:$0xf]
    %v2557 = vld [vmem:[%s9 + $0x8] sm:$0xf]
    %v2558 = vld [vmem:[%s9 + $0xc] sm:$0xf]
    %v2559 = vld [vmem:[%s9 + $0x10] sm:$0xf]
    %v2560 = vpack.c.bf16 %v2549, %v2547
    %v2561 = vpack.c.bf16 %v2550, %v2548
    %v2562 = vpack.c.bf16 %v2553, %v2551
    %v2563 = vpack.c.bf16 %v2554, %v2552
    %v2564 = vld [vmem:[%s10] sm:$0xff]
    %v2565 = vld [vmem:[%s10 + $0x8] sm:$0xff]
    %v2566 = vld [vmem:[%s10 + $0x10] sm:$0xff]
    %v2567 = vld [vmem:[%s10 + $0x18] sm:$0xff]
    %v2568 = vld [vmem:[%s10 + $0x20] sm:$0xff]
    %2570 = vset.pattern.permute.xlu0 0
    %2571 = vperm.xlu0 %2570, %v2564
    %v2572 = vpop.permute.xlu0 %2571
    %2575 = vset.pattern.permute.xlu0 0
    %2576 = vperm.xlu0 %2575, %v2565
    %v2577 = vpop.permute.xlu0 %2576
    %2580 = vset.pattern.permute.xlu0 0
    %2581 = vperm.xlu0 %2580, %v2566
    %v2582 = vpop.permute.xlu0 %2581
    %2585 = vset.pattern.permute.xlu0 0
    %2586 = vperm.xlu0 %2585, %v2567
    %v2587 = vpop.permute.xlu0 %2586
    %2590 = vset.pattern.permute.xlu0 0
    %2591 = vperm.xlu0 %2590, %v2568
    %v2592 = vpop.permute.xlu0 %2591
    %v2599 = vunpack.c.l.b16 %v2555
    %v2600 = vunpack.c.l.b16 %v2556
    %v2601 = vunpack.c.l.b16 %v2557
    %v2602 = vunpack.c.l.b16 %v2558
    %v2603 = vunpack.c.l.b16 %v2559
    %v2604 = vpack.c.b16 %v2600, %v2599
    %v2605 = vpack.c.b16 %v2602, %v2601
    %v2606 = vpack.c.b16 %v2603, %v2603
    %v2608 = vsel %vm531, %v2604, 0
    %v2611 = vsel %vm531, %v2605, 0
    %v2614 = vsel %vm531, %v2606, 0
    %2616 = vmatpush.bf16.msra.mxu0 0
    %2617 = vmatpush.bf16.msra.mxu0 0
    %2618 = vmatpush.bf16.msra.mxu0 0
    %2619 = vmatpush.bf16.msra.mxu0 0
    %2620 = vmatpush.bf16.msra.mxu0 0
    %2621 = vmatpush.bf16.msra.mxu0 0
    %2622 = vmatpush.bf16.msra.mxu0 %v2562
    %2623 = vmatpush.bf16.msra.mxu0 %v2560
    %2624 = vmatmul.bf16.gmra.mxu0 %v2608
    %v2625 = vpop.f32.mrf.mxu0
    %v2626 = vadd.f32 %v2572, %v2625
    %v2627 = vpop.f32.mrf.mxu0
    %v2628 = vadd.f32 %v2577, %v2627
    %2629 = vmatmul.bf16.gmra.mxu0 %v2611
    %v2630 = vpop.f32.mrf.mxu0
    %v2631 = vadd.f32 %v2582, %v2630
    %v2632 = vpop.f32.mrf.mxu0
    %v2633 = vadd.f32 %v2587, %v2632
    %2634 = vmatmul.bf16.gmra.mxu0 %v2614
    %v2635 = vpop.f32.mrf.mxu0
    %v2636 = vadd.f32 %v2592, %v2635
    %v2637 = vpop.f32.mrf.mxu0
    %2638 = vdwg.mxu0
    %2639 = vmatpush.bf16.msra.mxu0 0
    %2640 = vmatpush.bf16.msra.mxu0 0
    %2641 = vmatpush.bf16.msra.mxu0 0
    %2642 = vmatpush.bf16.msra.mxu0 0
    %2643 = vmatpush.bf16.msra.mxu0 0
    %2644 = vmatpush.bf16.msra.mxu0 0
    %2645 = vmatpush.bf16.msra.mxu0 %v2563
    %2646 = vmatpush.bf16.msra.mxu0 %v2561
    %2647 = vmatmul.bf16.gmra.mxu0 %v2608
    %v2648 = vpop.f32.mrf.mxu0
    %v2649 = vadd.f32 %v2572, %v2648
    %v2650 = vpop.f32.mrf.mxu0
    %v2651 = vadd.f32 %v2577, %v2650
    %2652 = vmatmul.bf16.gmra.mxu0 %v2611
    %v2653 = vpop.f32.mrf.mxu0
    %v2654 = vadd.f32 %v2582, %v2653
    %v2655 = vpop.f32.mrf.mxu0
    %v2656 = vadd.f32 %v2587, %v2655
    %2657 = vmatmul.bf16.gmra.mxu0 %v2614
    %v2658 = vpop.f32.mrf.mxu0
    %v2659 = vadd.f32 %v2592, %v2658
    %v2660 = vpop.f32.mrf.mxu0
    %2661 = vdwg.mxu0
    %v2662 = vadd.s32 %v593, 256
    %v2663 = vadd.s32 %v593, 384
    %s2664 = smul.u32 0, 2
    %v2665 = vld [vmem:[%s2] sm:$0xff]
    %v2666 = vld [vmem:[%s2 + $0x8] sm:$0xff]
    %v2667 = vld [vmem:[%s2 + $0x10] sm:$0xff]
    %v2668 = vld [vmem:[%s2 + $0x18] sm:$0xff]
    %v2669 = vld [vmem:[%s2 + $0x20] sm:$0xff]
    %v2670 = vld [vmem:[%s2 + $0x28] sm:$0xff]
    %v2671 = vld [vmem:[%s2 + $0x30] sm:$0xff]
    %v2672 = vld [vmem:[%s2 + $0x38] sm:$0xff]
    %v2673 = vld [vmem:[%s2 + $0x40] sm:$0xff]
    %v2674 = vld [vmem:[%s2 + $0x48] sm:$0xff]
    %v2675 = vld [vmem:[%s2 + $0x50] sm:$0xff]
    %v2676 = vld [vmem:[%s2 + $0x58] sm:$0xff]
    %v2677 = vld [vmem:[%s2 + $0x60] sm:$0xff]
    %v2678 = vld [vmem:[%s2 + $0x68] sm:$0xff]
    %v2679 = vld [vmem:[%s2 + $0x70] sm:$0xff]
    %v2680 = vld [vmem:[%s2 + $0x78] sm:$0xff]
    %s2681 = smul.u32 0, 1024
    %v2682 = vstv %s2681
    %v2683 = vadd.s32 %v593, %v2682
    %v2684 = vadd.s32 %v594, %v2682
    %v2685 = vadd.s32 %v2662, %v2682
    %v2686 = vadd.s32 %v2663, %v2682
    %2687 = vset.pattern.permute.xlu0 0
    %2688 = vperm.xlu0 %2687, %v2665
    %v2689 = vpop.permute.xlu0 %2688
    %2690 = vset.pattern.permute.xlu0 0
    %2691 = vperm.xlu0 %2690, %v2666
    %v2692 = vpop.permute.xlu0 %2691
    %2693 = vset.pattern.permute.xlu0 0
    %2694 = vperm.xlu0 %2693, %v2667
    %v2695 = vpop.permute.xlu0 %2694
    %2696 = vset.pattern.permute.xlu0 0
    %2697 = vperm.xlu0 %2696, %v2668
    %v2698 = vpop.permute.xlu0 %2697
    %2699 = vset.pattern.permute.xlu0 0
    %2700 = vperm.xlu0 %2699, %v2669
    %v2701 = vpop.permute.xlu0 %2700
    %2702 = vset.pattern.permute.xlu0 0
    %2703 = vperm.xlu0 %2702, %v2670
    %v2704 = vpop.permute.xlu0 %2703
    %2705 = vset.pattern.permute.xlu0 0
    %2706 = vperm.xlu0 %2705, %v2671
    %v2707 = vpop.permute.xlu0 %2706
    %2708 = vset.pattern.permute.xlu0 0
    %2709 = vperm.xlu0 %2708, %v2672
    %v2710 = vpop.permute.xlu0 %2709
    %2711 = vset.pattern.permute.xlu0 0
    %2712 = vperm.xlu0 %2711, %v2673
    %v2713 = vpop.permute.xlu0 %2712
    %2714 = vset.pattern.permute.xlu0 0
    %2715 = vperm.xlu0 %2714, %v2674
    %v2716 = vpop.permute.xlu0 %2715
    %2717 = vset.pattern.permute.xlu0 0
    %2718 = vperm.xlu0 %2717, %v2675
    %v2719 = vpop.permute.xlu0 %2718
    %2720 = vset.pattern.permute.xlu0 0
    %2721 = vperm.xlu0 %2720, %v2676
    %v2722 = vpop.permute.xlu0 %2721
    %2723 = vset.pattern.permute.xlu0 0
    %2724 = vperm.xlu0 %2723, %v2677
    %v2725 = vpop.permute.xlu0 %2724
    %2726 = vset.pattern.permute.xlu0 0
    %2727 = vperm.xlu0 %2726, %v2678
    %v2728 = vpop.permute.xlu0 %2727
    %2729 = vset.pattern.permute.xlu0 0
    %2730 = vperm.xlu0 %2729, %v2679
    %v2731 = vpop.permute.xlu0 %2730
    %2732 = vset.pattern.permute.xlu0 0
    %2733 = vperm.xlu0 %2732, %v2680
    %v2734 = vpop.permute.xlu0 %2733
    %vm2735 = vcmp.eq.s32.totalorder %v2689, %v2683
    %vm2736 = vcmp.eq.s32.totalorder %v2689, %v2684
    %vm2737 = vcmp.eq.s32.totalorder %v2689, %v2685
    %vm2738 = vcmp.eq.s32.totalorder %v2689, %v2686
    %vm2739 = vcmp.eq.s32.totalorder %v2692, %v2683
    %vm2740 = vcmp.eq.s32.totalorder %v2692, %v2684
    %vm2741 = vcmp.eq.s32.totalorder %v2692, %v2685
    %vm2742 = vcmp.eq.s32.totalorder %v2692, %v2686
    %vm2743 = vcmp.eq.s32.totalorder %v2695, %v2683
    %vm2744 = vcmp.eq.s32.totalorder %v2695, %v2684
    %vm2745 = vcmp.eq.s32.totalorder %v2695, %v2685
    %vm2746 = vcmp.eq.s32.totalorder %v2695, %v2686
    %vm2747 = vcmp.eq.s32.totalorder %v2698, %v2683
    %vm2748 = vcmp.eq.s32.totalorder %v2698, %v2684
    %vm2749 = vcmp.eq.s32.totalorder %v2698, %v2685
    %vm2750 = vcmp.eq.s32.totalorder %v2698, %v2686
    %vm2751 = vcmp.eq.s32.totalorder %v2701, %v2683
    %vm2752 = vcmp.eq.s32.totalorder %v2701, %v2684
    %vm2753 = vcmp.eq.s32.totalorder %v2701, %v2685
    %vm2754 = vcmp.eq.s32.totalorder %v2701, %v2686
    %vm2755 = vcmp.eq.s32.totalorder %v2704, %v2683
    %vm2756 = vcmp.eq.s32.totalorder %v2704, %v2684
    %vm2757 = vcmp.eq.s32.totalorder %v2704, %v2685
    %vm2758 = vcmp.eq.s32.totalorder %v2704, %v2686
    %vm2759 = vcmp.eq.s32.totalorder %v2707, %v2683
    %vm2760 = vcmp.eq.s32.totalorder %v2707, %v2684
    %vm2761 = vcmp.eq.s32.totalorder %v2707, %v2685
    %vm2762 = vcmp.eq.s32.totalorder %v2707, %v2686
    %vm2763 = vcmp.eq.s32.totalorder %v2710, %v2683
    %vm2764 = vcmp.eq.s32.totalorder %v2710, %v2684
    %vm2765 = vcmp.eq.s32.totalorder %v2710, %v2685
    %vm2766 = vcmp.eq.s32.totalorder %v2710, %v2686
    %vm2767 = vcmp.eq.s32.totalorder %v2713, %v2683
    %vm2768 = vcmp.eq.s32.totalorder %v2713, %v2684
    %vm2769 = vcmp.eq.s32.totalorder %v2713, %v2685
    %vm2770 = vcmp.eq.s32.totalorder %v2713, %v2686
    %vm2771 = vcmp.eq.s32.totalorder %v2716, %v2683
    %vm2772 = vcmp.eq.s32.totalorder %v2716, %v2684
    %vm2773 = vcmp.eq.s32.totalorder %v2716, %v2685
    %vm2774 = vcmp.eq.s32.totalorder %v2716, %v2686
    %vm2775 = vcmp.eq.s32.totalorder %v2719, %v2683
    %vm2776 = vcmp.eq.s32.totalorder %v2719, %v2684
    %vm2777 = vcmp.eq.s32.totalorder %v2719, %v2685
    %vm2778 = vcmp.eq.s32.totalorder %v2719, %v2686
    %vm2779 = vcmp.eq.s32.totalorder %v2722, %v2683
    %vm2780 = vcmp.eq.s32.totalorder %v2722, %v2684
    %vm2781 = vcmp.eq.s32.totalorder %v2722, %v2685
    %vm2782 = vcmp.eq.s32.totalorder %v2722, %v2686
    %vm2783 = vcmp.eq.s32.totalorder %v2725, %v2683
    %vm2784 = vcmp.eq.s32.totalorder %v2725, %v2684
    %vm2785 = vcmp.eq.s32.totalorder %v2725, %v2685
    %vm2786 = vcmp.eq.s32.totalorder %v2725, %v2686
    %vm2787 = vcmp.eq.s32.totalorder %v2728, %v2683
    %vm2788 = vcmp.eq.s32.totalorder %v2728, %v2684
    %vm2789 = vcmp.eq.s32.totalorder %v2728, %v2685
    %vm2790 = vcmp.eq.s32.totalorder %v2728, %v2686
    %vm2791 = vcmp.eq.s32.totalorder %v2731, %v2683
    %vm2792 = vcmp.eq.s32.totalorder %v2731, %v2684
    %vm2793 = vcmp.eq.s32.totalorder %v2731, %v2685
    %vm2794 = vcmp.eq.s32.totalorder %v2731, %v2686
    %vm2795 = vcmp.eq.s32.totalorder %v2734, %v2683
    %vm2796 = vcmp.eq.s32.totalorder %v2734, %v2684
    %vm2797 = vcmp.eq.s32.totalorder %v2734, %v2685
    %vm2798 = vcmp.eq.s32.totalorder %v2734, %v2686
    %v2799 = vsel %vm2735, 1, 0
    %v2800 = vsel %vm2736, 1, 0
    %v2801 = vsel %vm2737, 1, 0
    %v2802 = vsel %vm2738, 1, 0
    %v2803 = vsel %vm2739, 1, 0
    %v2804 = vsel %vm2740, 1, 0
    %v2805 = vsel %vm2741, 1, 0
    %v2806 = vsel %vm2742, 1, 0
    %v2807 = vsel %vm2743, 1, 0
    %v2808 = vsel %vm2744, 1, 0
    %v2809 = vsel %vm2745, 1, 0
    %v2810 = vsel %vm2746, 1, 0
    %v2811 = vsel %vm2747, 1, 0
    %v2812 = vsel %vm2748, 1, 0
    %v2813 = vsel %vm2749, 1, 0
    %v2814 = vsel %vm2750, 1, 0
    %v2815 = vsel %vm2751, 1, 0
    %v2816 = vsel %vm2752, 1, 0
    %v2817 = vsel %vm2753, 1, 0
    %v2818 = vsel %vm2754, 1, 0
    %v2819 = vsel %vm2755, 1, 0
    %v2820 = vsel %vm2756, 1, 0
    %v2821 = vsel %vm2757, 1, 0
    %v2822 = vsel %vm2758, 1, 0
    %v2823 = vsel %vm2759, 1, 0
    %v2824 = vsel %vm2760, 1, 0
    %v2825 = vsel %vm2761, 1, 0
    %v2826 = vsel %vm2762, 1, 0
    %v2827 = vsel %vm2763, 1, 0
    %v2828 = vsel %vm2764, 1, 0
    %v2829 = vsel %vm2765, 1, 0
    %v2830 = vsel %vm2766, 1, 0
    %v2831 = vsel %vm2767, 1, 0
    %v2832 = vsel %vm2768, 1, 0
    %v2833 = vsel %vm2769, 1, 0
    %v2834 = vsel %vm2770, 1, 0
    %v2835 = vsel %vm2771, 1, 0
    %v2836 = vsel %vm2772, 1, 0
    %v2837 = vsel %vm2773, 1, 0
    %v2838 = vsel %vm2774, 1, 0
    %v2839 = vsel %vm2775, 1, 0
    %v2840 = vsel %vm2776, 1, 0
    %v2841 = vsel %vm2777, 1, 0
    %v2842 = vsel %vm2778, 1, 0
    %v2843 = vsel %vm2779, 1, 0
    %v2844 = vsel %vm2780, 1, 0
    %v2845 = vsel %vm2781, 1, 0
    %v2846 = vsel %vm2782, 1, 0
    %v2847 = vsel %vm2783, 1, 0
    %v2848 = vsel %vm2784, 1, 0
    %v2849 = vsel %vm2785, 1, 0
    %v2850 = vsel %vm2786, 1, 0
    %v2851 = vsel %vm2787, 1, 0
    %v2852 = vsel %vm2788, 1, 0
    %v2853 = vsel %vm2789, 1, 0
    %v2854 = vsel %vm2790, 1, 0
    %v2855 = vsel %vm2791, 1, 0
    %v2856 = vsel %vm2792, 1, 0
    %v2857 = vsel %vm2793, 1, 0
    %v2858 = vsel %vm2794, 1, 0
    %v2859 = vsel %vm2795, 1, 0
    %v2860 = vsel %vm2796, 1, 0
    %v2861 = vsel %vm2797, 1, 0
    %v2862 = vsel %vm2798, 1, 0
    %v2863 = vcvt.s32.f32 %v2799
    %v2864 = vcvt.s32.f32 %v2800
    %v2865 = vcvt.s32.f32 %v2801
    %v2866 = vcvt.s32.f32 %v2802
    %v2867 = vcvt.s32.f32 %v2803
    %v2868 = vcvt.s32.f32 %v2804
    %v2869 = vcvt.s32.f32 %v2805
    %v2870 = vcvt.s32.f32 %v2806
    %v2871 = vcvt.s32.f32 %v2807
    %v2872 = vcvt.s32.f32 %v2808
    %v2873 = vcvt.s32.f32 %v2809
    %v2874 = vcvt.s32.f32 %v2810
    %v2875 = vcvt.s32.f32 %v2811
    %v2876 = vcvt.s32.f32 %v2812
    %v2877 = vcvt.s32.f32 %v2813
    %v2878 = vcvt.s32.f32 %v2814
    %v2879 = vcvt.s32.f32 %v2815
    %v2880 = vcvt.s32.f32 %v2816
    %v2881 = vcvt.s32.f32 %v2817
    %v2882 = vcvt.s32.f32 %v2818
    %v2883 = vcvt.s32.f32 %v2819
    %v2884 = vcvt.s32.f32 %v2820
    %v2885 = vcvt.s32.f32 %v2821
    %v2886 = vcvt.s32.f32 %v2822
    %v2887 = vcvt.s32.f32 %v2823
    %v2888 = vcvt.s32.f32 %v2824
    %v2889 = vcvt.s32.f32 %v2825
    %v2890 = vcvt.s32.f32 %v2826
    %v2891 = vcvt.s32.f32 %v2827
    %v2892 = vcvt.s32.f32 %v2828
    %v2893 = vcvt.s32.f32 %v2829
    %v2894 = vcvt.s32.f32 %v2830
    %v2895 = vcvt.s32.f32 %v2831
    %v2896 = vcvt.s32.f32 %v2832
    %v2897 = vcvt.s32.f32 %v2833
    %v2898 = vcvt.s32.f32 %v2834
    %v2899 = vcvt.s32.f32 %v2835
    %v2900 = vcvt.s32.f32 %v2836
    %v2901 = vcvt.s32.f32 %v2837
    %v2902 = vcvt.s32.f32 %v2838
    %v2903 = vcvt.s32.f32 %v2839
    %v2904 = vcvt.s32.f32 %v2840
    %v2905 = vcvt.s32.f32 %v2841
    %v2906 = vcvt.s32.f32 %v2842
    %v2907 = vcvt.s32.f32 %v2843
    %v2908 = vcvt.s32.f32 %v2844
    %v2909 = vcvt.s32.f32 %v2845
    %v2910 = vcvt.s32.f32 %v2846
    %v2911 = vcvt.s32.f32 %v2847
    %v2912 = vcvt.s32.f32 %v2848
    %v2913 = vcvt.s32.f32 %v2849
    %v2914 = vcvt.s32.f32 %v2850
    %v2915 = vcvt.s32.f32 %v2851
    %v2916 = vcvt.s32.f32 %v2852
    %v2917 = vcvt.s32.f32 %v2853
    %v2918 = vcvt.s32.f32 %v2854
    %v2919 = vcvt.s32.f32 %v2855
    %v2920 = vcvt.s32.f32 %v2856
    %v2921 = vcvt.s32.f32 %v2857
    %v2922 = vcvt.s32.f32 %v2858
    %v2923 = vcvt.s32.f32 %v2859
    %v2924 = vcvt.s32.f32 %v2860
    %v2925 = vcvt.s32.f32 %v2861
    %v2926 = vcvt.s32.f32 %v2862
    %v2927 = vpack.c.bf16 %v2867, %v2863
    %v2928 = vpack.c.bf16 %v2868, %v2864
    %v2929 = vpack.c.bf16 %v2869, %v2865
    %v2930 = vpack.c.bf16 %v2870, %v2866
    %v2931 = vpack.c.bf16 %v2875, %v2871
    %v2932 = vpack.c.bf16 %v2876, %v2872
    %v2933 = vpack.c.bf16 %v2877, %v2873
    %v2934 = vpack.c.bf16 %v2878, %v2874
    %v2935 = vpack.c.bf16 %v2883, %v2879
    %v2936 = vpack.c.bf16 %v2884, %v2880
    %v2937 = vpack.c.bf16 %v2885, %v2881
    %v2938 = vpack.c.bf16 %v2886, %v2882
    %v2939 = vpack.c.bf16 %v2891, %v2887
    %v2940 = vpack.c.bf16 %v2892, %v2888
    %v2941 = vpack.c.bf16 %v2893, %v2889
    %v2942 = vpack.c.bf16 %v2894, %v2890
    %v2943 = vpack.c.bf16 %v2899, %v2895
    %v2944 = vpack.c.bf16 %v2900, %v2896
    %v2945 = vpack.c.bf16 %v2901, %v2897
    %v2946 = vpack.c.bf16 %v2902, %v2898
    %v2947 = vpack.c.bf16 %v2907, %v2903
    %v2948 = vpack.c.bf16 %v2908, %v2904
    %v2949 = vpack.c.bf16 %v2909, %v2905
    %v2950 = vpack.c.bf16 %v2910, %v2906
    %v2951 = vpack.c.bf16 %v2915, %v2911
    %v2952 = vpack.c.bf16 %v2916, %v2912
    %v2953 = vpack.c.bf16 %v2917, %v2913
    %v2954 = vpack.c.bf16 %v2918, %v2914
    %v2955 = vpack.c.bf16 %v2923, %v2919
    %v2956 = vpack.c.bf16 %v2924, %v2920
    %v2957 = vpack.c.bf16 %v2925, %v2921
    %v2958 = vpack.c.bf16 %v2926, %v2922
    %v2959 = vpack.c.bf16 %v2628, %v2626
    %v2960 = vpack.c.bf16 %v2633, %v2631
    %v2961 = vpack.c.bf16 %v2636, %v2636
    %2962 = vmatpush.bf16.msra.mxu0 %v2955
    %2963 = vmatpush.bf16.msra.mxu0 %v2951
    %2964 = vmatpush.bf16.msra.mxu0 %v2947
    %2965 = vmatpush.bf16.msra.mxu0 %v2943
    %2966 = vmatpush.bf16.msra.mxu0 %v2939
    %2967 = vmatpush.bf16.msra.mxu0 %v2935
    %2968 = vmatpush.bf16.msra.mxu0 %v2931
    %2969 = vmatpush.bf16.msra.mxu0 %v2927
    %2970 = vmatmul.bf16.gmra.mxu0 %v2959
    %v2971 = vpop.f32.mrf.mxu0
    %v2972 = vadd.f32 0.0, %v2971
    %v2973 = vpop.f32.mrf.mxu0
    %v2974 = vadd.f32 0.0, %v2973
    %2975 = vmatmul.bf16.gmra.mxu0 %v2960
    %v2976 = vpop.f32.mrf.mxu0
    %v2977 = vadd.f32 0.0, %v2976
    %v2978 = vpop.f32.mrf.mxu0
    %v2979 = vadd.f32 0.0, %v2978
    %2980 = vmatmul.bf16.gmra.mxu0 %v2961
    %v2981 = vpop.f32.mrf.mxu0
    %v2982 = vadd.f32 0.0, %v2981
    %v2983 = vpop.f32.mrf.mxu0
    %2984 = vdwg.mxu0
    %2985 = vmatpush.bf16.msra.mxu0 %v2956
    %2986 = vmatpush.bf16.msra.mxu0 %v2952
    %2987 = vmatpush.bf16.msra.mxu0 %v2948
    %2988 = vmatpush.bf16.msra.mxu0 %v2944
    %2989 = vmatpush.bf16.msra.mxu0 %v2940
    %2990 = vmatpush.bf16.msra.mxu0 %v2936
    %2991 = vmatpush.bf16.msra.mxu0 %v2932
    %2992 = vmatpush.bf16.msra.mxu0 %v2928
    %2993 = vmatmul.bf16.gmra.mxu0 %v2959
    %v2994 = vpop.f32.mrf.mxu0
    %v2995 = vadd.f32 0.0, %v2994
    %v2996 = vpop.f32.mrf.mxu0
    %v2997 = vadd.f32 0.0, %v2996
    %2998 = vmatmul.bf16.gmra.mxu0 %v2960
    %v2999 = vpop.f32.mrf.mxu0
    %v3000 = vadd.f32 0.0, %v2999
    %v3001 = vpop.f32.mrf.mxu0
    %v3002 = vadd.f32 0.0, %v3001
    %3003 = vmatmul.bf16.gmra.mxu0 %v2961
    %v3004 = vpop.f32.mrf.mxu0
    %v3005 = vadd.f32 0.0, %v3004
    %v3006 = vpop.f32.mrf.mxu0
    %3007 = vdwg.mxu0
    %3008 = vmatpush.bf16.msra.mxu0 %v2957
    %3009 = vmatpush.bf16.msra.mxu0 %v2953
    %3010 = vmatpush.bf16.msra.mxu0 %v2949
    %3011 = vmatpush.bf16.msra.mxu0 %v2945
    %3012 = vmatpush.bf16.msra.mxu0 %v2941
    %3013 = vmatpush.bf16.msra.mxu0 %v2937
    %3014 = vmatpush.bf16.msra.mxu0 %v2933
    %3015 = vmatpush.bf16.msra.mxu0 %v2929
    %3016 = vmatmul.bf16.gmra.mxu0 %v2959
    %v3017 = vpop.f32.mrf.mxu0
    %v3018 = vadd.f32 0.0, %v3017
    %v3019 = vpop.f32.mrf.mxu0
    %v3020 = vadd.f32 0.0, %v3019
    %3021 = vmatmul.bf16.gmra.mxu0 %v2960
    %v3022 = vpop.f32.mrf.mxu0
    %v3023 = vadd.f32 0.0, %v3022
    %v3024 = vpop.f32.mrf.mxu0
    %v3025 = vadd.f32 0.0, %v3024
    %3026 = vmatmul.bf16.gmra.mxu0 %v2961
    %v3027 = vpop.f32.mrf.mxu0
    %v3028 = vadd.f32 0.0, %v3027
    %v3029 = vpop.f32.mrf.mxu0
    %3030 = vdwg.mxu0
    %3031 = vmatpush.bf16.msra.mxu0 %v2958
    %3032 = vmatpush.bf16.msra.mxu0 %v2954
    %3033 = vmatpush.bf16.msra.mxu0 %v2950
    %3034 = vmatpush.bf16.msra.mxu0 %v2946
    %3035 = vmatpush.bf16.msra.mxu0 %v2942
    %3036 = vmatpush.bf16.msra.mxu0 %v2938
    %3037 = vmatpush.bf16.msra.mxu0 %v2934
    %3038 = vmatpush.bf16.msra.mxu0 %v2930
    %3039 = vmatmul.bf16.gmra.mxu0 %v2959
    %v3040 = vpop.f32.mrf.mxu0
    %v3041 = vadd.f32 0.0, %v3040
    %v3042 = vpop.f32.mrf.mxu0
    %v3043 = vadd.f32 0.0, %v3042
    %3044 = vmatmul.bf16.gmra.mxu0 %v2960
    %v3045 = vpop.f32.mrf.mxu0
    %v3046 = vadd.f32 0.0, %v3045
    %v3047 = vpop.f32.mrf.mxu0
    %v3048 = vadd.f32 0.0, %v3047
    %3049 = vmatmul.bf16.gmra.mxu0 %v2961
    %v3050 = vpop.f32.mrf.mxu0
    %v3051 = vadd.f32 0.0, %v3050
    %v3052 = vpop.f32.mrf.mxu0
    %3053 = vdwg.mxu0
    %v3054 = vmax.f32 %v2982, 1.0
    %v3055 = vmax.f32 %v3005, 1.0
    %v3056 = vmax.f32 %v3028, 1.0
    %v3057 = vmax.f32 %v3051, 1.0
    %v3058 = vrcp.pop %v3054
    %v3059 = vrcp.pop %v3055
    %v3060 = vrcp.pop %v3056
    %v3061 = vrcp.pop %v3057
    %v3062 = vperm.slane %v3058, 0
    %v3063 = vperm.slane %v3059, 0
    %v3064 = vperm.slane %v3060, 0
    %v3065 = vperm.slane %v3061, 0
    %v3066 = vmul.f32 %v2972, %v3062
    %v3067 = vmul.f32 %v2995, %v3063
    %v3068 = vmul.f32 %v3018, %v3064
    %v3069 = vmul.f32 %v3041, %v3065
    %v3070 = vmul.f32 %v2974, %v3062
    %v3071 = vmul.f32 %v2997, %v3063
    %v3072 = vmul.f32 %v3020, %v3064
    %v3073 = vmul.f32 %v3043, %v3065
    %v3074 = vmul.f32 %v2977, %v3062
    %v3075 = vmul.f32 %v3000, %v3063
    %v3076 = vmul.f32 %v3023, %v3064
    %v3077 = vmul.f32 %v3046, %v3065
    %v3078 = vmul.f32 %v2979, %v3062
    %v3079 = vmul.f32 %v3002, %v3063
    %v3080 = vmul.f32 %v3025, %v3064
    %v3081 = vmul.f32 %v3048, %v3065
    %3082 = vst [vmem:[#allocation4] sm:$0xff] %v3066
    %3083 = vst [vmem:[#allocation4 + $0x8] sm:$0xff] %v3067
    %3084 = vst [vmem:[#allocation4 + $0x10] sm:$0xff] %v3068
    %3085 = vst [vmem:[#allocation4 + $0x18] sm:$0xff] %v3069
    %3086 = vst [vmem:[#allocation4 + $0x20] sm:$0xff] %v3070
    %3087 = vst [vmem:[#allocation4 + $0x28] sm:$0xff] %v3071
    %3088 = vst [vmem:[#allocation4 + $0x30] sm:$0xff] %v3072
    %3089 = vst [vmem:[#allocation4 + $0x38] sm:$0xff] %v3073
    %3090 = vst [vmem:[#allocation4 + $0x40] sm:$0xff] %v3074
    %3091 = vst [vmem:[#allocation4 + $0x48] sm:$0xff] %v3075
    %3092 = vst [vmem:[#allocation4 + $0x50] sm:$0xff] %v3076
    %3093 = vst [vmem:[#allocation4 + $0x58] sm:$0xff] %v3077
    %3094 = vst [vmem:[#allocation4 + $0x60] sm:$0xff] %v3078
    %3095 = vst [vmem:[#allocation4 + $0x68] sm:$0xff] %v3079
    %3096 = vst [vmem:[#allocation4 + $0x70] sm:$0xff] %v3080
    %3097 = vst [vmem:[#allocation4 + $0x78] sm:$0xff] %v3081
    %v3098 = vld [vmem:[%s2 + $0x80] sm:$0xff]
    %v3099 = vld [vmem:[%s2 + $0x88] sm:$0xff]
    %v3100 = vld [vmem:[%s2 + $0x90] sm:$0xff]
    %v3101 = vld [vmem:[%s2 + $0x98] sm:$0xff]
    %v3102 = vld [vmem:[%s2 + $0xa0] sm:$0xff]
    %v3103 = vld [vmem:[%s2 + $0xa8] sm:$0xff]
    %v3104 = vld [vmem:[%s2 + $0xb0] sm:$0xff]
    %v3105 = vld [vmem:[%s2 + $0xb8] sm:$0xff]
    %v3106 = vld [vmem:[%s2 + $0xc0] sm:$0xff]
    %v3107 = vld [vmem:[%s2 + $0xc8] sm:$0xff]
    %v3108 = vld [vmem:[%s2 + $0xd0] sm:$0xff]
    %v3109 = vld [vmem:[%s2 + $0xd8] sm:$0xff]
    %v3110 = vld [vmem:[%s2 + $0xe0] sm:$0xff]
    %v3111 = vld [vmem:[%s2 + $0xe8] sm:$0xff]
    %v3112 = vld [vmem:[%s2 + $0xf0] sm:$0xff]
    %v3113 = vld [vmem:[%s2 + $0xf8] sm:$0xff]
    %s3114 = sadd.s32 %s2664, 1
    %s3115 = smul.u32 %s3114, 512
    %v3116 = vstv %s3115
    %v3117 = vadd.s32 %v593, %v3116
    %v3118 = vadd.s32 %v594, %v3116
    %v3119 = vadd.s32 %v2662, %v3116
    %v3120 = vadd.s32 %v2663, %v3116
    %3121 = vset.pattern.permute.xlu0 0
    %3122 = vperm.xlu0 %3121, %v3098
    %v3123 = vpop.permute.xlu0 %3122
    %3124 = vset.pattern.permute.xlu0 0
    %3125 = vperm.xlu0 %3124, %v3099
    %v3126 = vpop.permute.xlu0 %3125
    %3127 = vset.pattern.permute.xlu0 0
    %3128 = vperm.xlu0 %3127, %v3100
    %v3129 = vpop.permute.xlu0 %3128
    %3130 = vset.pattern.permute.xlu0 0
    %3131 = vperm.xlu0 %3130, %v3101
    %v3132 = vpop.permute.xlu0 %3131
    %3133 = vset.pattern.permute.xlu0 0
    %3134 = vperm.xlu0 %3133, %v3102
    %v3135 = vpop.permute.xlu0 %3134
    %3136 = vset.pattern.permute.xlu0 0
    %3137 = vperm.xlu0 %3136, %v3103
    %v3138 = vpop.permute.xlu0 %3137
    %3139 = vset.pattern.permute.xlu0 0
    %3140 = vperm.xlu0 %3139, %v3104
    %v3141 = vpop.permute.xlu0 %3140
    %3142 = vset.pattern.permute.xlu0 0
    %3143 = vperm.xlu0 %3142, %v3105
    %v3144 = vpop.permute.xlu0 %3143
    %3145 = vset.pattern.permute.xlu0 0
    %3146 = vperm.xlu0 %3145, %v3106
    %v3147 = vpop.permute.xlu0 %3146
    %3148 = vset.pattern.permute.xlu0 0
    %3149 = vperm.xlu0 %3148, %v3107
    %v3150 = vpop.permute.xlu0 %3149
    %3151 = vset.pattern.permute.xlu0 0
    %3152 = vperm.xlu0 %3151, %v3108
    %v3153 = vpop.permute.xlu0 %3152
    %3154 = vset.pattern.permute.xlu0 0
    %3155 = vperm.xlu0 %3154, %v3109
    %v3156 = vpop.permute.xlu0 %3155
    %3157 = vset.pattern.permute.xlu0 0
    %3158 = vperm.xlu0 %3157, %v3110
    %v3159 = vpop.permute.xlu0 %3158
    %3160 = vset.pattern.permute.xlu0 0
    %3161 = vperm.xlu0 %3160, %v3111
    %v3162 = vpop.permute.xlu0 %3161
    %3163 = vset.pattern.permute.xlu0 0
    %3164 = vperm.xlu0 %3163, %v3112
    %v3165 = vpop.permute.xlu0 %3164
    %3166 = vset.pattern.permute.xlu0 0
    %3167 = vperm.xlu0 %3166, %v3113
    %v3168 = vpop.permute.xlu0 %3167
    %vm3169 = vcmp.eq.s32.totalorder %v3123, %v3117
    %vm3170 = vcmp.eq.s32.totalorder %v3123, %v3118
    %vm3171 = vcmp.eq.s32.totalorder %v3123, %v3119
    %vm3172 = vcmp.eq.s32.totalorder %v3123, %v3120
    %vm3173 = vcmp.eq.s32.totalorder %v3126, %v3117
    %vm3174 = vcmp.eq.s32.totalorder %v3126, %v3118
    %vm3175 = vcmp.eq.s32.totalorder %v3126, %v3119
    %vm3176 = vcmp.eq.s32.totalorder %v3126, %v3120
    %vm3177 = vcmp.eq.s32.totalorder %v3129, %v3117
    %vm3178 = vcmp.eq.s32.totalorder %v3129, %v3118
    %vm3179 = vcmp.eq.s32.totalorder %v3129, %v3119
    %vm3180 = vcmp.eq.s32.totalorder %v3129, %v3120
    %vm3181 = vcmp.eq.s32.totalorder %v3132, %v3117
    %vm3182 = vcmp.eq.s32.totalorder %v3132, %v3118
    %vm3183 = vcmp.eq.s32.totalorder %v3132, %v3119
    %vm3184 = vcmp.eq.s32.totalorder %v3132, %v3120
    %vm3185 = vcmp.eq.s32.totalorder %v3135, %v3117
    %vm3186 = vcmp.eq.s32.totalorder %v3135, %v3118
    %vm3187 = vcmp.eq.s32.totalorder %v3135, %v3119
    %vm3188 = vcmp.eq.s32.totalorder %v3135, %v3120
    %vm3189 = vcmp.eq.s32.totalorder %v3138, %v3117
    %vm3190 = vcmp.eq.s32.totalorder %v3138, %v3118
    %vm3191 = vcmp.eq.s32.totalorder %v3138, %v3119
    %vm3192 = vcmp.eq.s32.totalorder %v3138, %v3120
    %vm3193 = vcmp.eq.s32.totalorder %v3141, %v3117
    %vm3194 = vcmp.eq.s32.totalorder %v3141, %v3118
    %vm3195 = vcmp.eq.s32.totalorder %v3141, %v3119
    %vm3196 = vcmp.eq.s32.totalorder %v3141, %v3120
    %vm3197 = vcmp.eq.s32.totalorder %v3144, %v3117
    %vm3198 = vcmp.eq.s32.totalorder %v3144, %v3118
    %vm3199 = vcmp.eq.s32.totalorder %v3144, %v3119
    %vm3200 = vcmp.eq.s32.totalorder %v3144, %v3120
    %vm3201 = vcmp.eq.s32.totalorder %v3147, %v3117
    %vm3202 = vcmp.eq.s32.totalorder %v3147, %v3118
    %vm3203 = vcmp.eq.s32.totalorder %v3147, %v3119
    %vm3204 = vcmp.eq.s32.totalorder %v3147, %v3120
    %vm3205 = vcmp.eq.s32.totalorder %v3150, %v3117
    %vm3206 = vcmp.eq.s32.totalorder %v3150, %v3118
    %vm3207 = vcmp.eq.s32.totalorder %v3150, %v3119
    %vm3208 = vcmp.eq.s32.totalorder %v3150, %v3120
    %vm3209 = vcmp.eq.s32.totalorder %v3153, %v3117
    %vm3210 = vcmp.eq.s32.totalorder %v3153, %v3118
    %vm3211 = vcmp.eq.s32.totalorder %v3153, %v3119
    %vm3212 = vcmp.eq.s32.totalorder %v3153, %v3120
    %vm3213 = vcmp.eq.s32.totalorder %v3156, %v3117
    %vm3214 = vcmp.eq.s32.totalorder %v3156, %v3118
    %vm3215 = vcmp.eq.s32.totalorder %v3156, %v3119
    %vm3216 = vcmp.eq.s32.totalorder %v3156, %v3120
    %vm3217 = vcmp.eq.s32.totalorder %v3159, %v3117
    %vm3218 = vcmp.eq.s32.totalorder %v3159, %v3118
    %vm3219 = vcmp.eq.s32.totalorder %v3159, %v3119
    %vm3220 = vcmp.eq.s32.totalorder %v3159, %v3120
    %vm3221 = vcmp.eq.s32.totalorder %v3162, %v3117
    %vm3222 = vcmp.eq.s32.totalorder %v3162, %v3118
    %vm3223 = vcmp.eq.s32.totalorder %v3162, %v3119
    %vm3224 = vcmp.eq.s32.totalorder %v3162, %v3120
    %vm3225 = vcmp.eq.s32.totalorder %v3165, %v3117
    %vm3226 = vcmp.eq.s32.totalorder %v3165, %v3118
    %vm3227 = vcmp.eq.s32.totalorder %v3165, %v3119
    %vm3228 = vcmp.eq.s32.totalorder %v3165, %v3120
    %vm3229 = vcmp.eq.s32.totalorder %v3168, %v3117
    %vm3230 = vcmp.eq.s32.totalorder %v3168, %v3118
    %vm3231 = vcmp.eq.s32.totalorder %v3168, %v3119
    %vm3232 = vcmp.eq.s32.totalorder %v3168, %v3120
    %v3233 = vsel %vm3169, 1, 0
    %v3234 = vsel %vm3170, 1, 0
    %v3235 = vsel %vm3171, 1, 0
    %v3236 = vsel %vm3172, 1, 0
    %v3237 = vsel %vm3173, 1, 0
    %v3238 = vsel %vm3174, 1, 0
    %v3239 = vsel %vm3175, 1, 0
    %v3240 = vsel %vm3176, 1, 0
    %v3241 = vsel %vm3177, 1, 0
    %v3242 = vsel %vm3178, 1, 0
    %v3243 = vsel %vm3179, 1, 0
    %v3244 = vsel %vm3180, 1, 0
    %v3245 = vsel %vm3181, 1, 0
    %v3246 = vsel %vm3182, 1, 0
    %v3247 = vsel %vm3183, 1, 0
    %v3248 = vsel %vm3184, 1, 0
    %v3249 = vsel %vm3185, 1, 0
    %v3250 = vsel %vm3186, 1, 0
    %v3251 = vsel %vm3187, 1, 0
    %v3252 = vsel %vm3188, 1, 0
    %v3253 = vsel %vm3189, 1, 0
    %v3254 = vsel %vm3190, 1, 0
    %v3255 = vsel %vm3191, 1, 0
    %v3256 = vsel %vm3192, 1, 0
    %v3257 = vsel %vm3193, 1, 0
    %v3258 = vsel %vm3194, 1, 0
    %v3259 = vsel %vm3195, 1, 0
    %v3260 = vsel %vm3196, 1, 0
    %v3261 = vsel %vm3197, 1, 0
    %v3262 = vsel %vm3198, 1, 0
    %v3263 = vsel %vm3199, 1, 0
    %v3264 = vsel %vm3200, 1, 0
    %v3265 = vsel %vm3201, 1, 0
    %v3266 = vsel %vm3202, 1, 0
    %v3267 = vsel %vm3203, 1, 0
    %v3268 = vsel %vm3204, 1, 0
    %v3269 = vsel %vm3205, 1, 0
    %v3270 = vsel %vm3206, 1, 0
    %v3271 = vsel %vm3207, 1, 0
    %v3272 = vsel %vm3208, 1, 0
    %v3273 = vsel %vm3209, 1, 0
    %v3274 = vsel %vm3210, 1, 0
    %v3275 = vsel %vm3211, 1, 0
    %v3276 = vsel %vm3212, 1, 0
    %v3277 = vsel %vm3213, 1, 0
    %v3278 = vsel %vm3214, 1, 0
    %v3279 = vsel %vm3215, 1, 0
    %v3280 = vsel %vm3216, 1, 0
    %v3281 = vsel %vm3217, 1, 0
    %v3282 = vsel %vm3218, 1, 0
    %v3283 = vsel %vm3219, 1, 0
    %v3284 = vsel %vm3220, 1, 0
    %v3285 = vsel %vm3221, 1, 0
    %v3286 = vsel %vm3222, 1, 0
    %v3287 = vsel %vm3223, 1, 0
    %v3288 = vsel %vm3224, 1, 0
    %v3289 = vsel %vm3225, 1, 0
    %v3290 = vsel %vm3226, 1, 0
    %v3291 = vsel %vm3227, 1, 0
    %v3292 = vsel %vm3228, 1, 0
    %v3293 = vsel %vm3229, 1, 0
    %v3294 = vsel %vm3230, 1, 0
    %v3295 = vsel %vm3231, 1, 0
    %v3296 = vsel %vm3232, 1, 0
    %v3297 = vcvt.s32.f32 %v3233
    %v3298 = vcvt.s32.f32 %v3234
    %v3299 = vcvt.s32.f32 %v3235
    %v3300 = vcvt.s32.f32 %v3236
    %v3301 = vcvt.s32.f32 %v3237
    %v3302 = vcvt.s32.f32 %v3238
    %v3303 = vcvt.s32.f32 %v3239
    %v3304 = vcvt.s32.f32 %v3240
    %v3305 = vcvt.s32.f32 %v3241
    %v3306 = vcvt.s32.f32 %v3242
    %v3307 = vcvt.s32.f32 %v3243
    %v3308 = vcvt.s32.f32 %v3244
    %v3309 = vcvt.s32.f32 %v3245
    %v3310 = vcvt.s32.f32 %v3246
    %v3311 = vcvt.s32.f32 %v3247
    %v3312 = vcvt.s32.f32 %v3248
    %v3313 = vcvt.s32.f32 %v3249
    %v3314 = vcvt.s32.f32 %v3250
    %v3315 = vcvt.s32.f32 %v3251
    %v3316 = vcvt.s32.f32 %v3252
    %v3317 = vcvt.s32.f32 %v3253
    %v3318 = vcvt.s32.f32 %v3254
    %v3319 = vcvt.s32.f32 %v3255
    %v3320 = vcvt.s32.f32 %v3256
    %v3321 = vcvt.s32.f32 %v3257
    %v3322 = vcvt.s32.f32 %v3258
    %v3323 = vcvt.s32.f32 %v3259
    %v3324 = vcvt.s32.f32 %v3260
    %v3325 = vcvt.s32.f32 %v3261
    %v3326 = vcvt.s32.f32 %v3262
    %v3327 = vcvt.s32.f32 %v3263
    %v3328 = vcvt.s32.f32 %v3264
    %v3329 = vcvt.s32.f32 %v3265
    %v3330 = vcvt.s32.f32 %v3266
    %v3331 = vcvt.s32.f32 %v3267
    %v3332 = vcvt.s32.f32 %v3268
    %v3333 = vcvt.s32.f32 %v3269
    %v3334 = vcvt.s32.f32 %v3270
    %v3335 = vcvt.s32.f32 %v3271
    %v3336 = vcvt.s32.f32 %v3272
    %v3337 = vcvt.s32.f32 %v3273
    %v3338 = vcvt.s32.f32 %v3274
    %v3339 = vcvt.s32.f32 %v3275
    %v3340 = vcvt.s32.f32 %v3276
    %v3341 = vcvt.s32.f32 %v3277
    %v3342 = vcvt.s32.f32 %v3278
    %v3343 = vcvt.s32.f32 %v3279
    %v3344 = vcvt.s32.f32 %v3280
    %v3345 = vcvt.s32.f32 %v3281
    %v3346 = vcvt.s32.f32 %v3282
    %v3347 = vcvt.s32.f32 %v3283
    %v3348 = vcvt.s32.f32 %v3284
    %v3349 = vcvt.s32.f32 %v3285
    %v3350 = vcvt.s32.f32 %v3286
    %v3351 = vcvt.s32.f32 %v3287
    %v3352 = vcvt.s32.f32 %v3288
    %v3353 = vcvt.s32.f32 %v3289
    %v3354 = vcvt.s32.f32 %v3290
    %v3355 = vcvt.s32.f32 %v3291
    %v3356 = vcvt.s32.f32 %v3292
    %v3357 = vcvt.s32.f32 %v3293
    %v3358 = vcvt.s32.f32 %v3294
    %v3359 = vcvt.s32.f32 %v3295
    %v3360 = vcvt.s32.f32 %v3296
    %v3361 = vpack.c.bf16 %v3301, %v3297
    %v3362 = vpack.c.bf16 %v3302, %v3298
    %v3363 = vpack.c.bf16 %v3303, %v3299
    %v3364 = vpack.c.bf16 %v3304, %v3300
    %v3365 = vpack.c.bf16 %v3309, %v3305
    %v3366 = vpack.c.bf16 %v3310, %v3306
    %v3367 = vpack.c.bf16 %v3311, %v3307
    %v3368 = vpack.c.bf16 %v3312, %v3308
    %v3369 = vpack.c.bf16 %v3317, %v3313
    %v3370 = vpack.c.bf16 %v3318, %v3314
    %v3371 = vpack.c.bf16 %v3319, %v3315
    %v3372 = vpack.c.bf16 %v3320, %v3316
    %v3373 = vpack.c.bf16 %v3325, %v3321
    %v3374 = vpack.c.bf16 %v3326, %v3322
    %v3375 = vpack.c.bf16 %v3327, %v3323
    %v3376 = vpack.c.bf16 %v3328, %v3324
    %v3377 = vpack.c.bf16 %v3333, %v3329
    %v3378 = vpack.c.bf16 %v3334, %v3330
    %v3379 = vpack.c.bf16 %v3335, %v3331
    %v3380 = vpack.c.bf16 %v3336, %v3332
    %v3381 = vpack.c.bf16 %v3341, %v3337
    %v3382 = vpack.c.bf16 %v3342, %v3338
    %v3383 = vpack.c.bf16 %v3343, %v3339
    %v3384 = vpack.c.bf16 %v3344, %v3340
    %v3385 = vpack.c.bf16 %v3349, %v3345
    %v3386 = vpack.c.bf16 %v3350, %v3346
    %v3387 = vpack.c.bf16 %v3351, %v3347
    %v3388 = vpack.c.bf16 %v3352, %v3348
    %v3389 = vpack.c.bf16 %v3357, %v3353
    %v3390 = vpack.c.bf16 %v3358, %v3354
    %v3391 = vpack.c.bf16 %v3359, %v3355
    %v3392 = vpack.c.bf16 %v3360, %v3356
    %v3393 = vpack.c.bf16 %v2651, %v2649
    %v3394 = vpack.c.bf16 %v2656, %v2654
    %v3395 = vpack.c.bf16 %v2659, %v2659
    %3396 = vmatpush.bf16.msra.mxu0 %v3389
    %3397 = vmatpush.bf16.msra.mxu0 %v3385
    %3398 = vmatpush.bf16.msra.mxu0 %v3381
    %3399 = vmatpush.bf16.msra.mxu0 %v3377
    %3400 = vmatpush.bf16.msra.mxu0 %v3373
    %3401 = vmatpush.bf16.msra.mxu0 %v3369
    %3402 = vmatpush.bf16.msra.mxu0 %v3365
    %3403 = vmatpush.bf16.msra.mxu0 %v3361
    %3404 = vmatmul.bf16.gmra.mxu0 %v3393
    %v3405 = vpop.f32.mrf.mxu0
    %v3406 = vadd.f32 0.0, %v3405
    %v3407 = vpop.f32.mrf.mxu0
    %v3408 = vadd.f32 0.0, %v3407
    %3409 = vmatmul.bf16.gmra.mxu0 %v3394
    %v3410 = vpop.f32.mrf.mxu0
    %v3411 = vadd.f32 0.0, %v3410
    %v3412 = vpop.f32.mrf.mxu0
    %v3413 = vadd.f32 0.0, %v3412
    %3414 = vmatmul.bf16.gmra.mxu0 %v3395
    %v3415 = vpop.f32.mrf.mxu0
    %v3416 = vadd.f32 0.0, %v3415
    %v3417 = vpop.f32.mrf.mxu0
    %3418 = vdwg.mxu0
    %3419 = vmatpush.bf16.msra.mxu0 %v3390
    %3420 = vmatpush.bf16.msra.mxu0 %v3386
    %3421 = vmatpush.bf16.msra.mxu0 %v3382
    %3422 = vmatpush.bf16.msra.mxu0 %v3378
    %3423 = vmatpush.bf16.msra.mxu0 %v3374
    %3424 = vmatpush.bf16.msra.mxu0 %v3370
    %3425 = vmatpush.bf16.msra.mxu0 %v3366
    %3426 = vmatpush.bf16.msra.mxu0 %v3362
    %3427 = vmatmul.bf16.gmra.mxu0 %v3393
    %v3428 = vpop.f32.mrf.mxu0
    %v3429 = vadd.f32 0.0, %v3428
    %v3430 = vpop.f32.mrf.mxu0
    %v3431 = vadd.f32 0.0, %v3430
    %3432 = vmatmul.bf16.gmra.mxu0 %v3394
    %v3433 = vpop.f32.mrf.mxu0
    %v3434 = vadd.f32 0.0, %v3433
    %v3435 = vpop.f32.mrf.mxu0
    %v3436 = vadd.f32 0.0, %v3435
    %3437 = vmatmul.bf16.gmra.mxu0 %v3395
    %v3438 = vpop.f32.mrf.mxu0
    %v3439 = vadd.f32 0.0, %v3438
    %v3440 = vpop.f32.mrf.mxu0
    %3441 = vdwg.mxu0
    %3442 = vmatpush.bf16.msra.mxu0 %v3391
    %3443 = vmatpush.bf16.msra.mxu0 %v3387
    %3444 = vmatpush.bf16.msra.mxu0 %v3383
    %3445 = vmatpush.bf16.msra.mxu0 %v3379
    %3446 = vmatpush.bf16.msra.mxu0 %v3375
    %3447 = vmatpush.bf16.msra.mxu0 %v3371
    %3448 = vmatpush.bf16.msra.mxu0 %v3367
    %3449 = vmatpush.bf16.msra.mxu0 %v3363
    %3450 = vmatmul.bf16.gmra.mxu0 %v3393
    %v3451 = vpop.f32.mrf.mxu0
    %v3452 = vadd.f32 0.0, %v3451
    %v3453 = vpop.f32.mrf.mxu0
    %v3454 = vadd.f32 0.0, %v3453
    %3455 = vmatmul.bf16.gmra.mxu0 %v3394
    %v3456 = vpop.f32.mrf.mxu0
    %v3457 = vadd.f32 0.0, %v3456
    %v3458 = vpop.f32.mrf.mxu0
    %v3459 = vadd.f32 0.0, %v3458
    %3460 = vmatmul.bf16.gmra.mxu0 %v3395
    %v3461 = vpop.f32.mrf.mxu0
    %v3462 = vadd.f32 0.0, %v3461
    %v3463 = vpop.f32.mrf.mxu0
    %3464 = vdwg.mxu0
    %3465 = vmatpush.bf16.msra.mxu0 %v3392
    %3466 = vmatpush.bf16.msra.mxu0 %v3388
    %3467 = vmatpush.bf16.msra.mxu0 %v3384
    %3468 = vmatpush.bf16.msra.mxu0 %v3380
    %3469 = vmatpush.bf16.msra.mxu0 %v3376
    %3470 = vmatpush.bf16.msra.mxu0 %v3372
    %3471 = vmatpush.bf16.msra.mxu0 %v3368
    %3472 = vmatpush.bf16.msra.mxu0 %v3364
    %3473 = vmatmul.bf16.gmra.mxu0 %v3393
    %v3474 = vpop.f32.mrf.mxu0
    %v3475 = vadd.f32 0.0, %v3474
    %v3476 = vpop.f32.mrf.mxu0
    %v3477 = vadd.f32 0.0, %v3476
    %3478 = vmatmul.bf16.gmra.mxu0 %v3394
    %v3479 = vpop.f32.mrf.mxu0
    %v3480 = vadd.f32 0.0, %v3479
    %v3481 = vpop.f32.mrf.mxu0
    %v3482 = vadd.f32 0.0, %v3481
    %3483 = vmatmul.bf16.gmra.mxu0 %v3395
    %v3484 = vpop.f32.mrf.mxu0
    %v3485 = vadd.f32 0.0, %v3484
    %v3486 = vpop.f32.mrf.mxu0
    %3487 = vdwg.mxu0
    %v3488 = vmax.f32 %v3416, 1.0
    %v3489 = vmax.f32 %v3439, 1.0
    %v3490 = vmax.f32 %v3462, 1.0
    %v3491 = vmax.f32 %v3485, 1.0
    %v3492 = vrcp.pop %v3488
    %v3493 = vrcp.pop %v3489
    %v3494 = vrcp.pop %v3490
    %v3495 = vrcp.pop %v3491
    %v3496 = vperm.slane %v3492, 0
    %v3497 = vperm.slane %v3493, 0
    %v3498 = vperm.slane %v3494, 0
    %v3499 = vperm.slane %v3495, 0
    %v3500 = vmul.f32 %v3406, %v3496
    %v3501 = vmul.f32 %v3429, %v3497
    %v3502 = vmul.f32 %v3452, %v3498
    %v3503 = vmul.f32 %v3475, %v3499
    %v3504 = vmul.f32 %v3408, %v3496
    %v3505 = vmul.f32 %v3431, %v3497
    %v3506 = vmul.f32 %v3454, %v3498
    %v3507 = vmul.f32 %v3477, %v3499
    %v3508 = vmul.f32 %v3411, %v3496
    %v3509 = vmul.f32 %v3434, %v3497
    %v3510 = vmul.f32 %v3457, %v3498
    %v3511 = vmul.f32 %v3480, %v3499
    %v3512 = vmul.f32 %v3413, %v3496
    %v3513 = vmul.f32 %v3436, %v3497
    %v3514 = vmul.f32 %v3459, %v3498
    %v3515 = vmul.f32 %v3482, %v3499
    %s3516 = scalar_lea.vmem [#allocation4], 128
    %3517 = vst [vmem:[%s3516] sm:$0xff] %v3500
    %3518 = vst [vmem:[%s3516 + $0x8] sm:$0xff] %v3501
    %3519 = vst [vmem:[%s3516 + $0x10] sm:$0xff] %v3502
    %3520 = vst [vmem:[%s3516 + $0x18] sm:$0xff] %v3503
    %3521 = vst [vmem:[%s3516 + $0x20] sm:$0xff] %v3504
    %3522 = vst [vmem:[%s3516 + $0x28] sm:$0xff] %v3505
    %3523 = vst [vmem:[%s3516 + $0x30] sm:$0xff] %v3506
    %3524 = vst [vmem:[%s3516 + $0x38] sm:$0xff] %v3507
    %3525 = vst [vmem:[%s3516 + $0x40] sm:$0xff] %v3508
    %3526 = vst [vmem:[%s3516 + $0x48] sm:$0xff] %v3509
    %3527 = vst [vmem:[%s3516 + $0x50] sm:$0xff] %v3510
    %3528 = vst [vmem:[%s3516 + $0x58] sm:$0xff] %v3511
    %3529 = vst [vmem:[%s3516 + $0x60] sm:$0xff] %v3512
    %3530 = vst [vmem:[%s3516 + $0x68] sm:$0xff] %v3513
    %3531 = vst [vmem:[%s3516 + $0x70] sm:$0xff] %v3514
    %3532 = vst [vmem:[%s3516 + $0x78] sm:$0xff] %v3515
    // Predicated region
    $region60: #{tpu_custom_call.1} parent=1 // pred_check
      _
    $region61: #{tpu_custom_call.1} parent=1 // pred_check_branch
      %3534 = sbr.rel (0) target = $region63
    $region62: #{tpu_custom_call.1} parent=1 // pred_region
      %3536 = vsyncadd [#allocation5], 0
      %s3537 = sshll.u32 [#allocation4], 4
      %s3538 = int_to_ptr.vmem [resolvable:$true] %s3537
      %s3539 = sshll.u32 %s11, 4
      %s3540 = int_to_ptr.hbm [resolvable:$true] %s3539
      %3545 = dma.vmem_to_hbm [thread:$0]  %s3538, 4096, %s3540, [#allocation5], 512, 512, 32
    $region63: #{tpu_custom_call.1} parent=1 // pred_fallthru
      _
    // Predicated region
    $region64: #{tpu_custom_call.1} parent=1 // pred_check
      _
    $region65: #{tpu_custom_call.1} parent=1 // pred_check_branch
      %3547 = sbr.rel (0) target = $region67
    $region66: #{tpu_custom_call.1} parent=1 // pred_region
      %3549 = dma.done [#allocation5], 4096
    $region67: #{tpu_custom_call.1} parent=1 // pred_fallthru
      _
    %3550 = vsyncpa [#allocation5], 1

</llo_original>
